<compile_context>
chip_gen: v7x
topology: tpu7x:2x2x1
jax: 0.10.0
libtpu: 0.0.40
codegen_flags: <defaults>
</compile_context>

<pallas_src>
import numpy as np
import jax
import jax.numpy as jnp
from jax import lax
from jax.experimental import pallas as pl
from jax.experimental.pallas import tpu as pltpu  # noqa: F401  (TPU backend)

# ---------------- static configuration (small shapes) ----------------
B = 2            # batch
L = 8            # target sequence length (query)
S = 8            # source sequence length (encoder states)
D_MODEL = 32
N_HEADS = 4
DK = D_MODEL // N_HEADS
FF_UNITS = 64
N_LAYERS = 2
MAX_LEN = 100
LN_EPS = 1e-5                      # nn.LayerNorm default
SQRT_D = float(np.sqrt(D_MODEL))

BL = B * L                          # flattened (batch, target) rows
BS = B * S                          # flattened (batch, source) rows
BLH = BL * N_HEADS                  # (batch, target, head) rows
BSH = BS * N_HEADS                  # (batch, source, head) rows


# ---------------- shared math ----------------
def _layernorm(x, g, b):
    mu = jnp.mean(x, axis=-1, keepdims=True)
    var = jnp.mean(jnp.square(x - mu), axis=-1, keepdims=True)
    return (x - mu) * lax.rsqrt(var + LN_EPS) * g + b


# ---------------- Pallas kernel ----------------
def decoder_kernel(q_ref, pe_ref, st_ref, tbias_ref, sbias_ref,
                   rep_ref, pool_ref, hsel2_ref,
                   wqkv_s_ref, bqkv_s_ref, wo_s_ref, bo_s_ref,
                   wq_c_ref, bq_c_ref, wkv_c_ref, bkv_c_ref, wo_c_ref, bo_c_ref,
                   w1_ref, b1_ref, w2_ref, b2_ref,
                   lng_ref, lnb_ref, fg_ref, fb_ref,
                   o_ref):
    f32 = jnp.float32

    # PositionalEncoding: x * sqrt(d_model) + pe   (all rows at once, f32)
    x = q_ref[...] * SQRT_D + pe_ref[...]          # (BL, D)
    st = st_ref[...]                                # (BS, D) encoder states
    tbias = tbias_ref[...]                          # (BLH, BLH) additive mask bias
    sbias = sbias_ref[...]                          # (BLH, BSH) additive mask bias
    rep = rep_ref[...]                              # (BLH, BL)  0/1 row-replication matrix
    pool = pool_ref[...]                            # (BL, BLH)  0/1 head-group-sum matrix
    hsel2 = hsel2_ref[...]                          # (BSH, 2D)  per-head lane selector for [K|V]

    def attend(q_exp, kv_sel, bias):
        # q_exp : (R, D)  rows = (b, t, h), full-lane query (1/sqrt(dk) folded into Wq)
        # kv_sel: (R, 2D) rows = (b, s, h), lanes = [K | V], head lanes already selected
        k = kv_sel[:, :D_MODEL]
        v = kv_sel[:, D_MODEL:]
        s = lax.dot_general(q_exp, k, (((1,), (1,)), ((), ())),
                            preferred_element_type=f32) + bias        # (R, R)
        m = jnp.max(s, axis=-1, keepdims=True)
        e = jnp.exp(s - m)
        p = e * pl.reciprocal(jnp.sum(e, axis=-1, keepdims=True), approx=True)
        # pool the (b,t,h) rows back to (b,t) rows, then weight V; heads land
        # concatenated on the lane axis (head-major), matching Wo row order.
        p2 = jnp.dot(pool, p, preferred_element_type=f32)             # (BL, R)
        return jnp.dot(p2, v, preferred_element_type=f32)             # (BL, D)

    for l in range(N_LAYERS):
        # ---- sublayer 0: masked multi-head self-attention --------------------
        nq = _layernorm(x, lng_ref[3 * l + 0], lnb_ref[3 * l + 0])              # (BL, D)
        qkv = jnp.dot(nq, wqkv_s_ref[l],
                      preferred_element_type=f32) + bqkv_s_ref[l]               # (BL, 3D)
        qkv_e = jnp.dot(rep, qkv, preferred_element_type=f32)                   # (BLH, 3D)
        ctx = attend(qkv_e[:, :D_MODEL], qkv_e[:, D_MODEL:] * hsel2, tbias)     # (BL, D)
        x = x + jnp.dot(ctx, wo_s_ref[l], preferred_element_type=f32) + bo_s_ref[l]

        # ---- sublayer 1: multi-head cross-attention over encoder states ------
        na = _layernorm(x, lng_ref[3 * l + 1], lnb_ref[3 * l + 1])
        q_c = jnp.dot(na, wq_c_ref[l], preferred_element_type=f32) + bq_c_ref[l]   # (BL, D)
        kv_c = jnp.dot(st, wkv_c_ref[l], preferred_element_type=f32) + bkv_c_ref[l]  # (BS, 2D)
        q_ce = jnp.dot(rep, q_c, preferred_element_type=f32)                       # (BLH, D)
        kv_ce = jnp.dot(rep, kv_c, preferred_element_type=f32) * hsel2             # (BSH, 2D)
        ctx = attend(q_ce, kv_ce, sbias)                                            # (BL, D)
        x = x + jnp.dot(ctx, wo_c_ref[l], preferred_element_type=f32) + bo_c_ref[l]

        # ---- sublayer 2: feed-forward (Linear -> ReLU -> Linear) --------------
        nf = _layernorm(x, lng_ref[3 * l + 2], lnb_ref[3 * l + 2])
        h = jnp.maximum(jnp.dot(nf, w1_ref[l],
                                preferred_element_type=f32) + b1_ref[l], 0.0)
        x = x + jnp.dot(h, w2_ref[l], preferred_element_type=f32) + b2_ref[l]

    # DecoderTransf final nn.LayerNorm
    o_ref[...] = _layernorm(x, fg_ref[...], fb_ref[...])


# ---------------- constant layout operators (NumPy, built once) ----------------
def make_positional_encoding():
    position = np.arange(MAX_LEN, dtype=np.float32)[:, None]
    angular_speed = np.exp(np.arange(0, D_MODEL, 2, dtype=np.float32)
                           * (-np.log(10000.0) / D_MODEL))
    pe = np.zeros((MAX_LEN, D_MODEL), np.float32)
    pe[:, 0::2] = np.sin(position * angular_speed)
    pe[:, 1::2] = np.cos(position * angular_speed)
    return pe                                       # (MAX_LEN, D)


def make_constants(pe_np, target_mask_np, source_mask_np):
    pe2d = np.tile(pe_np[:L], (B, 1)).astype(np.float32)                      # (BL, D)

    eye_h = np.eye(N_HEADS, dtype=np.float32)
    eye_b = np.eye(B, dtype=np.float32)
    # batch-diagonal x head-diagonal x (causal / source) 0/1 masks -> additive biases
    tmask = np.kron(eye_b, np.kron(target_mask_np.astype(np.float32), eye_h))  # (BLH, BLH)
    smask = np.kron(eye_b, np.kron(source_mask_np.astype(np.float32), eye_h))  # (BLH, BSH)
    tbias = ((tmask - 1.0) * 1e9).astype(np.float32)
    sbias = ((smask - 1.0) * 1e9).astype(np.float32)

    # constant 0/1 head-layout operators (used on the MXU inside the kernel)
    rep = np.kron(np.eye(BL, dtype=np.float32),
                  np.ones((N_HEADS, 1), np.float32))                          # (BLH, BL)
    pool = np.ascontiguousarray(rep.T)                                        # (BL, BLH)
    hsel = np.tile(np.kron(eye_h, np.ones((1, DK), np.float32)), (BS, 1))     # (BSH, D)
    hsel2 = np.concatenate([hsel, hsel], axis=1).astype(np.float32)           # (BSH, 2D)

    to_j = lambda a: jnp.asarray(a, jnp.float32)
    return tuple(map(to_j, (pe2d, tbias, sbias, rep, pool, hsel2)))


# ---------------- wrapper (no per-call layout ops, plain JAX) ----------------
def build_decoder_fn(consts, packed):
    pe2d, tbias, sbias, rep, pool, hsel2 = consts

    @jax.jit
    def run(query, states):
        q2d = query.reshape(BL, D_MODEL)
        st2d = states.reshape(BS, D_MODEL)
        out2d = pl.pallas_call(
            decoder_kernel,
            out_shape=jax.ShapeDtypeStruct((BL, D_MODEL), jnp.float32),
        )(q2d, pe2d, st2d, tbias, sbias, rep, pool, hsel2, *packed)
        return out2d.reshape(B, L, D_MODEL)

    return run


# ---------------- parameter construction & packing ----------------
def make_params(key):
    """Original-module style parameters, all f32.

    Attention weights stored as (in, out); order per layer:
    [self Wq, Wk, Wv, Wo,  cross Wq, Wk, Wv, Wo]."""
    ks = jax.random.split(key, 6)
    aw = 0.08 * jax.random.normal(ks[0], (N_LAYERS, 8, D_MODEL, D_MODEL), jnp.float32)
    ab = 0.02 * jax.random.normal(ks[1], (N_LAYERS, 8, D_MODEL), jnp.float32)
    w1 = 0.08 * jax.random.normal(ks[2], (N_LAYERS, D_MODEL, FF_UNITS), jnp.float32)
    b1 = 0.02 * jax.random.normal(ks[3], (N_LAYERS, FF_UNITS), jnp.float32)
    w2 = 0.08 * jax.random.normal(ks[4], (N_LAYERS, FF_UNITS, D_MODEL), jnp.float32)
    b2 = 0.02 * jax.random.normal(ks[5], (N_LAYERS, D_MODEL), jnp.float32)
    lg = jnp.ones((N_LAYERS, 3, D_MODEL), jnp.float32)   # LayerNorm default init
    lb = jnp.zeros((N_LAYERS, 3, D_MODEL), jnp.float32)
    fg = jnp.ones((D_MODEL,), jnp.float32)
    fb = jnp.zeros((D_MODEL,), jnp.float32)
    return (aw, ab, w1, b1, w2, b2, lg, lb, fg, fb)


def pack_params(raw):
    """Pack for the kernel (all f32): fused QKV / KV weights, 1/sqrt(d_k)
    folded into Wq/bq, biases & LN params as 2-D rows."""
    aw, ab, w1, b1, w2, b2, lg, lb, fg, fb = raw
    scale = 1.0 / np.sqrt(DK)
    wqkv_s = jnp.concatenate([aw[:, 0] * scale, aw[:, 1], aw[:, 2]], axis=-1)   # (NL, D, 3D)
    bqkv_s = jnp.concatenate([ab[:, 0] * scale, ab[:, 1], ab[:, 2]], axis=-1)   # (NL, 3D)
    wkv_c = jnp.concatenate([aw[:, 5], aw[:, 6]], axis=-1)                      # (NL, D, 2D)
    bkv_c = jnp.concatenate([ab[:, 5], ab[:, 6]], axis=-1)                      # (NL, 2D)
    return (wqkv_s, bqkv_s[:, None, :],
            aw[:, 3], ab[:, 3][:, None, :],
            aw[:, 4] * scale, (ab[:, 4] * scale)[:, None, :],
            wkv_c, bkv_c[:, None, :],
            aw[:, 7], ab[:, 7][:, None, :],
            w1, b1[:, None, :],
            w2, b2[:, None, :],
            lg.reshape(N_LAYERS * 3, 1, D_MODEL), lb.reshape(N_LAYERS * 3, 1, D_MODEL),
            fg[None, :], fb[None, :])


# ---------------- pure-JAX f32 reference (original module semantics) ----------------
def _ref_mha(q_in, kv_in, wq, bq, wk, bk, wv, bv, wo, bo, mask):
    q = q_in @ wq + bq
    k = kv_in @ wk + bk
    v = kv_in @ wv + bv
    out = bo
    scale = 1.0 / np.sqrt(DK)
    for h in range(N_HEADS):
        sl = slice(h * DK, (h + 1) * DK)
        s = (q[:, sl] @ k[:, sl].T) * scale
        s = jnp.where(mask == 0.0, -1e9, s)
        p = jax.nn.softmax(s, axis=-1)
        out = out + (p @ v[:, sl]) @ wo[sl, :]
    return out


def _ref_decode_one(query, states, pe, tmask, smask, raw):
    aw, ab, w1, b1, w2, b2, lg, lb, fg, fb = raw
    x = query * SQRT_D + pe
    for l in range(N_LAYERS):
        nq = _layernorm(x, lg[l, 0], lb[l, 0])
        x = x + _ref_mha(nq, nq, aw[l, 0], ab[l, 0], aw[l, 1], ab[l, 1],
                         aw[l, 2], ab[l, 2], aw[l, 3], ab[l, 3], tmask)
        na = _layernorm(x, lg[l, 1], lb[l, 1])
        x = x + _ref_mha(na, states, aw[l, 4], ab[l, 4], aw[l, 5], ab[l, 5],
                         aw[l, 6], ab[l, 6], aw[l, 7], ab[l, 7], smask)
        nf = _layernorm(x, lg[l, 2], lb[l, 2])
        h = jnp.maximum(nf @ w1[l] + b1[l], 0.0)
        x = x + h @ w2[l] + b2[l]
    return _layernorm(x, fg, fb)


if __name__ == "__main__":
    root = jax.random.PRNGKey(0)
    k_q, k_s, k_p = jax.random.split(root, 3)

    query = jax.random.normal(k_q, (B, L, D_MODEL), jnp.float32)
    states = jax.random.normal(k_s, (B, S, D_MODEL), jnp.float32)   # init_keys(states)
    raw_params = make_params(k_p)
    packed = pack_params(raw_params)

    pe_np = make_positional_encoding()
    tmask_np = np.tril(np.ones((L, L), np.float32))                 # causal target mask
    smask_np = np.ones((L, S), np.float32)                          # source mask (all visible)
    consts = make_constants(pe_np, tmask_np, smask_np)

    decoder_transf_pallas = build_decoder_fn(consts, packed)
    out = jax.block_until_ready(decoder_transf_pallas(query, states))

    # f32 reference with original (unpacked) params; tolerance covers the
    # approximate EUP reciprocal used for the softmax denominator.
    pe_slice = jnp.asarray(pe_np[:L])
    tmask = jnp.asarray(tmask_np)
    smask = jnp.asarray(smask_np)
    ref = jnp.stack([
        _ref_decode_one(query[b], states[b], pe_slice, tmask, smask, raw_params)
        for b in range(B)
    ])
    np.testing.assert_allclose(np.asarray(out), np.asarray(ref), rtol=1e-2, atol=1e-2)

    print("KERNEL_OK")
</pallas_src>

<mosaic_0001>
module attributes {stable_mosaic.version = 11 : i64} {
  func.func @decoder_kernel(%arg0: memref<16x32xf32, #tpu.memory_space<vmem>>, %arg1: memref<16x32xf32, #tpu.memory_space<vmem>>, %arg2: memref<16x32xf32, #tpu.memory_space<vmem>>, %arg3: memref<64x64xf32, #tpu.memory_space<vmem>>, %arg4: memref<64x64xf32, #tpu.memory_space<vmem>>, %arg5: memref<64x16xf32, #tpu.memory_space<vmem>>, %arg6: memref<16x64xf32, #tpu.memory_space<vmem>>, %arg7: memref<64x64xf32, #tpu.memory_space<vmem>>, %arg8: memref<2x32x96xf32, #tpu.memory_space<vmem>>, %arg9: memref<2x1x96xf32, #tpu.memory_space<vmem>>, %arg10: memref<2x32x32xf32, #tpu.memory_space<vmem>>, %arg11: memref<2x1x32xf32, #tpu.memory_space<vmem>>, %arg12: memref<2x32x32xf32, #tpu.memory_space<vmem>>, %arg13: memref<2x1x32xf32, #tpu.memory_space<vmem>>, %arg14: memref<2x32x64xf32, #tpu.memory_space<vmem>>, %arg15: memref<2x1x64xf32, #tpu.memory_space<vmem>>, %arg16: memref<2x32x32xf32, #tpu.memory_space<vmem>>, %arg17: memref<2x1x32xf32, #tpu.memory_space<vmem>>, %arg18: memref<2x32x64xf32, #tpu.memory_space<vmem>>, %arg19: memref<2x1x64xf32, #tpu.memory_space<vmem>>, %arg20: memref<2x64x32xf32, #tpu.memory_space<vmem>>, %arg21: memref<2x1x32xf32, #tpu.memory_space<vmem>>, %arg22: memref<6x1x32xf32, #tpu.memory_space<vmem>>, %arg23: memref<6x1x32xf32, #tpu.memory_space<vmem>>, %arg24: memref<1x32xf32, #tpu.memory_space<vmem>>, %arg25: memref<1x32xf32, #tpu.memory_space<vmem>>, %arg26: memref<16x32xf32, #tpu.memory_space<vmem>>) attributes {dimension_semantics = [], scalar_prefetch = 0 : i64, scratch_operands = 0 : i64, tpu.core_type = #tpu.core_type<tc>} {
    %c0 = arith.constant 0 : index
    %c0_0 = arith.constant 0 : index
    %0 = vector.load %arg0[%c0, %c0_0] : memref<16x32xf32, #tpu.memory_space<vmem>>, vector<16x32xf32>
    %cst = arith.constant 5.65685415 : f32
    %1 = vector.broadcast %cst : f32 to vector<16x32xf32>
    %2 = arith.mulf %0, %1 : vector<16x32xf32>
    %c0_1 = arith.constant 0 : index
    %c0_2 = arith.constant 0 : index
    %3 = vector.load %arg1[%c0_1, %c0_2] : memref<16x32xf32, #tpu.memory_space<vmem>>, vector<16x32xf32>
    %4 = arith.addf %2, %3 : vector<16x32xf32>
    %c0_3 = arith.constant 0 : index
    %c0_4 = arith.constant 0 : index
    %5 = vector.load %arg2[%c0_3, %c0_4] : memref<16x32xf32, #tpu.memory_space<vmem>>, vector<16x32xf32>
    %c0_5 = arith.constant 0 : index
    %c0_6 = arith.constant 0 : index
    %6 = vector.load %arg3[%c0_5, %c0_6] : memref<64x64xf32, #tpu.memory_space<vmem>>, vector<64x64xf32>
    %c0_7 = arith.constant 0 : index
    %c0_8 = arith.constant 0 : index
    %7 = vector.load %arg4[%c0_7, %c0_8] : memref<64x64xf32, #tpu.memory_space<vmem>>, vector<64x64xf32>
    %c0_9 = arith.constant 0 : index
    %c0_10 = arith.constant 0 : index
    %8 = vector.load %arg5[%c0_9, %c0_10] : memref<64x16xf32, #tpu.memory_space<vmem>>, vector<64x16xf32>
    %c0_11 = arith.constant 0 : index
    %c0_12 = arith.constant 0 : index
    %9 = vector.load %arg6[%c0_11, %c0_12] : memref<16x64xf32, #tpu.memory_space<vmem>>, vector<16x64xf32>
    %c0_13 = arith.constant 0 : index
    %c0_14 = arith.constant 0 : index
    %10 = vector.load %arg7[%c0_13, %c0_14] : memref<64x64xf32, #tpu.memory_space<vmem>>, vector<64x64xf32>
    %c0_15 = arith.constant 0 : index
    %c0_16 = arith.constant 0 : index
    %c0_17 = arith.constant 0 : index
    %11 = vector.load %arg22[%c0_15, %c0_16, %c0_17] : memref<6x1x32xf32, #tpu.memory_space<vmem>>, vector<1x1x32xf32>
    %12 = vector.shape_cast %11 : vector<1x1x32xf32> to vector<1x32xf32>
    %c0_18 = arith.constant 0 : index
    %c0_19 = arith.constant 0 : index
    %c0_20 = arith.constant 0 : index
    %13 = vector.load %arg23[%c0_18, %c0_19, %c0_20] : memref<6x1x32xf32, #tpu.memory_space<vmem>>, vector<1x1x32xf32>
    %14 = vector.shape_cast %13 : vector<1x1x32xf32> to vector<1x32xf32>
    %cst_21 = arith.constant dense<0.000000e+00> : vector<16xf32>
    %15 = vector.multi_reduction <add>, %4, %cst_21 [1] : vector<16x32xf32> to vector<16xf32>
    %16 = vector.shape_cast %15 : vector<16xf32> to vector<16x1xf32>
    %cst_22 = arith.constant 3.200000e+01 : f32
    %17 = vector.broadcast %cst_22 : f32 to vector<16x1xf32>
    %18 = arith.divf %16, %17 : vector<16x1xf32>
    %19 = vector.broadcast %18 : vector<16x1xf32> to vector<16x32xf32>
    %20 = arith.subf %4, %19 : vector<16x32xf32>
    %21 = arith.mulf %20, %20 : vector<16x32xf32>
    %cst_23 = arith.constant dense<0.000000e+00> : vector<16xf32>
    %22 = vector.multi_reduction <add>, %21, %cst_23 [1] : vector<16x32xf32> to vector<16xf32>
    %23 = vector.shape_cast %22 : vector<16xf32> to vector<16x1xf32>
    %cst_24 = arith.constant 3.200000e+01 : f32
    %24 = vector.broadcast %cst_24 : f32 to vector<16x1xf32>
    %25 = arith.divf %23, %24 : vector<16x1xf32>
    %26 = vector.broadcast %18 : vector<16x1xf32> to vector<16x32xf32>
    %27 = arith.subf %4, %26 : vector<16x32xf32>
    %cst_25 = arith.constant 9.99999974E-6 : f32
    %28 = vector.broadcast %cst_25 : f32 to vector<16x1xf32>
    %29 = arith.addf %25, %28 : vector<16x1xf32>
    %30 = math.rsqrt %29 : vector<16x1xf32>
    %31 = vector.broadcast %30 : vector<16x1xf32> to vector<16x32xf32>
    %32 = arith.mulf %27, %31 : vector<16x32xf32>
    %33 = vector.broadcast %12 : vector<1x32xf32> to vector<16x32xf32>
    %34 = arith.mulf %32, %33 : vector<16x32xf32>
    %35 = vector.broadcast %14 : vector<1x32xf32> to vector<16x32xf32>
    %36 = arith.addf %34, %35 : vector<16x32xf32>
    %c0_26 = arith.constant 0 : index
    %c0_27 = arith.constant 0 : index
    %c0_28 = arith.constant 0 : index
    %37 = vector.load %arg8[%c0_26, %c0_27, %c0_28] : memref<2x32x96xf32, #tpu.memory_space<vmem>>, vector<1x32x96xf32>
    %38 = vector.shape_cast %37 : vector<1x32x96xf32> to vector<32x96xf32>
    %cst_29 = arith.constant dense<0.000000e+00> : vector<16x96xf32>
    %39 = tpu.matmul %36, %38, %cst_29 {dimension_numbers = #tpu.dot_dimension_numbers<[1], [0], [0], [1], [0, 0, 1, 1], [], []>} : vector<16x32xf32>, vector<32x96xf32>, vector<16x96xf32> -> vector<16x96xf32>
    %c0_30 = arith.constant 0 : index
    %c0_31 = arith.constant 0 : index
    %c0_32 = arith.constant 0 : index
    %40 = vector.load %arg9[%c0_30, %c0_31, %c0_32] : memref<2x1x96xf32, #tpu.memory_space<vmem>>, vector<1x1x96xf32>
    %41 = vector.shape_cast %40 : vector<1x1x96xf32> to vector<1x96xf32>
    %42 = vector.broadcast %41 : vector<1x96xf32> to vector<16x96xf32>
    %43 = arith.addf %39, %42 : vector<16x96xf32>
    %cst_33 = arith.constant dense<0.000000e+00> : vector<64x96xf32>
    %44 = tpu.matmul %8, %43, %cst_33 {dimension_numbers = #tpu.dot_dimension_numbers<[1], [0], [0], [1], [0, 0, 1, 1], [], []>} : vector<64x16xf32>, vector<16x96xf32>, vector<64x96xf32> -> vector<64x96xf32>
    %45 = vector.extract_strided_slice %44 {offsets = [0, 0], sizes = [64, 32], strides = [1, 1]} : vector<64x96xf32> to vector<64x32xf32>
    %46 = vector.extract_strided_slice %44 {offsets = [0, 32], sizes = [64, 64], strides = [1, 1]} : vector<64x96xf32> to vector<64x64xf32>
    %47 = arith.mulf %46, %10 : vector<64x64xf32>
    %48 = vector.extract_strided_slice %47 {offsets = [0, 0], sizes = [64, 32], strides = [1, 1]} : vector<64x64xf32> to vector<64x32xf32>
    %49 = vector.extract_strided_slice %47 {offsets = [0, 32], sizes = [64, 32], strides = [1, 1]} : vector<64x64xf32> to vector<64x32xf32>
    %cst_34 = arith.constant dense<0.000000e+00> : vector<64x64xf32>
    %50 = tpu.matmul %45, %48, %cst_34 {dimension_numbers = #tpu.dot_dimension_numbers<[1], [1], [0], [0], [0, 0, 1, 0], [], []>} : vector<64x32xf32>, vector<64x32xf32>, vector<64x64xf32> -> vector<64x64xf32>
    %51 = arith.addf %50, %6 : vector<64x64xf32>
    %cst_35 = arith.constant dense<0xFF800000> : vector<64xf32>
    %52 = vector.multi_reduction <maximumf>, %51, %cst_35 [1] : vector<64x64xf32> to vector<64xf32>
    %53 = vector.shape_cast %52 : vector<64xf32> to vector<64x1xf32>
    %54 = vector.broadcast %53 : vector<64x1xf32> to vector<64x64xf32>
    %55 = arith.subf %51, %54 : vector<64x64xf32>
    %56 = math.exp %55 : vector<64x64xf32>
    %cst_36 = arith.constant dense<0.000000e+00> : vector<64xf32>
    %57 = vector.multi_reduction <add>, %56, %cst_36 [1] : vector<64x64xf32> to vector<64xf32>
    %58 = vector.shape_cast %57 : vector<64xf32> to vector<64x1xf32>
    %59 = tpu.reciprocal %58 {approx = true} : vector<64x1xf32> -> vector<64x1xf32>
    %60 = vector.broadcast %59 : vector<64x1xf32> to vector<64x64xf32>
    %61 = arith.mulf %56, %60 : vector<64x64xf32>
    %cst_37 = arith.constant dense<0.000000e+00> : vector<16x64xf32>
    %62 = tpu.matmul %9, %61, %cst_37 {dimension_numbers = #tpu.dot_dimension_numbers<[1], [0], [0], [1], [0, 0, 1, 1], [], []>} : vector<16x64xf32>, vector<64x64xf32>, vector<16x64xf32> -> vector<16x64xf32>
    %cst_38 = arith.constant dense<0.000000e+00> : vector<16x32xf32>
    %63 = tpu.matmul %62, %49, %cst_38 {dimension_numbers = #tpu.dot_dimension_numbers<[1], [0], [0], [1], [0, 0, 1, 1], [], []>} : vector<16x64xf32>, vector<64x32xf32>, vector<16x32xf32> -> vector<16x32xf32>
    %c0_39 = arith.constant 0 : index
    %c0_40 = arith.constant 0 : index
    %c0_41 = arith.constant 0 : index
    %64 = vector.load %arg10[%c0_39, %c0_40, %c0_41] : memref<2x32x32xf32, #tpu.memory_space<vmem>>, vector<1x32x32xf32>
    %65 = vector.shape_cast %64 : vector<1x32x32xf32> to vector<32x32xf32>
    %cst_42 = arith.constant dense<0.000000e+00> : vector<16x32xf32>
    %66 = tpu.matmul %63, %65, %cst_42 {dimension_numbers = #tpu.dot_dimension_numbers<[1], [0], [0], [1], [0, 0, 1, 1], [], []>} : vector<16x32xf32>, vector<32x32xf32>, vector<16x32xf32> -> vector<16x32xf32>
    %67 = arith.addf %4, %66 : vector<16x32xf32>
    %c0_43 = arith.constant 0 : index
    %c0_44 = arith.constant 0 : index
    %c0_45 = arith.constant 0 : index
    %68 = vector.load %arg11[%c0_43, %c0_44, %c0_45] : memref<2x1x32xf32, #tpu.memory_space<vmem>>, vector<1x1x32xf32>
    %69 = vector.shape_cast %68 : vector<1x1x32xf32> to vector<1x32xf32>
    %70 = vector.broadcast %69 : vector<1x32xf32> to vector<16x32xf32>
    %71 = arith.addf %67, %70 : vector<16x32xf32>
    %c1 = arith.constant 1 : index
    %c0_46 = arith.constant 0 : index
    %c0_47 = arith.constant 0 : index
    %72 = vector.load %arg22[%c1, %c0_46, %c0_47] : memref<6x1x32xf32, #tpu.memory_space<vmem>>, vector<1x1x32xf32>
    %73 = vector.shape_cast %72 : vector<1x1x32xf32> to vector<1x32xf32>
    %c1_48 = arith.constant 1 : index
    %c0_49 = arith.constant 0 : index
    %c0_50 = arith.constant 0 : index
    %74 = vector.load %arg23[%c1_48, %c0_49, %c0_50] : memref<6x1x32xf32, #tpu.memory_space<vmem>>, vector<1x1x32xf32>
    %75 = vector.shape_cast %74 : vector<1x1x32xf32> to vector<1x32xf32>
    %cst_51 = arith.constant dense<0.000000e+00> : vector<16xf32>
    %76 = vector.multi_reduction <add>, %71, %cst_51 [1] : vector<16x32xf32> to vector<16xf32>
    %77 = vector.shape_cast %76 : vector<16xf32> to vector<16x1xf32>
    %cst_52 = arith.constant 3.200000e+01 : f32
    %78 = vector.broadcast %cst_52 : f32 to vector<16x1xf32>
    %79 = arith.divf %77, %78 : vector<16x1xf32>
    %80 = vector.broadcast %79 : vector<16x1xf32> to vector<16x32xf32>
    %81 = arith.subf %71, %80 : vector<16x32xf32>
    %82 = arith.mulf %81, %81 : vector<16x32xf32>
    %cst_53 = arith.constant dense<0.000000e+00> : vector<16xf32>
    %83 = vector.multi_reduction <add>, %82, %cst_53 [1] : vector<16x32xf32> to vector<16xf32>
    %84 = vector.shape_cast %83 : vector<16xf32> to vector<16x1xf32>
    %cst_54 = arith.constant 3.200000e+01 : f32
    %85 = vector.broadcast %cst_54 : f32 to vector<16x1xf32>
    %86 = arith.divf %84, %85 : vector<16x1xf32>
    %87 = vector.broadcast %79 : vector<16x1xf32> to vector<16x32xf32>
    %88 = arith.subf %71, %87 : vector<16x32xf32>
    %cst_55 = arith.constant 9.99999974E-6 : f32
    %89 = vector.broadcast %cst_55 : f32 to vector<16x1xf32>
    %90 = arith.addf %86, %89 : vector<16x1xf32>
    %91 = math.rsqrt %90 : vector<16x1xf32>
    %92 = vector.broadcast %91 : vector<16x1xf32> to vector<16x32xf32>
    %93 = arith.mulf %88, %92 : vector<16x32xf32>
    %94 = vector.broadcast %73 : vector<1x32xf32> to vector<16x32xf32>
    %95 = arith.mulf %93, %94 : vector<16x32xf32>
    %96 = vector.broadcast %75 : vector<1x32xf32> to vector<16x32xf32>
    %97 = arith.addf %95, %96 : vector<16x32xf32>
    %c0_56 = arith.constant 0 : index
    %c0_57 = arith.constant 0 : index
    %c0_58 = arith.constant 0 : index
    %98 = vector.load %arg12[%c0_56, %c0_57, %c0_58] : memref<2x32x32xf32, #tpu.memory_space<vmem>>, vector<1x32x32xf32>
    %99 = vector.shape_cast %98 : vector<1x32x32xf32> to vector<32x32xf32>
    %cst_59 = arith.constant dense<0.000000e+00> : vector<16x32xf32>
    %100 = tpu.matmul %97, %99, %cst_59 {dimension_numbers = #tpu.dot_dimension_numbers<[1], [0], [0], [1], [0, 0, 1, 1], [], []>} : vector<16x32xf32>, vector<32x32xf32>, vector<16x32xf32> -> vector<16x32xf32>
    %c0_60 = arith.constant 0 : index
    %c0_61 = arith.constant 0 : index
    %c0_62 = arith.constant 0 : index
    %101 = vector.load %arg13[%c0_60, %c0_61, %c0_62] : memref<2x1x32xf32, #tpu.memory_space<vmem>>, vector<1x1x32xf32>
    %102 = vector.shape_cast %101 : vector<1x1x32xf32> to vector<1x32xf32>
    %103 = vector.broadcast %102 : vector<1x32xf32> to vector<16x32xf32>
    %104 = arith.addf %100, %103 : vector<16x32xf32>
    %c0_63 = arith.constant 0 : index
    %c0_64 = arith.constant 0 : index
    %c0_65 = arith.constant 0 : index
    %105 = vector.load %arg14[%c0_63, %c0_64, %c0_65] : memref<2x32x64xf32, #tpu.memory_space<vmem>>, vector<1x32x64xf32>
    %106 = vector.shape_cast %105 : vector<1x32x64xf32> to vector<32x64xf32>
    %cst_66 = arith.constant dense<0.000000e+00> : vector<16x64xf32>
    %107 = tpu.matmul %5, %106, %cst_66 {dimension_numbers = #tpu.dot_dimension_numbers<[1], [0], [0], [1], [0, 0, 1, 1], [], []>} : vector<16x32xf32>, vector<32x64xf32>, vector<16x64xf32> -> vector<16x64xf32>
    %c0_67 = arith.constant 0 : index
    %c0_68 = arith.constant 0 : index
    %c0_69 = arith.constant 0 : index
    %108 = vector.load %arg15[%c0_67, %c0_68, %c0_69] : memref<2x1x64xf32, #tpu.memory_space<vmem>>, vector<1x1x64xf32>
    %109 = vector.shape_cast %108 : vector<1x1x64xf32> to vector<1x64xf32>
    %110 = vector.broadcast %109 : vector<1x64xf32> to vector<16x64xf32>
    %111 = arith.addf %107, %110 : vector<16x64xf32>
    %cst_70 = arith.constant dense<0.000000e+00> : vector<64x32xf32>
    %112 = tpu.matmul %8, %104, %cst_70 {dimension_numbers = #tpu.dot_dimension_numbers<[1], [0], [0], [1], [0, 0, 1, 1], [], []>} : vector<64x16xf32>, vector<16x32xf32>, vector<64x32xf32> -> vector<64x32xf32>
    %cst_71 = arith.constant dense<0.000000e+00> : vector<64x64xf32>
    %113 = tpu.matmul %8, %111, %cst_71 {dimension_numbers = #tpu.dot_dimension_numbers<[1], [0], [0], [1], [0, 0, 1, 1], [], []>} : vector<64x16xf32>, vector<16x64xf32>, vector<64x64xf32> -> vector<64x64xf32>
    %114 = arith.mulf %113, %10 : vector<64x64xf32>
    %115 = vector.extract_strided_slice %114 {offsets = [0, 0], sizes = [64, 32], strides = [1, 1]} : vector<64x64xf32> to vector<64x32xf32>
    %116 = vector.extract_strided_slice %114 {offsets = [0, 32], sizes = [64, 32], strides = [1, 1]} : vector<64x64xf32> to vector<64x32xf32>
    %cst_72 = arith.constant dense<0.000000e+00> : vector<64x64xf32>
    %117 = tpu.matmul %112, %115, %cst_72 {dimension_numbers = #tpu.dot_dimension_numbers<[1], [1], [0], [0], [0, 0, 1, 0], [], []>} : vector<64x32xf32>, vector<64x32xf32>, vector<64x64xf32> -> vector<64x64xf32>
    %118 = arith.addf %117, %7 : vector<64x64xf32>
    %cst_73 = arith.constant dense<0xFF800000> : vector<64xf32>
    %119 = vector.multi_reduction <maximumf>, %118, %cst_73 [1] : vector<64x64xf32> to vector<64xf32>
    %120 = vector.shape_cast %119 : vector<64xf32> to vector<64x1xf32>
    %121 = vector.broadcast %120 : vector<64x1xf32> to vector<64x64xf32>
    %122 = arith.subf %118, %121 : vector<64x64xf32>
    %123 = math.exp %122 : vector<64x64xf32>
    %cst_74 = arith.constant dense<0.000000e+00> : vector<64xf32>
    %124 = vector.multi_reduction <add>, %123, %cst_74 [1] : vector<64x64xf32> to vector<64xf32>
    %125 = vector.shape_cast %124 : vector<64xf32> to vector<64x1xf32>
    %126 = tpu.reciprocal %125 {approx = true} : vector<64x1xf32> -> vector<64x1xf32>
    %127 = vector.broadcast %126 : vector<64x1xf32> to vector<64x64xf32>
    %128 = arith.mulf %123, %127 : vector<64x64xf32>
    %cst_75 = arith.constant dense<0.000000e+00> : vector<16x64xf32>
    %129 = tpu.matmul %9, %128, %cst_75 {dimension_numbers = #tpu.dot_dimension_numbers<[1], [0], [0], [1], [0, 0, 1, 1], [], []>} : vector<16x64xf32>, vector<64x64xf32>, vector<16x64xf32> -> vector<16x64xf32>
    %cst_76 = arith.constant dense<0.000000e+00> : vector<16x32xf32>
    %130 = tpu.matmul %129, %116, %cst_76 {dimension_numbers = #tpu.dot_dimension_numbers<[1], [0], [0], [1], [0, 0, 1, 1], [], []>} : vector<16x64xf32>, vector<64x32xf32>, vector<16x32xf32> -> vector<16x32xf32>
    %c0_77 = arith.constant 0 : index
    %c0_78 = arith.constant 0 : index
    %c0_79 = arith.constant 0 : index
    %131 = vector.load %arg16[%c0_77, %c0_78, %c0_79] : memref<2x32x32xf32, #tpu.memory_space<vmem>>, vector<1x32x32xf32>
    %132 = vector.shape_cast %131 : vector<1x32x32xf32> to vector<32x32xf32>
    %cst_80 = arith.constant dense<0.000000e+00> : vector<16x32xf32>
    %133 = tpu.matmul %130, %132, %cst_80 {dimension_numbers = #tpu.dot_dimension_numbers<[1], [0], [0], [1], [0, 0, 1, 1], [], []>} : vector<16x32xf32>, vector<32x32xf32>, vector<16x32xf32> -> vector<16x32xf32>
    %134 = arith.addf %71, %133 : vector<16x32xf32>
    %c0_81 = arith.constant 0 : index
    %c0_82 = arith.constant 0 : index
    %c0_83 = arith.constant 0 : index
    %135 = vector.load %arg17[%c0_81, %c0_82, %c0_83] : memref<2x1x32xf32, #tpu.memory_space<vmem>>, vector<1x1x32xf32>
    %136 = vector.shape_cast %135 : vector<1x1x32xf32> to vector<1x32xf32>
    %137 = vector.broadcast %136 : vector<1x32xf32> to vector<16x32xf32>
    %138 = arith.addf %134, %137 : vector<16x32xf32>
    %c2 = arith.constant 2 : index
    %c0_84 = arith.constant 0 : index
    %c0_85 = arith.constant 0 : index
    %139 = vector.load %arg22[%c2, %c0_84, %c0_85] : memref<6x1x32xf32, #tpu.memory_space<vmem>>, vector<1x1x32xf32>
    %140 = vector.shape_cast %139 : vector<1x1x32xf32> to vector<1x32xf32>
    %c2_86 = arith.constant 2 : index
    %c0_87 = arith.constant 0 : index
    %c0_88 = arith.constant 0 : index
    %141 = vector.load %arg23[%c2_86, %c0_87, %c0_88] : memref<6x1x32xf32, #tpu.memory_space<vmem>>, vector<1x1x32xf32>
    %142 = vector.shape_cast %141 : vector<1x1x32xf32> to vector<1x32xf32>
    %cst_89 = arith.constant dense<0.000000e+00> : vector<16xf32>
    %143 = vector.multi_reduction <add>, %138, %cst_89 [1] : vector<16x32xf32> to vector<16xf32>
    %144 = vector.shape_cast %143 : vector<16xf32> to vector<16x1xf32>
    %cst_90 = arith.constant 3.200000e+01 : f32
    %145 = vector.broadcast %cst_90 : f32 to vector<16x1xf32>
    %146 = arith.divf %144, %145 : vector<16x1xf32>
    %147 = vector.broadcast %146 : vector<16x1xf32> to vector<16x32xf32>
    %148 = arith.subf %138, %147 : vector<16x32xf32>
    %149 = arith.mulf %148, %148 : vector<16x32xf32>
    %cst_91 = arith.constant dense<0.000000e+00> : vector<16xf32>
    %150 = vector.multi_reduction <add>, %149, %cst_91 [1] : vector<16x32xf32> to vector<16xf32>
    %151 = vector.shape_cast %150 : vector<16xf32> to vector<16x1xf32>
    %cst_92 = arith.constant 3.200000e+01 : f32
    %152 = vector.broadcast %cst_92 : f32 to vector<16x1xf32>
    %153 = arith.divf %151, %152 : vector<16x1xf32>
    %154 = vector.broadcast %146 : vector<16x1xf32> to vector<16x32xf32>
    %155 = arith.subf %138, %154 : vector<16x32xf32>
    %cst_93 = arith.constant 9.99999974E-6 : f32
    %156 = vector.broadcast %cst_93 : f32 to vector<16x1xf32>
    %157 = arith.addf %153, %156 : vector<16x1xf32>
    %158 = math.rsqrt %157 : vector<16x1xf32>
    %159 = vector.broadcast %158 : vector<16x1xf32> to vector<16x32xf32>
    %160 = arith.mulf %155, %159 : vector<16x32xf32>
    %161 = vector.broadcast %140 : vector<1x32xf32> to vector<16x32xf32>
    %162 = arith.mulf %160, %161 : vector<16x32xf32>
    %163 = vector.broadcast %142 : vector<1x32xf32> to vector<16x32xf32>
    %164 = arith.addf %162, %163 : vector<16x32xf32>
    %c0_94 = arith.constant 0 : index
    %c0_95 = arith.constant 0 : index
    %c0_96 = arith.constant 0 : index
    %165 = vector.load %arg18[%c0_94, %c0_95, %c0_96] : memref<2x32x64xf32, #tpu.memory_space<vmem>>, vector<1x32x64xf32>
    %166 = vector.shape_cast %165 : vector<1x32x64xf32> to vector<32x64xf32>
    %cst_97 = arith.constant dense<0.000000e+00> : vector<16x64xf32>
    %167 = tpu.matmul %164, %166, %cst_97 {dimension_numbers = #tpu.dot_dimension_numbers<[1], [0], [0], [1], [0, 0, 1, 1], [], []>} : vector<16x32xf32>, vector<32x64xf32>, vector<16x64xf32> -> vector<16x64xf32>
    %c0_98 = arith.constant 0 : index
    %c0_99 = arith.constant 0 : index
    %c0_100 = arith.constant 0 : index
    %168 = vector.load %arg19[%c0_98, %c0_99, %c0_100] : memref<2x1x64xf32, #tpu.memory_space<vmem>>, vector<1x1x64xf32>
    %169 = vector.shape_cast %168 : vector<1x1x64xf32> to vector<1x64xf32>
    %170 = vector.broadcast %169 : vector<1x64xf32> to vector<16x64xf32>
    %171 = arith.addf %167, %170 : vector<16x64xf32>
    %cst_101 = arith.constant 0.000000e+00 : f32
    %172 = vector.broadcast %cst_101 : f32 to vector<16x64xf32>
    %173 = arith.maximumf %171, %172 : vector<16x64xf32>
    %c0_102 = arith.constant 0 : index
    %c0_103 = arith.constant 0 : index
    %c0_104 = arith.constant 0 : index
    %174 = vector.load %arg20[%c0_102, %c0_103, %c0_104] : memref<2x64x32xf32, #tpu.memory_space<vmem>>, vector<1x64x32xf32>
    %175 = vector.shape_cast %174 : vector<1x64x32xf32> to vector<64x32xf32>
    %cst_105 = arith.constant dense<0.000000e+00> : vector<16x32xf32>
    %176 = tpu.matmul %173, %175, %cst_105 {dimension_numbers = #tpu.dot_dimension_numbers<[1], [0], [0], [1], [0, 0, 1, 1], [], []>} : vector<16x64xf32>, vector<64x32xf32>, vector<16x32xf32> -> vector<16x32xf32>
    %177 = arith.addf %138, %176 : vector<16x32xf32>
    %c0_106 = arith.constant 0 : index
    %c0_107 = arith.constant 0 : index
    %c0_108 = arith.constant 0 : index
    %178 = vector.load %arg21[%c0_106, %c0_107, %c0_108] : memref<2x1x32xf32, #tpu.memory_space<vmem>>, vector<1x1x32xf32>
    %179 = vector.shape_cast %178 : vector<1x1x32xf32> to vector<1x32xf32>
    %180 = vector.broadcast %179 : vector<1x32xf32> to vector<16x32xf32>
    %181 = arith.addf %177, %180 : vector<16x32xf32>
    %c3 = arith.constant 3 : index
    %c0_109 = arith.constant 0 : index
    %c0_110 = arith.constant 0 : index
    %182 = vector.load %arg22[%c3, %c0_109, %c0_110] : memref<6x1x32xf32, #tpu.memory_space<vmem>>, vector<1x1x32xf32>
    %183 = vector.shape_cast %182 : vector<1x1x32xf32> to vector<1x32xf32>
    %c3_111 = arith.constant 3 : index
    %c0_112 = arith.constant 0 : index
    %c0_113 = arith.constant 0 : index
    %184 = vector.load %arg23[%c3_111, %c0_112, %c0_113] : memref<6x1x32xf32, #tpu.memory_space<vmem>>, vector<1x1x32xf32>
    %185 = vector.shape_cast %184 : vector<1x1x32xf32> to vector<1x32xf32>
    %cst_114 = arith.constant dense<0.000000e+00> : vector<16xf32>
    %186 = vector.multi_reduction <add>, %181, %cst_114 [1] : vector<16x32xf32> to vector<16xf32>
    %187 = vector.shape_cast %186 : vector<16xf32> to vector<16x1xf32>
    %cst_115 = arith.constant 3.200000e+01 : f32
    %188 = vector.broadcast %cst_115 : f32 to vector<16x1xf32>
    %189 = arith.divf %187, %188 : vector<16x1xf32>
    %190 = vector.broadcast %189 : vector<16x1xf32> to vector<16x32xf32>
    %191 = arith.subf %181, %190 : vector<16x32xf32>
    %192 = arith.mulf %191, %191 : vector<16x32xf32>
    %cst_116 = arith.constant dense<0.000000e+00> : vector<16xf32>
    %193 = vector.multi_reduction <add>, %192, %cst_116 [1] : vector<16x32xf32> to vector<16xf32>
    %194 = vector.shape_cast %193 : vector<16xf32> to vector<16x1xf32>
    %cst_117 = arith.constant 3.200000e+01 : f32
    %195 = vector.broadcast %cst_117 : f32 to vector<16x1xf32>
    %196 = arith.divf %194, %195 : vector<16x1xf32>
    %197 = vector.broadcast %189 : vector<16x1xf32> to vector<16x32xf32>
    %198 = arith.subf %181, %197 : vector<16x32xf32>
    %cst_118 = arith.constant 9.99999974E-6 : f32
    %199 = vector.broadcast %cst_118 : f32 to vector<16x1xf32>
    %200 = arith.addf %196, %199 : vector<16x1xf32>
    %201 = math.rsqrt %200 : vector<16x1xf32>
    %202 = vector.broadcast %201 : vector<16x1xf32> to vector<16x32xf32>
    %203 = arith.mulf %198, %202 : vector<16x32xf32>
    %204 = vector.broadcast %183 : vector<1x32xf32> to vector<16x32xf32>
    %205 = arith.mulf %203, %204 : vector<16x32xf32>
    %206 = vector.broadcast %185 : vector<1x32xf32> to vector<16x32xf32>
    %207 = arith.addf %205, %206 : vector<16x32xf32>
    %c1_119 = arith.constant 1 : index
    %c0_120 = arith.constant 0 : index
    %c0_121 = arith.constant 0 : index
    %208 = vector.load %arg8[%c1_119, %c0_120, %c0_121] : memref<2x32x96xf32, #tpu.memory_space<vmem>>, vector<1x32x96xf32>
    %209 = vector.shape_cast %208 : vector<1x32x96xf32> to vector<32x96xf32>
    %cst_122 = arith.constant dense<0.000000e+00> : vector<16x96xf32>
    %210 = tpu.matmul %207, %209, %cst_122 {dimension_numbers = #tpu.dot_dimension_numbers<[1], [0], [0], [1], [0, 0, 1, 1], [], []>} : vector<16x32xf32>, vector<32x96xf32>, vector<16x96xf32> -> vector<16x96xf32>
    %c1_123 = arith.constant 1 : index
    %c0_124 = arith.constant 0 : index
    %c0_125 = arith.constant 0 : index
    %211 = vector.load %arg9[%c1_123, %c0_124, %c0_125] : memref<2x1x96xf32, #tpu.memory_space<vmem>>, vector<1x1x96xf32>
    %212 = vector.shape_cast %211 : vector<1x1x96xf32> to vector<1x96xf32>
    %213 = vector.broadcast %212 : vector<1x96xf32> to vector<16x96xf32>
    %214 = arith.addf %210, %213 : vector<16x96xf32>
    %cst_126 = arith.constant dense<0.000000e+00> : vector<64x96xf32>
    %215 = tpu.matmul %8, %214, %cst_126 {dimension_numbers = #tpu.dot_dimension_numbers<[1], [0], [0], [1], [0, 0, 1, 1], [], []>} : vector<64x16xf32>, vector<16x96xf32>, vector<64x96xf32> -> vector<64x96xf32>
    %216 = vector.extract_strided_slice %215 {offsets = [0, 0], sizes = [64, 32], strides = [1, 1]} : vector<64x96xf32> to vector<64x32xf32>
    %217 = vector.extract_strided_slice %215 {offsets = [0, 32], sizes = [64, 64], strides = [1, 1]} : vector<64x96xf32> to vector<64x64xf32>
    %218 = arith.mulf %217, %10 : vector<64x64xf32>
    %219 = vector.extract_strided_slice %218 {offsets = [0, 0], sizes = [64, 32], strides = [1, 1]} : vector<64x64xf32> to vector<64x32xf32>
    %220 = vector.extract_strided_slice %218 {offsets = [0, 32], sizes = [64, 32], strides = [1, 1]} : vector<64x64xf32> to vector<64x32xf32>
    %cst_127 = arith.constant dense<0.000000e+00> : vector<64x64xf32>
    %221 = tpu.matmul %216, %219, %cst_127 {dimension_numbers = #tpu.dot_dimension_numbers<[1], [1], [0], [0], [0, 0, 1, 0], [], []>} : vector<64x32xf32>, vector<64x32xf32>, vector<64x64xf32> -> vector<64x64xf32>
    %222 = arith.addf %221, %6 : vector<64x64xf32>
    %cst_128 = arith.constant dense<0xFF800000> : vector<64xf32>
    %223 = vector.multi_reduction <maximumf>, %222, %cst_128 [1] : vector<64x64xf32> to vector<64xf32>
    %224 = vector.shape_cast %223 : vector<64xf32> to vector<64x1xf32>
    %225 = vector.broadcast %224 : vector<64x1xf32> to vector<64x64xf32>
    %226 = arith.subf %222, %225 : vector<64x64xf32>
    %227 = math.exp %226 : vector<64x64xf32>
    %cst_129 = arith.constant dense<0.000000e+00> : vector<64xf32>
    %228 = vector.multi_reduction <add>, %227, %cst_129 [1] : vector<64x64xf32> to vector<64xf32>
    %229 = vector.shape_cast %228 : vector<64xf32> to vector<64x1xf32>
    %230 = tpu.reciprocal %229 {approx = true} : vector<64x1xf32> -> vector<64x1xf32>
    %231 = vector.broadcast %230 : vector<64x1xf32> to vector<64x64xf32>
    %232 = arith.mulf %227, %231 : vector<64x64xf32>
    %cst_130 = arith.constant dense<0.000000e+00> : vector<16x64xf32>
    %233 = tpu.matmul %9, %232, %cst_130 {dimension_numbers = #tpu.dot_dimension_numbers<[1], [0], [0], [1], [0, 0, 1, 1], [], []>} : vector<16x64xf32>, vector<64x64xf32>, vector<16x64xf32> -> vector<16x64xf32>
    %cst_131 = arith.constant dense<0.000000e+00> : vector<16x32xf32>
    %234 = tpu.matmul %233, %220, %cst_131 {dimension_numbers = #tpu.dot_dimension_numbers<[1], [0], [0], [1], [0, 0, 1, 1], [], []>} : vector<16x64xf32>, vector<64x32xf32>, vector<16x32xf32> -> vector<16x32xf32>
    %c1_132 = arith.constant 1 : index
    %c0_133 = arith.constant 0 : index
    %c0_134 = arith.constant 0 : index
    %235 = vector.load %arg10[%c1_132, %c0_133, %c0_134] : memref<2x32x32xf32, #tpu.memory_space<vmem>>, vector<1x32x32xf32>
    %236 = vector.shape_cast %235 : vector<1x32x32xf32> to vector<32x32xf32>
    %cst_135 = arith.constant dense<0.000000e+00> : vector<16x32xf32>
    %237 = tpu.matmul %234, %236, %cst_135 {dimension_numbers = #tpu.dot_dimension_numbers<[1], [0], [0], [1], [0, 0, 1, 1], [], []>} : vector<16x32xf32>, vector<32x32xf32>, vector<16x32xf32> -> vector<16x32xf32>
    %238 = arith.addf %181, %237 : vector<16x32xf32>
    %c1_136 = arith.constant 1 : index
    %c0_137 = arith.constant 0 : index
    %c0_138 = arith.constant 0 : index
    %239 = vector.load %arg11[%c1_136, %c0_137, %c0_138] : memref<2x1x32xf32, #tpu.memory_space<vmem>>, vector<1x1x32xf32>
    %240 = vector.shape_cast %239 : vector<1x1x32xf32> to vector<1x32xf32>
    %241 = vector.broadcast %240 : vector<1x32xf32> to vector<16x32xf32>
    %242 = arith.addf %238, %241 : vector<16x32xf32>
    %c4 = arith.constant 4 : index
    %c0_139 = arith.constant 0 : index
    %c0_140 = arith.constant 0 : index
    %243 = vector.load %arg22[%c4, %c0_139, %c0_140] : memref<6x1x32xf32, #tpu.memory_space<vmem>>, vector<1x1x32xf32>
    %244 = vector.shape_cast %243 : vector<1x1x32xf32> to vector<1x32xf32>
    %c4_141 = arith.constant 4 : index
    %c0_142 = arith.constant 0 : index
    %c0_143 = arith.constant 0 : index
    %245 = vector.load %arg23[%c4_141, %c0_142, %c0_143] : memref<6x1x32xf32, #tpu.memory_space<vmem>>, vector<1x1x32xf32>
    %246 = vector.shape_cast %245 : vector<1x1x32xf32> to vector<1x32xf32>
    %cst_144 = arith.constant dense<0.000000e+00> : vector<16xf32>
    %247 = vector.multi_reduction <add>, %242, %cst_144 [1] : vector<16x32xf32> to vector<16xf32>
    %248 = vector.shape_cast %247 : vector<16xf32> to vector<16x1xf32>
    %cst_145 = arith.constant 3.200000e+01 : f32
    %249 = vector.broadcast %cst_145 : f32 to vector<16x1xf32>
    %250 = arith.divf %248, %249 : vector<16x1xf32>
    %251 = vector.broadcast %250 : vector<16x1xf32> to vector<16x32xf32>
    %252 = arith.subf %242, %251 : vector<16x32xf32>
    %253 = arith.mulf %252, %252 : vector<16x32xf32>
    %cst_146 = arith.constant dense<0.000000e+00> : vector<16xf32>
    %254 = vector.multi_reduction <add>, %253, %cst_146 [1] : vector<16x32xf32> to vector<16xf32>
    %255 = vector.shape_cast %254 : vector<16xf32> to vector<16x1xf32>
    %cst_147 = arith.constant 3.200000e+01 : f32
    %256 = vector.broadcast %cst_147 : f32 to vector<16x1xf32>
    %257 = arith.divf %255, %256 : vector<16x1xf32>
    %258 = vector.broadcast %250 : vector<16x1xf32> to vector<16x32xf32>
    %259 = arith.subf %242, %258 : vector<16x32xf32>
    %cst_148 = arith.constant 9.99999974E-6 : f32
    %260 = vector.broadcast %cst_148 : f32 to vector<16x1xf32>
    %261 = arith.addf %257, %260 : vector<16x1xf32>
    %262 = math.rsqrt %261 : vector<16x1xf32>
    %263 = vector.broadcast %262 : vector<16x1xf32> to vector<16x32xf32>
    %264 = arith.mulf %259, %263 : vector<16x32xf32>
    %265 = vector.broadcast %244 : vector<1x32xf32> to vector<16x32xf32>
    %266 = arith.mulf %264, %265 : vector<16x32xf32>
    %267 = vector.broadcast %246 : vector<1x32xf32> to vector<16x32xf32>
    %268 = arith.addf %266, %267 : vector<16x32xf32>
    %c1_149 = arith.constant 1 : index
    %c0_150 = arith.constant 0 : index
    %c0_151 = arith.constant 0 : index
    %269 = vector.load %arg12[%c1_149, %c0_150, %c0_151] : memref<2x32x32xf32, #tpu.memory_space<vmem>>, vector<1x32x32xf32>
    %270 = vector.shape_cast %269 : vector<1x32x32xf32> to vector<32x32xf32>
    %cst_152 = arith.constant dense<0.000000e+00> : vector<16x32xf32>
    %271 = tpu.matmul %268, %270, %cst_152 {dimension_numbers = #tpu.dot_dimension_numbers<[1], [0], [0], [1], [0, 0, 1, 1], [], []>} : vector<16x32xf32>, vector<32x32xf32>, vector<16x32xf32> -> vector<16x32xf32>
    %c1_153 = arith.constant 1 : index
    %c0_154 = arith.constant 0 : index
    %c0_155 = arith.constant 0 : index
    %272 = vector.load %arg13[%c1_153, %c0_154, %c0_155] : memref<2x1x32xf32, #tpu.memory_space<vmem>>, vector<1x1x32xf32>
    %273 = vector.shape_cast %272 : vector<1x1x32xf32> to vector<1x32xf32>
    %274 = vector.broadcast %273 : vector<1x32xf32> to vector<16x32xf32>
    %275 = arith.addf %271, %274 : vector<16x32xf32>
    %c1_156 = arith.constant 1 : index
    %c0_157 = arith.constant 0 : index
    %c0_158 = arith.constant 0 : index
    %276 = vector.load %arg14[%c1_156, %c0_157, %c0_158] : memref<2x32x64xf32, #tpu.memory_space<vmem>>, vector<1x32x64xf32>
    %277 = vector.shape_cast %276 : vector<1x32x64xf32> to vector<32x64xf32>
    %cst_159 = arith.constant dense<0.000000e+00> : vector<16x64xf32>
    %278 = tpu.matmul %5, %277, %cst_159 {dimension_numbers = #tpu.dot_dimension_numbers<[1], [0], [0], [1], [0, 0, 1, 1], [], []>} : vector<16x32xf32>, vector<32x64xf32>, vector<16x64xf32> -> vector<16x64xf32>
    %c1_160 = arith.constant 1 : index
    %c0_161 = arith.constant 0 : index
    %c0_162 = arith.constant 0 : index
    %279 = vector.load %arg15[%c1_160, %c0_161, %c0_162] : memref<2x1x64xf32, #tpu.memory_space<vmem>>, vector<1x1x64xf32>
    %280 = vector.shape_cast %279 : vector<1x1x64xf32> to vector<1x64xf32>
    %281 = vector.broadcast %280 : vector<1x64xf32> to vector<16x64xf32>
    %282 = arith.addf %278, %281 : vector<16x64xf32>
    %cst_163 = arith.constant dense<0.000000e+00> : vector<64x32xf32>
    %283 = tpu.matmul %8, %275, %cst_163 {dimension_numbers = #tpu.dot_dimension_numbers<[1], [0], [0], [1], [0, 0, 1, 1], [], []>} : vector<64x16xf32>, vector<16x32xf32>, vector<64x32xf32> -> vector<64x32xf32>
    %cst_164 = arith.constant dense<0.000000e+00> : vector<64x64xf32>
    %284 = tpu.matmul %8, %282, %cst_164 {dimension_numbers = #tpu.dot_dimension_numbers<[1], [0], [0], [1], [0, 0, 1, 1], [], []>} : vector<64x16xf32>, vector<16x64xf32>, vector<64x64xf32> -> vector<64x64xf32>
    %285 = arith.mulf %284, %10 : vector<64x64xf32>
    %286 = vector.extract_strided_slice %285 {offsets = [0, 0], sizes = [64, 32], strides = [1, 1]} : vector<64x64xf32> to vector<64x32xf32>
    %287 = vector.extract_strided_slice %285 {offsets = [0, 32], sizes = [64, 32], strides = [1, 1]} : vector<64x64xf32> to vector<64x32xf32>
    %cst_165 = arith.constant dense<0.000000e+00> : vector<64x64xf32>
    %288 = tpu.matmul %283, %286, %cst_165 {dimension_numbers = #tpu.dot_dimension_numbers<[1], [1], [0], [0], [0, 0, 1, 0], [], []>} : vector<64x32xf32>, vector<64x32xf32>, vector<64x64xf32> -> vector<64x64xf32>
    %289 = arith.addf %288, %7 : vector<64x64xf32>
    %cst_166 = arith.constant dense<0xFF800000> : vector<64xf32>
    %290 = vector.multi_reduction <maximumf>, %289, %cst_166 [1] : vector<64x64xf32> to vector<64xf32>
    %291 = vector.shape_cast %290 : vector<64xf32> to vector<64x1xf32>
    %292 = vector.broadcast %291 : vector<64x1xf32> to vector<64x64xf32>
    %293 = arith.subf %289, %292 : vector<64x64xf32>
    %294 = math.exp %293 : vector<64x64xf32>
    %cst_167 = arith.constant dense<0.000000e+00> : vector<64xf32>
    %295 = vector.multi_reduction <add>, %294, %cst_167 [1] : vector<64x64xf32> to vector<64xf32>
    %296 = vector.shape_cast %295 : vector<64xf32> to vector<64x1xf32>
    %297 = tpu.reciprocal %296 {approx = true} : vector<64x1xf32> -> vector<64x1xf32>
    %298 = vector.broadcast %297 : vector<64x1xf32> to vector<64x64xf32>
    %299 = arith.mulf %294, %298 : vector<64x64xf32>
    %cst_168 = arith.constant dense<0.000000e+00> : vector<16x64xf32>
    %300 = tpu.matmul %9, %299, %cst_168 {dimension_numbers = #tpu.dot_dimension_numbers<[1], [0], [0], [1], [0, 0, 1, 1], [], []>} : vector<16x64xf32>, vector<64x64xf32>, vector<16x64xf32> -> vector<16x64xf32>
    %cst_169 = arith.constant dense<0.000000e+00> : vector<16x32xf32>
    %301 = tpu.matmul %300, %287, %cst_169 {dimension_numbers = #tpu.dot_dimension_numbers<[1], [0], [0], [1], [0, 0, 1, 1], [], []>} : vector<16x64xf32>, vector<64x32xf32>, vector<16x32xf32> -> vector<16x32xf32>
    %c1_170 = arith.constant 1 : index
    %c0_171 = arith.constant 0 : index
    %c0_172 = arith.constant 0 : index
    %302 = vector.load %arg16[%c1_170, %c0_171, %c0_172] : memref<2x32x32xf32, #tpu.memory_space<vmem>>, vector<1x32x32xf32>
    %303 = vector.shape_cast %302 : vector<1x32x32xf32> to vector<32x32xf32>
    %cst_173 = arith.constant dense<0.000000e+00> : vector<16x32xf32>
    %304 = tpu.matmul %301, %303, %cst_173 {dimension_numbers = #tpu.dot_dimension_numbers<[1], [0], [0], [1], [0, 0, 1, 1], [], []>} : vector<16x32xf32>, vector<32x32xf32>, vector<16x32xf32> -> vector<16x32xf32>
    %305 = arith.addf %242, %304 : vector<16x32xf32>
    %c1_174 = arith.constant 1 : index
    %c0_175 = arith.constant 0 : index
    %c0_176 = arith.constant 0 : index
    %306 = vector.load %arg17[%c1_174, %c0_175, %c0_176] : memref<2x1x32xf32, #tpu.memory_space<vmem>>, vector<1x1x32xf32>
    %307 = vector.shape_cast %306 : vector<1x1x32xf32> to vector<1x32xf32>
    %308 = vector.broadcast %307 : vector<1x32xf32> to vector<16x32xf32>
    %309 = arith.addf %305, %308 : vector<16x32xf32>
    %c5 = arith.constant 5 : index
    %c0_177 = arith.constant 0 : index
    %c0_178 = arith.constant 0 : index
    %310 = vector.load %arg22[%c5, %c0_177, %c0_178] : memref<6x1x32xf32, #tpu.memory_space<vmem>>, vector<1x1x32xf32>
    %311 = vector.shape_cast %310 : vector<1x1x32xf32> to vector<1x32xf32>
    %c5_179 = arith.constant 5 : index
    %c0_180 = arith.constant 0 : index
    %c0_181 = arith.constant 0 : index
    %312 = vector.load %arg23[%c5_179, %c0_180, %c0_181] : memref<6x1x32xf32, #tpu.memory_space<vmem>>, vector<1x1x32xf32>
    %313 = vector.shape_cast %312 : vector<1x1x32xf32> to vector<1x32xf32>
    %cst_182 = arith.constant dense<0.000000e+00> : vector<16xf32>
    %314 = vector.multi_reduction <add>, %309, %cst_182 [1] : vector<16x32xf32> to vector<16xf32>
    %315 = vector.shape_cast %314 : vector<16xf32> to vector<16x1xf32>
    %cst_183 = arith.constant 3.200000e+01 : f32
    %316 = vector.broadcast %cst_183 : f32 to vector<16x1xf32>
    %317 = arith.divf %315, %316 : vector<16x1xf32>
    %318 = vector.broadcast %317 : vector<16x1xf32> to vector<16x32xf32>
    %319 = arith.subf %309, %318 : vector<16x32xf32>
    %320 = arith.mulf %319, %319 : vector<16x32xf32>
    %cst_184 = arith.constant dense<0.000000e+00> : vector<16xf32>
    %321 = vector.multi_reduction <add>, %320, %cst_184 [1] : vector<16x32xf32> to vector<16xf32>
    %322 = vector.shape_cast %321 : vector<16xf32> to vector<16x1xf32>
    %cst_185 = arith.constant 3.200000e+01 : f32
    %323 = vector.broadcast %cst_185 : f32 to vector<16x1xf32>
    %324 = arith.divf %322, %323 : vector<16x1xf32>
    %325 = vector.broadcast %317 : vector<16x1xf32> to vector<16x32xf32>
    %326 = arith.subf %309, %325 : vector<16x32xf32>
    %cst_186 = arith.constant 9.99999974E-6 : f32
    %327 = vector.broadcast %cst_186 : f32 to vector<16x1xf32>
    %328 = arith.addf %324, %327 : vector<16x1xf32>
    %329 = math.rsqrt %328 : vector<16x1xf32>
    %330 = vector.broadcast %329 : vector<16x1xf32> to vector<16x32xf32>
    %331 = arith.mulf %326, %330 : vector<16x32xf32>
    %332 = vector.broadcast %311 : vector<1x32xf32> to vector<16x32xf32>
    %333 = arith.mulf %331, %332 : vector<16x32xf32>
    %334 = vector.broadcast %313 : vector<1x32xf32> to vector<16x32xf32>
    %335 = arith.addf %333, %334 : vector<16x32xf32>
    %c1_187 = arith.constant 1 : index
    %c0_188 = arith.constant 0 : index
    %c0_189 = arith.constant 0 : index
    %336 = vector.load %arg18[%c1_187, %c0_188, %c0_189] : memref<2x32x64xf32, #tpu.memory_space<vmem>>, vector<1x32x64xf32>
    %337 = vector.shape_cast %336 : vector<1x32x64xf32> to vector<32x64xf32>
    %cst_190 = arith.constant dense<0.000000e+00> : vector<16x64xf32>
    %338 = tpu.matmul %335, %337, %cst_190 {dimension_numbers = #tpu.dot_dimension_numbers<[1], [0], [0], [1], [0, 0, 1, 1], [], []>} : vector<16x32xf32>, vector<32x64xf32>, vector<16x64xf32> -> vector<16x64xf32>
    %c1_191 = arith.constant 1 : index
    %c0_192 = arith.constant 0 : index
    %c0_193 = arith.constant 0 : index
    %339 = vector.load %arg19[%c1_191, %c0_192, %c0_193] : memref<2x1x64xf32, #tpu.memory_space<vmem>>, vector<1x1x64xf32>
    %340 = vector.shape_cast %339 : vector<1x1x64xf32> to vector<1x64xf32>
    %341 = vector.broadcast %340 : vector<1x64xf32> to vector<16x64xf32>
    %342 = arith.addf %338, %341 : vector<16x64xf32>
    %cst_194 = arith.constant 0.000000e+00 : f32
    %343 = vector.broadcast %cst_194 : f32 to vector<16x64xf32>
    %344 = arith.maximumf %342, %343 : vector<16x64xf32>
    %c1_195 = arith.constant 1 : index
    %c0_196 = arith.constant 0 : index
    %c0_197 = arith.constant 0 : index
    %345 = vector.load %arg20[%c1_195, %c0_196, %c0_197] : memref<2x64x32xf32, #tpu.memory_space<vmem>>, vector<1x64x32xf32>
    %346 = vector.shape_cast %345 : vector<1x64x32xf32> to vector<64x32xf32>
    %cst_198 = arith.constant dense<0.000000e+00> : vector<16x32xf32>
    %347 = tpu.matmul %344, %346, %cst_198 {dimension_numbers = #tpu.dot_dimension_numbers<[1], [0], [0], [1], [0, 0, 1, 1], [], []>} : vector<16x64xf32>, vector<64x32xf32>, vector<16x32xf32> -> vector<16x32xf32>
    %348 = arith.addf %309, %347 : vector<16x32xf32>
    %c1_199 = arith.constant 1 : index
    %c0_200 = arith.constant 0 : index
    %c0_201 = arith.constant 0 : index
    %349 = vector.load %arg21[%c1_199, %c0_200, %c0_201] : memref<2x1x32xf32, #tpu.memory_space<vmem>>, vector<1x1x32xf32>
    %350 = vector.shape_cast %349 : vector<1x1x32xf32> to vector<1x32xf32>
    %351 = vector.broadcast %350 : vector<1x32xf32> to vector<16x32xf32>
    %352 = arith.addf %348, %351 : vector<16x32xf32>
    %c0_202 = arith.constant 0 : index
    %c0_203 = arith.constant 0 : index
    %353 = vector.load %arg24[%c0_202, %c0_203] : memref<1x32xf32, #tpu.memory_space<vmem>>, vector<1x32xf32>
    %c0_204 = arith.constant 0 : index
    %c0_205 = arith.constant 0 : index
    %354 = vector.load %arg25[%c0_204, %c0_205] : memref<1x32xf32, #tpu.memory_space<vmem>>, vector<1x32xf32>
    %cst_206 = arith.constant dense<0.000000e+00> : vector<16xf32>
    %355 = vector.multi_reduction <add>, %352, %cst_206 [1] : vector<16x32xf32> to vector<16xf32>
    %356 = vector.shape_cast %355 : vector<16xf32> to vector<16x1xf32>
    %cst_207 = arith.constant 3.200000e+01 : f32
    %357 = vector.broadcast %cst_207 : f32 to vector<16x1xf32>
    %358 = arith.divf %356, %357 : vector<16x1xf32>
    %359 = vector.broadcast %358 : vector<16x1xf32> to vector<16x32xf32>
    %360 = arith.subf %352, %359 : vector<16x32xf32>
    %361 = arith.mulf %360, %360 : vector<16x32xf32>
    %cst_208 = arith.constant dense<0.000000e+00> : vector<16xf32>
    %362 = vector.multi_reduction <add>, %361, %cst_208 [1] : vector<16x32xf32> to vector<16xf32>
    %363 = vector.shape_cast %362 : vector<16xf32> to vector<16x1xf32>
    %cst_209 = arith.constant 3.200000e+01 : f32
    %364 = vector.broadcast %cst_209 : f32 to vector<16x1xf32>
    %365 = arith.divf %363, %364 : vector<16x1xf32>
    %366 = vector.broadcast %358 : vector<16x1xf32> to vector<16x32xf32>
    %367 = arith.subf %352, %366 : vector<16x32xf32>
    %cst_210 = arith.constant 9.99999974E-6 : f32
    %368 = vector.broadcast %cst_210 : f32 to vector<16x1xf32>
    %369 = arith.addf %365, %368 : vector<16x1xf32>
    %370 = math.rsqrt %369 : vector<16x1xf32>
    %371 = vector.broadcast %370 : vector<16x1xf32> to vector<16x32xf32>
    %372 = arith.mulf %367, %371 : vector<16x32xf32>
    %373 = vector.broadcast %353 : vector<1x32xf32> to vector<16x32xf32>
    %374 = arith.mulf %372, %373 : vector<16x32xf32>
    %375 = vector.broadcast %354 : vector<1x32xf32> to vector<16x32xf32>
    %376 = arith.addf %374, %375 : vector<16x32xf32>
    %c0_211 = arith.constant 0 : index
    %c0_212 = arith.constant 0 : index
    %377 = vector.load %arg26[%c0_211, %c0_212] : memref<16x32xf32, #tpu.memory_space<vmem>>, vector<16x32xf32>
    tpu.vector_store %arg26[%c0_211, %c0_212], %376 {strides = array<i32>} : memref<16x32xf32, #tpu.memory_space<vmem>>, vector<16x32xf32>,
    return
  }
}

</mosaic_0001>

<llo_original>
// kernel: run.1
$region0: #{run.1}
  #allocation0 [shape = 'u32[]', space=smem, size = 0x4, offset = 0x4, fixed_abs, tag = 'smem constant byte address 0x4 - core index']
  #allocation1 [shape = 'u32[144,128]{1,0:T(1,128)}', space=vmem, size = 0x12000, scoped, tag = 'internal scratch']
  %s0 = inlined_call_operand.vmem [shape: f32[16,32], index: 0, kind: input, shape index: {}]
  %s1 = inlined_call_operand.hbm [shape: f32[16,32], index: 1, kind: input, shape index: {}]
  %s2 = inlined_call_operand.vmem [shape: f32[16,32], index: 2, kind: input, shape index: {}]
  %s3 = inlined_call_operand.hbm [shape: f32[64,64], index: 3, kind: input, shape index: {}]
  %s4 = inlined_call_operand.hbm [shape: f32[64,64], index: 4, kind: input, shape index: {}]
  %s5 = inlined_call_operand.hbm [shape: f32[64,16], index: 5, kind: input, shape index: {}]
  %s6 = inlined_call_operand.hbm [shape: f32[16,64], index: 6, kind: input, shape index: {}]
  %s7 = inlined_call_operand.hbm [shape: f32[64,64], index: 7, kind: input, shape index: {}]
  %s8 = inlined_call_operand.hbm [shape: f32[2,32,96], index: 8, kind: input, shape index: {}]
  %s9 = inlined_call_operand.hbm [shape: f32[2,1,96], index: 9, kind: input, shape index: {}]
  %s10 = inlined_call_operand.hbm [shape: f32[2,32,32], index: 10, kind: input, shape index: {}]
  %s11 = inlined_call_operand.hbm [shape: f32[2,1,32], index: 11, kind: input, shape index: {}]
  %s12 = inlined_call_operand.hbm [shape: f32[2,32,32], index: 12, kind: input, shape index: {}]
  %s13 = inlined_call_operand.hbm [shape: f32[2,1,32], index: 13, kind: input, shape index: {}]
  %s14 = inlined_call_operand.hbm [shape: f32[2,32,64], index: 14, kind: input, shape index: {}]
  %s15 = inlined_call_operand.vmem [shape: f32[2,1,64], index: 15, kind: input, shape index: {}]
  %s16 = inlined_call_operand.hbm [shape: f32[2,32,32], index: 16, kind: input, shape index: {}]
  %s17 = inlined_call_operand.vmem [shape: f32[2,1,32], index: 17, kind: input, shape index: {}]
  %s18 = inlined_call_operand.vmem [shape: f32[2,32,64], index: 18, kind: input, shape index: {}]
  %s19 = inlined_call_operand.vmem [shape: f32[2,1,64], index: 19, kind: input, shape index: {}]
  %s20 = inlined_call_operand.hbm [shape: f32[2,64,32], index: 20, kind: input, shape index: {}]
  %s21 = inlined_call_operand.vmem [shape: f32[2,1,32], index: 21, kind: input, shape index: {}]
  %s22 = inlined_call_operand.vmem [shape: f32[6,1,32], index: 22, kind: input, shape index: {}]
  %s23 = inlined_call_operand.vmem [shape: f32[6,1,32], index: 23, kind: input, shape index: {}]
  %s24 = inlined_call_operand.vmem [shape: f32[1,32], index: 24, kind: input, shape index: {}]
  %s25 = inlined_call_operand.vmem [shape: f32[1,32], index: 25, kind: input, shape index: {}]
  %s26 = inlined_call_operand.hbm [shape: f32[16,32], index: 26, kind: output, shape index: {}]
  %s27 = sld [smem:[#allocation0]]
  $region174: #{run.1} parent=0
    _
  %s29 = ssub.s32 1, %s27
  %s30 = scalar_select 0, %s29, %s27
  $region1: #{run.1} parent=0
    #allocation2 [shape = 'u8[8192]{0}', space=vmem, size = 0x2000, scoped, tag = 'input window, operand 1, single buffered']
    #allocation3 [shape = 's32[1]{0}', space=sflag, size = 0x4, scoped, tag = 'scoped memory for run.1']
    #allocation4 [shape = 's32[1]{0}', space=sflag, size = 0x4, scoped, tag = 'scoped memory for run.1']
    #allocation5 [shape = 'u8[32768]{0}', space=vmem, size = 0x8000, scoped, tag = 'input window, operand 3, single buffered']
    #allocation6 [shape = 's32[1]{0}', space=sflag, size = 0x4, scoped, tag = 'scoped memory for run.1']
    #allocation7 [shape = 'u8[32768]{0}', space=vmem, size = 0x8000, scoped, tag = 'input window, operand 4, single buffered']
    #allocation8 [shape = 'u8[32768]{0}', space=vmem, size = 0x8000, scoped, tag = 'input window, operand 5, single buffered']
    #allocation9 [shape = 's32[1]{0}', space=sflag, size = 0x4, scoped, tag = 'scoped memory for run.1']
    #allocation10 [shape = 'u8[8192]{0}', space=vmem, size = 0x2000, scoped, tag = 'input window, operand 6, single buffered']
    #allocation11 [shape = 'u8[32768]{0}', space=vmem, size = 0x8000, scoped, tag = 'input window, operand 7, single buffered']
    #allocation12 [shape = 's32[1]{0}', space=sflag, size = 0x4, scoped, tag = 'scoped memory for run.1']
    #allocation13 [shape = 'u8[32768]{0}', space=vmem, size = 0x8000, scoped, tag = 'input window, operand 8, single buffered']
    #allocation14 [shape = 'u8[1024]{0}', space=vmem, size = 0x400, scoped, tag = 'input window, operand 9, single buffered']
    #allocation15 [shape = 's32[1]{0}', space=sflag, size = 0x4, scoped, tag = 'scoped memory for run.1']
    #allocation16 [shape = 'u8[32768]{0}', space=vmem, size = 0x8000, scoped, tag = 'input window, operand 10, single buffered']
    #allocation17 [shape = 'u8[1024]{0}', space=vmem, size = 0x400, scoped, tag = 'input window, operand 11, single buffered']
    #allocation18 [shape = 's32[1]{0}', space=sflag, size = 0x4, scoped, tag = 'scoped memory for run.1']
    #allocation19 [shape = 'u8[32768]{0}', space=vmem, size = 0x8000, scoped, tag = 'input window, operand 12, single buffered']
    #allocation20 [shape = 'u8[1024]{0}', space=vmem, size = 0x400, scoped, tag = 'input window, operand 13, single buffered']
    #allocation21 [shape = 's32[1]{0}', space=sflag, size = 0x4, scoped, tag = 'scoped memory for run.1']
    #allocation22 [shape = 'u8[32768]{0}', space=vmem, size = 0x8000, scoped, tag = 'input window, operand 14, single buffered']
    #allocation23 [shape = 'u8[32768]{0}', space=vmem, size = 0x8000, scoped, tag = 'input window, operand 16, single buffered']
    #allocation24 [shape = 's32[1]{0}', space=sflag, size = 0x4, scoped, tag = 'scoped memory for run.1']
    #allocation25 [shape = 'u8[65536]{0}', space=vmem, size = 0x10000, scoped, tag = 'input window, operand 20, single buffered']
    #allocation26 [shape = 'u8[8192]{0}', space=vmem, size = 0x2000, scoped, tag = 'output window, operand 0, single buffered']
    %31 = vsyncpa [#allocation3], 0
    %32 = vsyncpa [#allocation6], 0
    %33 = vsyncpa [#allocation9], 0
    %34 = vsyncpa [#allocation12], 0
    %35 = vsyncpa [#allocation15], 0
    %36 = vsyncpa [#allocation18], 0
    %37 = vsyncpa [#allocation21], 0
    %38 = vsyncpa [#allocation24], 0
    %39 = vsyncpa [#allocation4], 0
    // Predicated region
    $region2: #{run.1} parent=1 // pred_check
      _
    $region3: #{run.1} parent=1 // pred_check_branch
      %41 = sbr.rel (0) target = $region5
    $region4: #{run.1} parent=1 // pred_region
      _
    $region5: #{run.1} parent=1 // pred_fallthru
      _
    // Predicated region
    $region6: #{run.1} parent=1 // pred_check
      _
    $region7: #{run.1} parent=1 // pred_check_branch
      %43 = sbr.rel (0) target = $region9
    $region8: #{run.1} parent=1 // pred_region
      %s45 = ssub.s32 256, 256
      %46 = vsyncadd [#allocation3], %s45
      %s47 = sshll.u32 [#allocation2], 4
      %s48 = int_to_ptr.vmem [resolvable:$true] %s47
      %53 = dma.hbm_to_vmem [thread:$0]  %s1, 256, %s48, [#allocation3], 128, 128, 8
    $region9: #{run.1} parent=1 // pred_fallthru
      _
    // Predicated region
    $region10: #{run.1} parent=1 // pred_check
      _
    $region11: #{run.1} parent=1 // pred_check_branch
      %55 = sbr.rel (0) target = $region13
    $region12: #{run.1} parent=1 // pred_region
      _
    $region13: #{run.1} parent=1 // pred_fallthru
      _
    // Predicated region
    $region14: #{run.1} parent=1 // pred_check
      _
    $region15: #{run.1} parent=1 // pred_check_branch
      %57 = sbr.rel (0) target = $region17
    $region16: #{run.1} parent=1 // pred_region
      %s59 = ssub.s32 1024, 1024
      %60 = vsyncadd [#allocation6], %s59
      %s61 = sshll.u32 [#allocation5], 4
      %s62 = int_to_ptr.vmem [resolvable:$true] %s61
      %67 = dma.hbm_to_vmem [thread:$0]  %s3, 1024, %s62, [#allocation6], 128, 128, 8
    $region17: #{run.1} parent=1 // pred_fallthru
      _
    // Predicated region
    $region18: #{run.1} parent=1 // pred_check
      _
    $region19: #{run.1} parent=1 // pred_check_branch
      %69 = sbr.rel (0) target = $region21
    $region20: #{run.1} parent=1 // pred_region
      %s71 = ssub.s32 1024, 1024
      %72 = vsyncadd [#allocation6], %s71
      %s73 = sshll.u32 [#allocation7], 4
      %s74 = int_to_ptr.vmem [resolvable:$true] %s73
      %79 = dma.hbm_to_vmem [thread:$0]  %s4, 1024, %s74, [#allocation6], 128, 128, 8
    $region21: #{run.1} parent=1 // pred_fallthru
      _
    // Predicated region
    $region22: #{run.1} parent=1 // pred_check
      _
    $region23: #{run.1} parent=1 // pred_check_branch
      %81 = sbr.rel (0) target = $region25
    $region24: #{run.1} parent=1 // pred_region
      %s83 = ssub.s32 1024, 1024
      %84 = vsyncadd [#allocation9], %s83
      %s85 = sshll.u32 [#allocation8], 4
      %s86 = int_to_ptr.vmem [resolvable:$true] %s85
      %91 = dma.hbm_to_vmem [thread:$0]  %s5, 1024, %s86, [#allocation9], 128, 128, 8
    $region25: #{run.1} parent=1 // pred_fallthru
      _
    // Predicated region
    $region26: #{run.1} parent=1 // pred_check
      _
    $region27: #{run.1} parent=1 // pred_check_branch
      %93 = sbr.rel (0) target = $region29
    $region28: #{run.1} parent=1 // pred_region
      %s95 = ssub.s32 256, 256
      %96 = vsyncadd [#allocation9], %s95
      %s97 = sshll.u32 [#allocation10], 4
      %s98 = int_to_ptr.vmem [resolvable:$true] %s97
      %103 = dma.hbm_to_vmem [thread:$0]  %s6, 256, %s98, [#allocation9], 128, 128, 8
    $region29: #{run.1} parent=1 // pred_fallthru
      _
    // Predicated region
    $region30: #{run.1} parent=1 // pred_check
      _
    $region31: #{run.1} parent=1 // pred_check_branch
      %105 = sbr.rel (0) target = $region33
    $region32: #{run.1} parent=1 // pred_region
      %s107 = ssub.s32 1024, 1024
      %108 = vsyncadd [#allocation12], %s107
      %s109 = sshll.u32 [#allocation11], 4
      %s110 = int_to_ptr.vmem [resolvable:$true] %s109
      %115 = dma.hbm_to_vmem [thread:$0]  %s7, 1024, %s110, [#allocation12], 128, 128, 8
    $region33: #{run.1} parent=1 // pred_fallthru
      _
    // Predicated region
    $region34: #{run.1} parent=1 // pred_check
      _
    $region35: #{run.1} parent=1 // pred_check_branch
      %117 = sbr.rel (0) target = $region37
    $region36: #{run.1} parent=1 // pred_region
      %s119 = ssub.s32 1024, 1024
      %120 = vsyncadd [#allocation12], %s119
      %s121 = sshll.u32 [#allocation13], 4
      %s122 = int_to_ptr.vmem [resolvable:$true] %s121
      %127 = dma.hbm_to_vmem [thread:$0]  %s8, 1024, %s122, [#allocation12], 128, 128, 8
    $region37: #{run.1} parent=1 // pred_fallthru
      _
    // Predicated region
    $region38: #{run.1} parent=1 // pred_check
      _
    $region39: #{run.1} parent=1 // pred_check_branch
      %129 = sbr.rel (0) target = $region41
    $region40: #{run.1} parent=1 // pred_region
      %s131 = ssub.s32 32, 32
      %132 = vsyncadd [#allocation15], %s131
      %s133 = sshll.u32 [#allocation14], 4
      %s134 = int_to_ptr.vmem [resolvable:$true] %s133
      %139 = dma.hbm_to_vmem [thread:$0]  %s9, 32, %s134, [#allocation15], 16, 16, 1
    $region41: #{run.1} parent=1 // pred_fallthru
      _
    // Predicated region
    $region42: #{run.1} parent=1 // pred_check
      _
    $region43: #{run.1} parent=1 // pred_check_branch
      %141 = sbr.rel (0) target = $region45
    $region44: #{run.1} parent=1 // pred_region
      %s143 = ssub.s32 1024, 1024
      %144 = vsyncadd [#allocation15], %s143
      %s145 = sshll.u32 [#allocation16], 4
      %s146 = int_to_ptr.vmem [resolvable:$true] %s145
      %151 = dma.hbm_to_vmem [thread:$0]  %s10, 1024, %s146, [#allocation15], 128, 128, 8
    $region45: #{run.1} parent=1 // pred_fallthru
      _
    // Predicated region
    $region46: #{run.1} parent=1 // pred_check
      _
    $region47: #{run.1} parent=1 // pred_check_branch
      %153 = sbr.rel (0) target = $region49
    $region48: #{run.1} parent=1 // pred_region
      %s155 = ssub.s32 32, 32
      %156 = vsyncadd [#allocation18], %s155
      %s157 = sshll.u32 [#allocation17], 4
      %s158 = int_to_ptr.vmem [resolvable:$true] %s157
      %163 = dma.hbm_to_vmem [thread:$0]  %s11, 32, %s158, [#allocation18], 16, 16, 1
    $region49: #{run.1} parent=1 // pred_fallthru
      _
    // Predicated region
    $region50: #{run.1} parent=1 // pred_check
      _
    $region51: #{run.1} parent=1 // pred_check_branch
      %165 = sbr.rel (0) target = $region53
    $region52: #{run.1} parent=1 // pred_region
      %s167 = ssub.s32 1024, 1024
      %168 = vsyncadd [#allocation18], %s167
      %s169 = sshll.u32 [#allocation19], 4
      %s170 = int_to_ptr.vmem [resolvable:$true] %s169
      %175 = dma.hbm_to_vmem [thread:$0]  %s12, 1024, %s170, [#allocation18], 128, 128, 8
    $region53: #{run.1} parent=1 // pred_fallthru
      _
    // Predicated region
    $region54: #{run.1} parent=1 // pred_check
      _
    $region55: #{run.1} parent=1 // pred_check_branch
      %177 = sbr.rel (0) target = $region57
    $region56: #{run.1} parent=1 // pred_region
      %s179 = ssub.s32 32, 32
      %180 = vsyncadd [#allocation21], %s179
      %s181 = sshll.u32 [#allocation20], 4
      %s182 = int_to_ptr.vmem [resolvable:$true] %s181
      %187 = dma.hbm_to_vmem [thread:$0]  %s13, 32, %s182, [#allocation21], 16, 16, 1
    $region57: #{run.1} parent=1 // pred_fallthru
      _
    // Predicated region
    $region58: #{run.1} parent=1 // pred_check
      _
    $region59: #{run.1} parent=1 // pred_check_branch
      %189 = sbr.rel (0) target = $region61
    $region60: #{run.1} parent=1 // pred_region
      %s191 = ssub.s32 1024, 1024
      %192 = vsyncadd [#allocation21], %s191
      %s193 = sshll.u32 [#allocation22], 4
      %s194 = int_to_ptr.vmem [resolvable:$true] %s193
      %199 = dma.hbm_to_vmem [thread:$0]  %s14, 1024, %s194, [#allocation21], 128, 128, 8
    $region61: #{run.1} parent=1 // pred_fallthru
      _
    // Predicated region
    $region62: #{run.1} parent=1 // pred_check
      _
    $region63: #{run.1} parent=1 // pred_check_branch
      %201 = sbr.rel (0) target = $region65
    $region64: #{run.1} parent=1 // pred_region
      _
    $region65: #{run.1} parent=1 // pred_fallthru
      _
    // Predicated region
    $region66: #{run.1} parent=1 // pred_check
      _
    $region67: #{run.1} parent=1 // pred_check_branch
      %203 = sbr.rel (0) target = $region69
    $region68: #{run.1} parent=1 // pred_region
      %s205 = ssub.s32 1024, 1024
      %206 = vsyncadd [#allocation24], %s205
      %s207 = sshll.u32 [#allocation23], 4
      %s208 = int_to_ptr.vmem [resolvable:$true] %s207
      %213 = dma.hbm_to_vmem [thread:$0]  %s16, 1024, %s208, [#allocation24], 128, 128, 8
    $region69: #{run.1} parent=1 // pred_fallthru
      _
    // Predicated region
    $region70: #{run.1} parent=1 // pred_check
      _
    $region71: #{run.1} parent=1 // pred_check_branch
      %215 = sbr.rel (0) target = $region73
    $region72: #{run.1} parent=1 // pred_region
      _
    $region73: #{run.1} parent=1 // pred_fallthru
      _
    // Predicated region
    $region74: #{run.1} parent=1 // pred_check
      _
    $region75: #{run.1} parent=1 // pred_check_branch
      %217 = sbr.rel (0) target = $region77
    $region76: #{run.1} parent=1 // pred_region
      _
    $region77: #{run.1} parent=1 // pred_fallthru
      _
    // Predicated region
    $region78: #{run.1} parent=1 // pred_check
      _
    $region79: #{run.1} parent=1 // pred_check_branch
      %219 = sbr.rel (0) target = $region81
    $region80: #{run.1} parent=1 // pred_region
      _
    $region81: #{run.1} parent=1 // pred_fallthru
      _
    // Predicated region
    $region82: #{run.1} parent=1 // pred_check
      _
    $region83: #{run.1} parent=1 // pred_check_branch
      %221 = sbr.rel (0) target = $region85
    $region84: #{run.1} parent=1 // pred_region
      %s223 = ssub.s32 2048, 2048
      %224 = vsyncadd [#allocation24], %s223
      %s225 = sshll.u32 [#allocation25], 4
      %s226 = int_to_ptr.vmem [resolvable:$true] %s225
      %231 = dma.hbm_to_vmem [thread:$0]  %s20, 2048, %s226, [#allocation24], 128, 128, 8
    $region85: #{run.1} parent=1 // pred_fallthru
      _
    // Predicated region
    $region86: #{run.1} parent=1 // pred_check
      _
    $region87: #{run.1} parent=1 // pred_check_branch
      %233 = sbr.rel (0) target = $region89
    $region88: #{run.1} parent=1 // pred_region
      _
    $region89: #{run.1} parent=1 // pred_fallthru
      _
    // Predicated region
    $region90: #{run.1} parent=1 // pred_check
      _
    $region91: #{run.1} parent=1 // pred_check_branch
      %235 = sbr.rel (0) target = $region93
    $region92: #{run.1} parent=1 // pred_region
      _
    $region93: #{run.1} parent=1 // pred_fallthru
      _
    // Predicated region
    $region94: #{run.1} parent=1 // pred_check
      _
    $region95: #{run.1} parent=1 // pred_check_branch
      %237 = sbr.rel (0) target = $region97
    $region96: #{run.1} parent=1 // pred_region
      _
    $region97: #{run.1} parent=1 // pred_fallthru
      _
    // Predicated region
    $region98: #{run.1} parent=1 // pred_check
      _
    $region99: #{run.1} parent=1 // pred_check_branch
      %239 = sbr.rel (0) target = $region101
    $region100: #{run.1} parent=1 // pred_region
      _
    $region101: #{run.1} parent=1 // pred_fallthru
      _
    // Predicated region
    $region102: #{run.1} parent=1 // pred_check
      _
    $region103: #{run.1} parent=1 // pred_check_branch
      %241 = sbr.rel (0) target = $region105
    $region104: #{run.1} parent=1 // pred_region
      _
    $region105: #{run.1} parent=1 // pred_fallthru
      _
    // Predicated region
    $region106: #{run.1} parent=1 // pred_check
      _
    $region107: #{run.1} parent=1 // pred_check_branch
      %243 = sbr.rel (0) target = $region109
    $region108: #{run.1} parent=1 // pred_region
      %244 = dma.done [#allocation3], 256
    $region109: #{run.1} parent=1 // pred_fallthru
      _
    // Predicated region
    $region110: #{run.1} parent=1 // pred_check
      _
    $region111: #{run.1} parent=1 // pred_check_branch
      %246 = sbr.rel (0) target = $region113
    $region112: #{run.1} parent=1 // pred_region
      %247 = dma.done [#allocation6], 1024
    $region113: #{run.1} parent=1 // pred_fallthru
      _
    // Predicated region
    $region114: #{run.1} parent=1 // pred_check
      _
    $region115: #{run.1} parent=1 // pred_check_branch
      %249 = sbr.rel (0) target = $region117
    $region116: #{run.1} parent=1 // pred_region
      %250 = dma.done [#allocation6], 1024
    $region117: #{run.1} parent=1 // pred_fallthru
      _
    // Predicated region
    $region118: #{run.1} parent=1 // pred_check
      _
    $region119: #{run.1} parent=1 // pred_check_branch
      %252 = sbr.rel (0) target = $region121
    $region120: #{run.1} parent=1 // pred_region
      %253 = dma.done [#allocation9], 1024
    $region121: #{run.1} parent=1 // pred_fallthru
      _
    // Predicated region
    $region122: #{run.1} parent=1 // pred_check
      _
    $region123: #{run.1} parent=1 // pred_check_branch
      %255 = sbr.rel (0) target = $region125
    $region124: #{run.1} parent=1 // pred_region
      %256 = dma.done [#allocation9], 256
    $region125: #{run.1} parent=1 // pred_fallthru
      _
    // Predicated region
    $region126: #{run.1} parent=1 // pred_check
      _
    $region127: #{run.1} parent=1 // pred_check_branch
      %258 = sbr.rel (0) target = $region129
    $region128: #{run.1} parent=1 // pred_region
      %259 = dma.done [#allocation12], 1024
    $region129: #{run.1} parent=1 // pred_fallthru
      _
    // Predicated region
    $region130: #{run.1} parent=1 // pred_check
      _
    $region131: #{run.1} parent=1 // pred_check_branch
      %261 = sbr.rel (0) target = $region133
    $region132: #{run.1} parent=1 // pred_region
      %262 = dma.done [#allocation12], 1024
    $region133: #{run.1} parent=1 // pred_fallthru
      _
    // Predicated region
    $region134: #{run.1} parent=1 // pred_check
      _
    $region135: #{run.1} parent=1 // pred_check_branch
      %264 = sbr.rel (0) target = $region137
    $region136: #{run.1} parent=1 // pred_region
      %265 = dma.done [#allocation15], 32
    $region137: #{run.1} parent=1 // pred_fallthru
      _
    // Predicated region
    $region138: #{run.1} parent=1 // pred_check
      _
    $region139: #{run.1} parent=1 // pred_check_branch
      %267 = sbr.rel (0) target = $region141
    $region140: #{run.1} parent=1 // pred_region
      %268 = dma.done [#allocation15], 1024
    $region141: #{run.1} parent=1 // pred_fallthru
      _
    // Predicated region
    $region142: #{run.1} parent=1 // pred_check
      _
    $region143: #{run.1} parent=1 // pred_check_branch
      %270 = sbr.rel (0) target = $region145
    $region144: #{run.1} parent=1 // pred_region
      %271 = dma.done [#allocation18], 32
    $region145: #{run.1} parent=1 // pred_fallthru
      _
    // Predicated region
    $region146: #{run.1} parent=1 // pred_check
      _
    $region147: #{run.1} parent=1 // pred_check_branch
      %273 = sbr.rel (0) target = $region149
    $region148: #{run.1} parent=1 // pred_region
      %274 = dma.done [#allocation18], 1024
    $region149: #{run.1} parent=1 // pred_fallthru
      _
    // Predicated region
    $region150: #{run.1} parent=1 // pred_check
      _
    $region151: #{run.1} parent=1 // pred_check_branch
      %276 = sbr.rel (0) target = $region153
    $region152: #{run.1} parent=1 // pred_region
      %277 = dma.done [#allocation21], 32
    $region153: #{run.1} parent=1 // pred_fallthru
      _
    // Predicated region
    $region154: #{run.1} parent=1 // pred_check
      _
    $region155: #{run.1} parent=1 // pred_check_branch
      %279 = sbr.rel (0) target = $region157
    $region156: #{run.1} parent=1 // pred_region
      %280 = dma.done [#allocation21], 1024
    $region157: #{run.1} parent=1 // pred_fallthru
      _
    // Predicated region
    $region158: #{run.1} parent=1 // pred_check
      _
    $region159: #{run.1} parent=1 // pred_check_branch
      %282 = sbr.rel (0) target = $region161
    $region160: #{run.1} parent=1 // pred_region
      %283 = dma.done [#allocation24], 1024
    $region161: #{run.1} parent=1 // pred_fallthru
      _
    // Predicated region
    $region162: #{run.1} parent=1 // pred_check
      _
    $region163: #{run.1} parent=1 // pred_check_branch
      %285 = sbr.rel (0) target = $region165
    $region164: #{run.1} parent=1 // pred_region
      %286 = dma.done [#allocation24], 2048
    $region165: #{run.1} parent=1 // pred_fallthru
      _
    %v287 = vld [vmem:[%s0] sm:$0xff]
    %v288 = vld [vmem:[%s0 + $0x8] sm:$0xff]
    %v289 = vmul.f32 %v287, 5.656854
    %v290 = vmul.f32 %v288, 5.656854
    %v291 = vld [vmem:[#allocation2] sm:$0xff]
    %v292 = vld [vmem:[#allocation2 + $0x8] sm:$0xff]
    %v293 = vadd.f32 %v289, %v291
    %v294 = vadd.f32 %v290, %v292
    %v295 = vld [vmem:[%s2] sm:$0xff]
    %v296 = vld [vmem:[%s2 + $0x8] sm:$0xff]
    %v297 = vld [vmem:[#allocation5] sm:$0xff]
    %v298 = vld [vmem:[#allocation5 + $0x8] sm:$0xff]
    %v299 = vld [vmem:[#allocation5 + $0x10] sm:$0xff]
    %v300 = vld [vmem:[#allocation5 + $0x18] sm:$0xff]
    %v301 = vld [vmem:[#allocation5 + $0x20] sm:$0xff]
    %v302 = vld [vmem:[#allocation5 + $0x28] sm:$0xff]
    %v303 = vld [vmem:[#allocation5 + $0x30] sm:$0xff]
    %v304 = vld [vmem:[#allocation5 + $0x38] sm:$0xff]
    %v305 = vld [vmem:[#allocation7] sm:$0xff]
    %v306 = vld [vmem:[#allocation7 + $0x8] sm:$0xff]
    %v307 = vld [vmem:[#allocation7 + $0x10] sm:$0xff]
    %v308 = vld [vmem:[#allocation7 + $0x18] sm:$0xff]
    %v309 = vld [vmem:[#allocation7 + $0x20] sm:$0xff]
    %v310 = vld [vmem:[#allocation7 + $0x28] sm:$0xff]
    %v311 = vld [vmem:[#allocation7 + $0x30] sm:$0xff]
    %v312 = vld [vmem:[#allocation7 + $0x38] sm:$0xff]
    %v313 = vld [vmem:[#allocation8] sm:$0xff]
    %v314 = vld [vmem:[#allocation8 + $0x8] sm:$0xff]
    %v315 = vld [vmem:[#allocation8 + $0x10] sm:$0xff]
    %v316 = vld [vmem:[#allocation8 + $0x18] sm:$0xff]
    %v317 = vld [vmem:[#allocation8 + $0x20] sm:$0xff]
    %v318 = vld [vmem:[#allocation8 + $0x28] sm:$0xff]
    %v319 = vld [vmem:[#allocation8 + $0x30] sm:$0xff]
    %v320 = vld [vmem:[#allocation8 + $0x38] sm:$0xff]
    %v321 = vld [vmem:[#allocation10] sm:$0xff]
    %v322 = vld [vmem:[#allocation10 + $0x8] sm:$0xff]
    %v323 = vld [vmem:[#allocation11] sm:$0xff]
    %v324 = vld [vmem:[#allocation11 + $0x8] sm:$0xff]
    %v325 = vld [vmem:[#allocation11 + $0x10] sm:$0xff]
    %v326 = vld [vmem:[#allocation11 + $0x18] sm:$0xff]
    %v327 = vld [vmem:[#allocation11 + $0x20] sm:$0xff]
    %v328 = vld [vmem:[#allocation11 + $0x28] sm:$0xff]
    %v329 = vld [vmem:[#allocation11 + $0x30] sm:$0xff]
    %v330 = vld [vmem:[#allocation11 + $0x38] sm:$0xff]
    %v331 = vld [vmem:[%s22] sm:$0x1]
    %v332 = vld [vmem:[%s23] sm:$0x1]
    %vm333 = vcmask 261120
    %v334 = vsel %vm333, %v293, 0.0
    %335 = vadd.xlane.f32.xlu0 %v334
    %v336 = vpop.xlane.xlu0 %335
    %v337 = vsel %vm333, %v294, 0.0
    %338 = vadd.xlane.f32.xlu0 %v337
    %v339 = vpop.xlane.xlu0 %338
    %v340 = vrcp.pop 32.0
    %v341 = vmul.f32 %v336, %v340
    %v342 = vmul.f32 %v339, %v340
    %v343 = vsub.f32 %v293, %v341
    %v344 = vsub.f32 %v294, %v342
    %v345 = vmul.f32 %v343, %v343
    %v346 = vmul.f32 %v344, %v344
    %v347 = vsel %vm333, %v345, 0.0
    %348 = vadd.xlane.f32.xlu0 %v347
    %v349 = vpop.xlane.xlu0 %348
    %v350 = vsel %vm333, %v346, 0.0
    %351 = vadd.xlane.f32.xlu0 %v350
    %v352 = vpop.xlane.xlu0 %351
    %v353 = vmul.f32 %v349, %v340
    %v354 = vmul.f32 %v352, %v340
    %v355 = vadd.f32 %v353, 1e-05
    %v356 = vadd.f32 %v354, 1e-05
    %v357 = vrsqrt.pop %v355
    %v358 = vrsqrt.pop %v356
    %v359 = vmul.f32 %v343, %v357
    %v360 = vmul.f32 %v344, %v358
    %v362 = vlaneseq
    %v363 = vshrl.u32 %v362, 7
    %v364 = vsub.s32 0, %v363
    %v365 = vrot.slane %v331, %v364
    %v367 = vmul.f32 %v359, %v365
    %v368 = vmul.f32 %v360, %v365
    %v370 = vlaneseq
    %v371 = vshrl.u32 %v370, 7
    %v372 = vsub.s32 0, %v371
    %v373 = vrot.slane %v332, %v372
    %v375 = vadd.f32 %v367, %v373
    %v376 = vadd.f32 %v368, %v373
    %v377 = vld [vmem:[#allocation13] sm:$0xff]
    %v378 = vld [vmem:[#allocation13 + $0x8] sm:$0xff]
    %v379 = vld [vmem:[#allocation13 + $0x10] sm:$0xff]
    %v380 = vld [vmem:[#allocation13 + $0x18] sm:$0xff]
    %v381 = vld [vmem:[#allocation14] sm:$0x1]
    %v383 = vlaneseq
    %v384 = vshrl.u32 %v383, 7
    %v385 = vsub.s32 0, %v384
    %v386 = vrot.slane %v381, %v385
    %v389 = vsel %vm333, %v375, 0
    %v392 = vsel %vm333, %v376, 0
    %394 = vmatprep.subr.mxu0 0.0
    %395 = vmatpush1.msra.mxu0 %v377
    %396 = vmatprep.subr.mxu0 0.0
    %397 = vmatpush1.msra.mxu0 %v378
    %398 = vmatprep.subr.mxu0 0.0
    %399 = vmatpush1.msra.mxu0 %v379
    %400 = vmatprep.subr.mxu0 0.0
    %401 = vmatpush1.msra.mxu0 %v380
    %402 = vmatprep.subr.mxu0 0.0
    %403 = vmatpush1.msra.mxu0 0.0
    %404 = vmatprep.subr.mxu0 0.0
    %405 = vmatpush1.msra.mxu0 0.0
    %406 = vmatprep.subr.mxu0 0.0
    %407 = vmatpush1.msra.mxu0 0.0
    %408 = vmatprep.subr.mxu0 0.0
    %409 = vmatpush1.msra.mxu0 0.0
    %410 = vmatprep.subr.mxu0 0.0
    %411 = vmatpush1.msra.mxu0 0.0
    %412 = vmatprep.subr.mxu0 0.0
    %413 = vmatpush1.msra.mxu0 0.0
    %414 = vmatprep.subr.mxu0 0.0
    %415 = vmatpush1.msra.mxu0 0.0
    %416 = vmatprep.subr.mxu0 0.0
    %417 = vmatpush1.msra.mxu0 0.0
    %418 = vmatprep.subr.mxu0 0.0
    %419 = vmatpush1.msra.mxu0 0.0
    %420 = vmatprep.subr.mxu0 0.0
    %421 = vmatpush1.msra.mxu0 0.0
    %422 = vmatprep.subr.mxu0 0.0
    %423 = vmatpush1.msra.mxu0 0.0
    %424 = vmatprep.subr.mxu0 0.0
    %425 = vmatpush1.msra.mxu0 0.0
    %426 = vmatprep.subr.mxu0 0.0
    %427 = vmatpush1.msra.mxu0 0.0
    %428 = vmatprep.subr.mxu0 0.0
    %429 = vmatpush1.msra.mxu0 0.0
    %430 = vmatprep.subr.mxu0 0.0
    %431 = vmatpush1.msra.mxu0 0.0
    %432 = vmatprep.subr.mxu0 0.0
    %433 = vmatpush1.msra.mxu0 0.0
    %434 = vmatprep.subr.mxu0 0.0
    %435 = vmatpush1.msra.mxu0 0.0
    %436 = vmatprep.subr.mxu0 0.0
    %437 = vmatpush1.msra.mxu0 0.0
    %438 = vmatprep.subr.mxu0 0.0
    %439 = vmatpush1.msra.mxu0 0.0
    %440 = vmatprep.subr.mxu0 0.0
    %441 = vmatpush1.msra.mxu0 0.0
    %442 = vmatprep.subr.mxu0 0.0
    %443 = vmatpush1.msra.mxu0 0.0
    %444 = vmatprep.subr.mxu0 0.0
    %445 = vmatpush1.msra.mxu0 0.0
    %446 = vmatprep.subr.mxu0 0.0
    %447 = vmatpush1.msra.mxu0 0.0
    %448 = vmatprep.subr.mxu0 0.0
    %449 = vmatpush1.msra.mxu0 0.0
    %450 = vmatprep.subr.mxu0 0.0
    %451 = vmatpush1.msra.mxu0 0.0
    %452 = vmatprep.subr.mxu0 0.0
    %453 = vmatpush1.msra.mxu0 0.0
    %454 = vmatprep.subr.mxu0 0.0
    %455 = vmatpush1.msra.mxu0 0.0
    %456 = vmatprep.subr.mxu0 0.0
    %457 = vmatpush1.msra.mxu0 0.0
    %458 = vmatprep.mubr.f32.mxu0 0.0
    %459 = vmatmul.mubr.f32.gmra.mrb[0].mxu0 %v389
    %v460 = vpop.f32.mrb[0].mxu0
    %v461 = vadd.f32 %v386, %v460
    %v462 = vpop.f32.mrb[0].mxu0
    %463 = vmatprep.mubr.f32.mxu0 0.0
    %464 = vmatmul.mubr.f32.gmra.mrb[0].mxu0 %v392
    %v465 = vpop.f32.mrb[0].mxu0
    %v466 = vadd.f32 %v386, %v465
    %v467 = vpop.f32.mrb[0].mxu0
    %468 = vdwg.mxu0
    %vm469 = vcmask 130048
    %v471 = vsel %vm469, %v313, 0
    %v474 = vsel %vm469, %v314, 0
    %v477 = vsel %vm469, %v315, 0
    %v480 = vsel %vm469, %v316, 0
    %v483 = vsel %vm469, %v317, 0
    %v486 = vsel %vm469, %v318, 0
    %v489 = vsel %vm469, %v319, 0
    %v492 = vsel %vm469, %v320, 0
    %494 = vmatprep.subr.mxu0 0.0
    %495 = vmatpush1.msra.mxu0 %v461
    %496 = vmatprep.subr.mxu0 0.0
    %497 = vmatpush1.msra.mxu0 %v466
    %498 = vmatprep.subr.mxu0 0.0
    %499 = vmatpush1.msra.mxu0 0.0
    %500 = vmatprep.subr.mxu0 0.0
    %501 = vmatpush1.msra.mxu0 0.0
    %502 = vmatprep.subr.mxu0 0.0
    %503 = vmatpush1.msra.mxu0 0.0
    %504 = vmatprep.subr.mxu0 0.0
    %505 = vmatpush1.msra.mxu0 0.0
    %506 = vmatprep.subr.mxu0 0.0
    %507 = vmatpush1.msra.mxu0 0.0
    %508 = vmatprep.subr.mxu0 0.0
    %509 = vmatpush1.msra.mxu0 0.0
    %510 = vmatprep.subr.mxu0 0.0
    %511 = vmatpush1.msra.mxu0 0.0
    %512 = vmatprep.subr.mxu0 0.0
    %513 = vmatpush1.msra.mxu0 0.0
    %514 = vmatprep.subr.mxu0 0.0
    %515 = vmatpush1.msra.mxu0 0.0
    %516 = vmatprep.subr.mxu0 0.0
    %517 = vmatpush1.msra.mxu0 0.0
    %518 = vmatprep.subr.mxu0 0.0
    %519 = vmatpush1.msra.mxu0 0.0
    %520 = vmatprep.subr.mxu0 0.0
    %521 = vmatpush1.msra.mxu0 0.0
    %522 = vmatprep.subr.mxu0 0.0
    %523 = vmatpush1.msra.mxu0 0.0
    %524 = vmatprep.subr.mxu0 0.0
    %525 = vmatpush1.msra.mxu0 0.0
    %526 = vmatprep.subr.mxu0 0.0
    %527 = vmatpush1.msra.mxu0 0.0
    %528 = vmatprep.subr.mxu0 0.0
    %529 = vmatpush1.msra.mxu0 0.0
    %530 = vmatprep.subr.mxu0 0.0
    %531 = vmatpush1.msra.mxu0 0.0
    %532 = vmatprep.subr.mxu0 0.0
    %533 = vmatpush1.msra.mxu0 0.0
    %534 = vmatprep.subr.mxu0 0.0
    %535 = vmatpush1.msra.mxu0 0.0
    %536 = vmatprep.subr.mxu0 0.0
    %537 = vmatpush1.msra.mxu0 0.0
    %538 = vmatprep.subr.mxu0 0.0
    %539 = vmatpush1.msra.mxu0 0.0
    %540 = vmatprep.subr.mxu0 0.0
    %541 = vmatpush1.msra.mxu0 0.0
    %542 = vmatprep.subr.mxu0 0.0
    %543 = vmatpush1.msra.mxu0 0.0
    %544 = vmatprep.subr.mxu0 0.0
    %545 = vmatpush1.msra.mxu0 0.0
    %546 = vmatprep.subr.mxu0 0.0
    %547 = vmatpush1.msra.mxu0 0.0
    %548 = vmatprep.subr.mxu0 0.0
    %549 = vmatpush1.msra.mxu0 0.0
    %550 = vmatprep.subr.mxu0 0.0
    %551 = vmatpush1.msra.mxu0 0.0
    %552 = vmatprep.subr.mxu0 0.0
    %553 = vmatpush1.msra.mxu0 0.0
    %554 = vmatprep.subr.mxu0 0.0
    %555 = vmatpush1.msra.mxu0 0.0
    %556 = vmatprep.subr.mxu0 0.0
    %557 = vmatpush1.msra.mxu0 0.0
    %558 = vmatprep.mubr.f32.mxu0 0.0
    %559 = vmatmul.mubr.f32.gmra.mrb[0].mxu0 %v471
    %v560 = vpop.f32.mrb[0].mxu0
    %v561 = vadd.f32 0.0, %v560
    %v562 = vpop.f32.mrb[0].mxu0
    %563 = vmatprep.mubr.f32.mxu0 0.0
    %564 = vmatmul.mubr.f32.gmra.mrb[0].mxu0 %v474
    %v565 = vpop.f32.mrb[0].mxu0
    %v566 = vadd.f32 0.0, %v565
    %v567 = vpop.f32.mrb[0].mxu0
    %568 = vmatprep.mubr.f32.mxu0 0.0
    %569 = vmatmul.mubr.f32.gmra.mrb[0].mxu0 %v477
    %v570 = vpop.f32.mrb[0].mxu0
    %v571 = vadd.f32 0.0, %v570
    %v572 = vpop.f32.mrb[0].mxu0
    %573 = vmatprep.mubr.f32.mxu0 0.0
    %574 = vmatmul.mubr.f32.gmra.mrb[0].mxu0 %v480
    %v575 = vpop.f32.mrb[0].mxu0
    %v576 = vadd.f32 0.0, %v575
    %v577 = vpop.f32.mrb[0].mxu0
    %578 = vmatprep.mubr.f32.mxu0 0.0
    %579 = vmatmul.mubr.f32.gmra.mrb[0].mxu0 %v483
    %v580 = vpop.f32.mrb[0].mxu0
    %v581 = vadd.f32 0.0, %v580
    %v582 = vpop.f32.mrb[0].mxu0
    %583 = vmatprep.mubr.f32.mxu0 0.0
    %584 = vmatmul.mubr.f32.gmra.mrb[0].mxu0 %v486
    %v585 = vpop.f32.mrb[0].mxu0
    %v586 = vadd.f32 0.0, %v585
    %v587 = vpop.f32.mrb[0].mxu0
    %588 = vmatprep.mubr.f32.mxu0 0.0
    %589 = vmatmul.mubr.f32.gmra.mrb[0].mxu0 %v489
    %v590 = vpop.f32.mrb[0].mxu0
    %v591 = vadd.f32 0.0, %v590
    %v592 = vpop.f32.mrb[0].mxu0
    %593 = vmatprep.mubr.f32.mxu0 0.0
    %594 = vmatmul.mubr.f32.gmra.mrb[0].mxu0 %v492
    %v595 = vpop.f32.mrb[0].mxu0
    %v596 = vadd.f32 0.0, %v595
    %v597 = vpop.f32.mrb[0].mxu0
    %598 = vdwg.mxu0
    %607 = vrot.lane.b32.xlu0 %v323, 32
    %v608 = vpop.permute.xlu0 %607
    %609 = vrot.lane.b32.xlu0 %v324, 32
    %v610 = vpop.permute.xlu0 %609
    %611 = vrot.lane.b32.xlu0 %v325, 32
    %v612 = vpop.permute.xlu0 %611
    %613 = vrot.lane.b32.xlu0 %v326, 32
    %v614 = vpop.permute.xlu0 %613
    %615 = vrot.lane.b32.xlu0 %v327, 32
    %v616 = vpop.permute.xlu0 %615
    %617 = vrot.lane.b32.xlu0 %v328, 32
    %v618 = vpop.permute.xlu0 %617
    %619 = vrot.lane.b32.xlu0 %v329, 32
    %v620 = vpop.permute.xlu0 %619
    %621 = vrot.lane.b32.xlu0 %v330, 32
    %v622 = vpop.permute.xlu0 %621
    %v631 = vmul.f32 %v561, %v608
    %v632 = vmul.f32 %v566, %v610
    %v633 = vmul.f32 %v571, %v612
    %v634 = vmul.f32 %v576, %v614
    %v635 = vmul.f32 %v581, %v616
    %v636 = vmul.f32 %v586, %v618
    %v637 = vmul.f32 %v591, %v620
    %v638 = vmul.f32 %v596, %v622
    %647 = vrot.lane.b32.xlu0 %v631, 96
    %v648 = vpop.permute.xlu0 %647
    %649 = vrot.lane.b32.xlu0 %v632, 96
    %v650 = vpop.permute.xlu0 %649
    %651 = vrot.lane.b32.xlu0 %v633, 96
    %v652 = vpop.permute.xlu0 %651
    %653 = vrot.lane.b32.xlu0 %v634, 96
    %v654 = vpop.permute.xlu0 %653
    %655 = vrot.lane.b32.xlu0 %v635, 96
    %v656 = vpop.permute.xlu0 %655
    %657 = vrot.lane.b32.xlu0 %v636, 96
    %v658 = vpop.permute.xlu0 %657
    %659 = vrot.lane.b32.xlu0 %v637, 96
    %v660 = vpop.permute.xlu0 %659
    %661 = vrot.lane.b32.xlu0 %v638, 96
    %v662 = vpop.permute.xlu0 %661
    %v664 = vsel %vm333, %v561, 0
    %v667 = vsel %vm333, %v566, 0
    %v670 = vsel %vm333, %v571, 0
    %v673 = vsel %vm333, %v576, 0
    %v676 = vsel %vm333, %v581, 0
    %v679 = vsel %vm333, %v586, 0
    %v682 = vsel %vm333, %v591, 0
    %v685 = vsel %vm333, %v596, 0
    %v687 = vsel %vm333, %v648, 0
    %v689 = vsel %vm333, %v650, 0
    %v691 = vsel %vm333, %v652, 0
    %v693 = vsel %vm333, %v654, 0
    %v695 = vsel %vm333, %v656, 0
    %v697 = vsel %vm333, %v658, 0
    %v699 = vsel %vm333, %v660, 0
    %v701 = vsel %vm333, %v662, 0
    %703 = vmatprep.subr.mxu0 0.0
    %704 = vmatpush1.xpose.msra.mxu0 %v687
    %705 = vmatprep.subr.mxu0 0.0
    %706 = vmatpush1.xpose.msra.mxu0 %v689
    %707 = vmatprep.subr.mxu0 0.0
    %708 = vmatpush1.xpose.msra.mxu0 %v691
    %709 = vmatprep.subr.mxu0 0.0
    %710 = vmatpush1.xpose.msra.mxu0 %v693
    %711 = vmatprep.subr.mxu0 0.0
    %712 = vmatpush1.xpose.msra.mxu0 %v695
    %713 = vmatprep.subr.mxu0 0.0
    %714 = vmatpush1.xpose.msra.mxu0 %v697
    %715 = vmatprep.subr.mxu0 0.0
    %716 = vmatpush1.xpose.msra.mxu0 %v699
    %717 = vmatprep.subr.mxu0 0.0
    %718 = vmatpush1.xpose.msra.mxu0 %v701
    %719 = vmatprep.subr.mxu0 0.0
    %720 = vmatpush1.xpose.msra.mxu0 0.0
    %721 = vmatprep.subr.mxu0 0.0
    %722 = vmatpush1.xpose.msra.mxu0 0.0
    %723 = vmatprep.subr.mxu0 0.0
    %724 = vmatpush1.xpose.msra.mxu0 0.0
    %725 = vmatprep.subr.mxu0 0.0
    %726 = vmatpush1.xpose.msra.mxu0 0.0
    %727 = vmatprep.subr.mxu0 0.0
    %728 = vmatpush1.xpose.msra.mxu0 0.0
    %729 = vmatprep.subr.mxu0 0.0
    %730 = vmatpush1.xpose.msra.mxu0 0.0
    %731 = vmatprep.subr.mxu0 0.0
    %732 = vmatpush1.xpose.msra.mxu0 0.0
    %733 = vmatprep.subr.mxu0 0.0
    %734 = vmatpush1.xpose.msra.mxu0 0.0
    %735 = vmatprep.subr.mxu0 0.0
    %736 = vmatpush1.xpose.msra.mxu0 0.0
    %737 = vmatprep.subr.mxu0 0.0
    %738 = vmatpush1.xpose.msra.mxu0 0.0
    %739 = vmatprep.subr.mxu0 0.0
    %740 = vmatpush1.xpose.msra.mxu0 0.0
    %741 = vmatprep.subr.mxu0 0.0
    %742 = vmatpush1.xpose.msra.mxu0 0.0
    %743 = vmatprep.subr.mxu0 0.0
    %744 = vmatpush1.xpose.msra.mxu0 0.0
    %745 = vmatprep.subr.mxu0 0.0
    %746 = vmatpush1.xpose.msra.mxu0 0.0
    %747 = vmatprep.subr.mxu0 0.0
    %748 = vmatpush1.xpose.msra.mxu0 0.0
    %749 = vmatprep.subr.mxu0 0.0
    %750 = vmatpush1.xpose.msra.mxu0 0.0
    %751 = vmatprep.subr.mxu0 0.0
    %752 = vmatpush1.xpose.msra.mxu0 0.0
    %753 = vmatprep.subr.mxu0 0.0
    %754 = vmatpush1.xpose.msra.mxu0 0.0
    %755 = vmatprep.subr.mxu0 0.0
    %756 = vmatpush1.xpose.msra.mxu0 0.0
    %757 = vmatprep.subr.mxu0 0.0
    %758 = vmatpush1.xpose.msra.mxu0 0.0
    %759 = vmatprep.subr.mxu0 0.0
    %760 = vmatpush1.xpose.msra.mxu0 0.0
    %761 = vmatprep.subr.mxu0 0.0
    %762 = vmatpush1.xpose.msra.mxu0 0.0
    %763 = vmatprep.subr.mxu0 0.0
    %764 = vmatpush1.xpose.msra.mxu0 0.0
    %765 = vmatprep.subr.mxu0 0.0
    %766 = vmatpush1.xpose.msra.mxu0 0.0
    %767 = vmatprep.mubr.f32.mxu0 0.0
    %768 = vmatmul.mubr.f32.gmra.mrb[0].mxu0 %v664
    %v769 = vpop.f32.mrb[0].mxu0
    %v770 = vadd.f32 %v297, %v769
    %v771 = vpop.f32.mrb[0].mxu0
    %772 = vmatprep.mubr.f32.mxu0 0.0
    %773 = vmatmul.mubr.f32.gmra.mrb[0].mxu0 %v667
    %v774 = vpop.f32.mrb[0].mxu0
    %v775 = vadd.f32 %v298, %v774
    %v776 = vpop.f32.mrb[0].mxu0
    %777 = vmatprep.mubr.f32.mxu0 0.0
    %778 = vmatmul.mubr.f32.gmra.mrb[0].mxu0 %v670
    %v779 = vpop.f32.mrb[0].mxu0
    %v780 = vadd.f32 %v299, %v779
    %v781 = vpop.f32.mrb[0].mxu0
    %782 = vmatprep.mubr.f32.mxu0 0.0
    %783 = vmatmul.mubr.f32.gmra.mrb[0].mxu0 %v673
    %v784 = vpop.f32.mrb[0].mxu0
    %v785 = vadd.f32 %v300, %v784
    %v786 = vpop.f32.mrb[0].mxu0
    %787 = vmatprep.mubr.f32.mxu0 0.0
    %788 = vmatmul.mubr.f32.gmra.mrb[0].mxu0 %v676
    %v789 = vpop.f32.mrb[0].mxu0
    %v790 = vadd.f32 %v301, %v789
    %v791 = vpop.f32.mrb[0].mxu0
    %792 = vmatprep.mubr.f32.mxu0 0.0
    %793 = vmatmul.mubr.f32.gmra.mrb[0].mxu0 %v679
    %v794 = vpop.f32.mrb[0].mxu0
    %v795 = vadd.f32 %v302, %v794
    %v796 = vpop.f32.mrb[0].mxu0
    %797 = vmatprep.mubr.f32.mxu0 0.0
    %798 = vmatmul.mubr.f32.gmra.mrb[0].mxu0 %v682
    %v799 = vpop.f32.mrb[0].mxu0
    %v800 = vadd.f32 %v303, %v799
    %v801 = vpop.f32.mrb[0].mxu0
    %802 = vmatprep.mubr.f32.mxu0 0.0
    %803 = vmatmul.mubr.f32.gmra.mrb[0].mxu0 %v685
    %v804 = vpop.f32.mrb[0].mxu0
    %v805 = vadd.f32 %v304, %v804
    %v806 = vpop.f32.mrb[0].mxu0
    %807 = vdwg.mxu0
    %vm808 = vcmask 523264
    %v809 = vsel %vm808, %v770, -inf
    %810 = vmax.xlane.f32.xlu0 %v809
    %v811 = vpop.xlane.xlu0 %810
    %v812 = vsel %vm808, %v775, -inf
    %813 = vmax.xlane.f32.xlu0 %v812
    %v814 = vpop.xlane.xlu0 %813
    %v815 = vsel %vm808, %v780, -inf
    %816 = vmax.xlane.f32.xlu0 %v815
    %v817 = vpop.xlane.xlu0 %816
    %v818 = vsel %vm808, %v785, -inf
    %819 = vmax.xlane.f32.xlu0 %v818
    %v820 = vpop.xlane.xlu0 %819
    %v821 = vsel %vm808, %v790, -inf
    %822 = vmax.xlane.f32.xlu0 %v821
    %v823 = vpop.xlane.xlu0 %822
    %v824 = vsel %vm808, %v795, -inf
    %825 = vmax.xlane.f32.xlu0 %v824
    %v826 = vpop.xlane.xlu0 %825
    %v827 = vsel %vm808, %v800, -inf
    %828 = vmax.xlane.f32.xlu0 %v827
    %v829 = vpop.xlane.xlu0 %828
    %v830 = vsel %vm808, %v805, -inf
    %831 = vmax.xlane.f32.xlu0 %v830
    %v832 = vpop.xlane.xlu0 %831
    %v833 = vsub.f32 %v770, %v811
    %v834 = vsub.f32 %v775, %v814
    %v835 = vsub.f32 %v780, %v817
    %v836 = vsub.f32 %v785, %v820
    %v837 = vsub.f32 %v790, %v823
    %v838 = vsub.f32 %v795, %v826
    %v839 = vsub.f32 %v800, %v829
    %v840 = vsub.f32 %v805, %v832
    %v841 = vmul.f32 %v833, 1.442695
    %v842 = vpow.pop %v841
    %v843 = vmul.f32 %v834, 1.442695
    %v844 = vpow.pop %v843
    %v845 = vmul.f32 %v835, 1.442695
    %v846 = vpow.pop %v845
    %v847 = vmul.f32 %v836, 1.442695
    %v848 = vpow.pop %v847
    %v849 = vmul.f32 %v837, 1.442695
    %v850 = vpow.pop %v849
    %v851 = vmul.f32 %v838, 1.442695
    %v852 = vpow.pop %v851
    %v853 = vmul.f32 %v839, 1.442695
    %v854 = vpow.pop %v853
    %v855 = vmul.f32 %v840, 1.442695
    %v856 = vpow.pop %v855
    %v857 = vsel %vm808, %v842, 0.0
    %858 = vadd.xlane.f32.xlu0 %v857
    %v859 = vpop.xlane.xlu0 %858
    %v860 = vsel %vm808, %v844, 0.0
    %861 = vadd.xlane.f32.xlu0 %v860
    %v862 = vpop.xlane.xlu0 %861
    %v863 = vsel %vm808, %v846, 0.0
    %864 = vadd.xlane.f32.xlu0 %v863
    %v865 = vpop.xlane.xlu0 %864
    %v866 = vsel %vm808, %v848, 0.0
    %867 = vadd.xlane.f32.xlu0 %v866
    %v868 = vpop.xlane.xlu0 %867
    %v869 = vsel %vm808, %v850, 0.0
    %870 = vadd.xlane.f32.xlu0 %v869
    %v871 = vpop.xlane.xlu0 %870
    %v872 = vsel %vm808, %v852, 0.0
    %873 = vadd.xlane.f32.xlu0 %v872
    %v874 = vpop.xlane.xlu0 %873
    %v875 = vsel %vm808, %v854, 0.0
    %876 = vadd.xlane.f32.xlu0 %v875
    %v877 = vpop.xlane.xlu0 %876
    %v878 = vsel %vm808, %v856, 0.0
    %879 = vadd.xlane.f32.xlu0 %v878
    %v880 = vpop.xlane.xlu0 %879
    %v881 = vrcp.pop %v859
    %v882 = vrcp.pop %v862
    %v883 = vrcp.pop %v865
    %v884 = vrcp.pop %v868
    %v885 = vrcp.pop %v871
    %v886 = vrcp.pop %v874
    %v887 = vrcp.pop %v877
    %v888 = vrcp.pop %v880
    %v889 = vmul.f32 %v842, %v881
    %v890 = vmul.f32 %v844, %v882
    %v891 = vmul.f32 %v846, %v883
    %v892 = vmul.f32 %v848, %v884
    %v893 = vmul.f32 %v850, %v885
    %v894 = vmul.f32 %v852, %v886
    %v895 = vmul.f32 %v854, %v887
    %v896 = vmul.f32 %v856, %v888
    %v898 = vsel %vm808, %v321, 0
    %v901 = vsel %vm808, %v322, 0
    %903 = vmatprep.subr.mxu0 0.0
    %904 = vmatpush1.msra.mxu0 %v889
    %905 = vmatprep.subr.mxu0 0.0
    %906 = vmatpush1.msra.mxu0 %v890
    %907 = vmatprep.subr.mxu0 0.0
    %908 = vmatpush1.msra.mxu0 %v891
    %909 = vmatprep.subr.mxu0 0.0
    %910 = vmatpush1.msra.mxu0 %v892
    %911 = vmatprep.subr.mxu0 0.0
    %912 = vmatpush1.msra.mxu0 %v893
    %913 = vmatprep.subr.mxu0 0.0
    %914 = vmatpush1.msra.mxu0 %v894
    %915 = vmatprep.subr.mxu0 0.0
    %916 = vmatpush1.msra.mxu0 %v895
    %917 = vmatprep.subr.mxu0 0.0
    %918 = vmatpush1.msra.mxu0 %v896
    %919 = vmatprep.subr.mxu0 0.0
    %920 = vmatpush1.msra.mxu0 0.0
    %921 = vmatprep.subr.mxu0 0.0
    %922 = vmatpush1.msra.mxu0 0.0
    %923 = vmatprep.subr.mxu0 0.0
    %924 = vmatpush1.msra.mxu0 0.0
    %925 = vmatprep.subr.mxu0 0.0
    %926 = vmatpush1.msra.mxu0 0.0
    %927 = vmatprep.subr.mxu0 0.0
    %928 = vmatpush1.msra.mxu0 0.0
    %929 = vmatprep.subr.mxu0 0.0
    %930 = vmatpush1.msra.mxu0 0.0
    %931 = vmatprep.subr.mxu0 0.0
    %932 = vmatpush1.msra.mxu0 0.0
    %933 = vmatprep.subr.mxu0 0.0
    %934 = vmatpush1.msra.mxu0 0.0
    %935 = vmatprep.subr.mxu0 0.0
    %936 = vmatpush1.msra.mxu0 0.0
    %937 = vmatprep.subr.mxu0 0.0
    %938 = vmatpush1.msra.mxu0 0.0
    %939 = vmatprep.subr.mxu0 0.0
    %940 = vmatpush1.msra.mxu0 0.0
    %941 = vmatprep.subr.mxu0 0.0
    %942 = vmatpush1.msra.mxu0 0.0
    %943 = vmatprep.subr.mxu0 0.0
    %944 = vmatpush1.msra.mxu0 0.0
    %945 = vmatprep.subr.mxu0 0.0
    %946 = vmatpush1.msra.mxu0 0.0
    %947 = vmatprep.subr.mxu0 0.0
    %948 = vmatpush1.msra.mxu0 0.0
    %949 = vmatprep.subr.mxu0 0.0
    %950 = vmatpush1.msra.mxu0 0.0
    %951 = vmatprep.subr.mxu0 0.0
    %952 = vmatpush1.msra.mxu0 0.0
    %953 = vmatprep.subr.mxu0 0.0
    %954 = vmatpush1.msra.mxu0 0.0
    %955 = vmatprep.subr.mxu0 0.0
    %956 = vmatpush1.msra.mxu0 0.0
    %957 = vmatprep.subr.mxu0 0.0
    %958 = vmatpush1.msra.mxu0 0.0
    %959 = vmatprep.subr.mxu0 0.0
    %960 = vmatpush1.msra.mxu0 0.0
    %961 = vmatprep.subr.mxu0 0.0
    %962 = vmatpush1.msra.mxu0 0.0
    %963 = vmatprep.subr.mxu0 0.0
    %964 = vmatpush1.msra.mxu0 0.0
    %965 = vmatprep.subr.mxu0 0.0
    %966 = vmatpush1.msra.mxu0 0.0
    %967 = vmatprep.mubr.f32.mxu0 0.0
    %968 = vmatmul.mubr.f32.gmra.mrb[0].mxu0 %v898
    %v969 = vpop.f32.mrb[0].mxu0
    %v970 = vadd.f32 0.0, %v969
    %v971 = vpop.f32.mrb[0].mxu0
    %972 = vmatprep.mubr.f32.mxu0 0.0
    %973 = vmatmul.mubr.f32.gmra.mrb[0].mxu0 %v901
    %v974 = vpop.f32.mrb[0].mxu0
    %v975 = vadd.f32 0.0, %v974
    %v976 = vpop.f32.mrb[0].mxu0
    %977 = vdwg.mxu0
    %978 = vrot.lane.b32.xlu0 %v631, 64
    %v979 = vpop.permute.xlu0 %978
    %980 = vrot.lane.b32.xlu0 %v632, 64
    %v981 = vpop.permute.xlu0 %980
    %982 = vrot.lane.b32.xlu0 %v633, 64
    %v983 = vpop.permute.xlu0 %982
    %984 = vrot.lane.b32.xlu0 %v634, 64
    %v985 = vpop.permute.xlu0 %984
    %986 = vrot.lane.b32.xlu0 %v635, 64
    %v987 = vpop.permute.xlu0 %986
    %988 = vrot.lane.b32.xlu0 %v636, 64
    %v989 = vpop.permute.xlu0 %988
    %990 = vrot.lane.b32.xlu0 %v637, 64
    %v991 = vpop.permute.xlu0 %990
    %992 = vrot.lane.b32.xlu0 %v638, 64
    %v993 = vpop.permute.xlu0 %992
    %v1003 = vsel %vm808, %v970, 0
    %v1006 = vsel %vm808, %v975, 0
    %1008 = vmatprep.subr.mxu0 0.0
    %1009 = vmatpush1.msra.mxu0 %v979
    %1010 = vmatprep.subr.mxu0 0.0
    %1011 = vmatpush1.msra.mxu0 %v981
    %1012 = vmatprep.subr.mxu0 0.0
    %1013 = vmatpush1.msra.mxu0 %v983
    %1014 = vmatprep.subr.mxu0 0.0
    %1015 = vmatpush1.msra.mxu0 %v985
    %1016 = vmatprep.subr.mxu0 0.0
    %1017 = vmatpush1.msra.mxu0 %v987
    %1018 = vmatprep.subr.mxu0 0.0
    %1019 = vmatpush1.msra.mxu0 %v989
    %1020 = vmatprep.subr.mxu0 0.0
    %1021 = vmatpush1.msra.mxu0 %v991
    %1022 = vmatprep.subr.mxu0 0.0
    %1023 = vmatpush1.msra.mxu0 %v993
    %1024 = vmatprep.subr.mxu0 0.0
    %1025 = vmatpush1.msra.mxu0 0.0
    %1026 = vmatprep.subr.mxu0 0.0
    %1027 = vmatpush1.msra.mxu0 0.0
    %1028 = vmatprep.subr.mxu0 0.0
    %1029 = vmatpush1.msra.mxu0 0.0
    %1030 = vmatprep.subr.mxu0 0.0
    %1031 = vmatpush1.msra.mxu0 0.0
    %1032 = vmatprep.subr.mxu0 0.0
    %1033 = vmatpush1.msra.mxu0 0.0
    %1034 = vmatprep.subr.mxu0 0.0
    %1035 = vmatpush1.msra.mxu0 0.0
    %1036 = vmatprep.subr.mxu0 0.0
    %1037 = vmatpush1.msra.mxu0 0.0
    %1038 = vmatprep.subr.mxu0 0.0
    %1039 = vmatpush1.msra.mxu0 0.0
    %1040 = vmatprep.subr.mxu0 0.0
    %1041 = vmatpush1.msra.mxu0 0.0
    %1042 = vmatprep.subr.mxu0 0.0
    %1043 = vmatpush1.msra.mxu0 0.0
    %1044 = vmatprep.subr.mxu0 0.0
    %1045 = vmatpush1.msra.mxu0 0.0
    %1046 = vmatprep.subr.mxu0 0.0
    %1047 = vmatpush1.msra.mxu0 0.0
    %1048 = vmatprep.subr.mxu0 0.0
    %1049 = vmatpush1.msra.mxu0 0.0
    %1050 = vmatprep.subr.mxu0 0.0
    %1051 = vmatpush1.msra.mxu0 0.0
    %1052 = vmatprep.subr.mxu0 0.0
    %1053 = vmatpush1.msra.mxu0 0.0
    %1054 = vmatprep.subr.mxu0 0.0
    %1055 = vmatpush1.msra.mxu0 0.0
    %1056 = vmatprep.subr.mxu0 0.0
    %1057 = vmatpush1.msra.mxu0 0.0
    %1058 = vmatprep.subr.mxu0 0.0
    %1059 = vmatpush1.msra.mxu0 0.0
    %1060 = vmatprep.subr.mxu0 0.0
    %1061 = vmatpush1.msra.mxu0 0.0
    %1062 = vmatprep.subr.mxu0 0.0
    %1063 = vmatpush1.msra.mxu0 0.0
    %1064 = vmatprep.subr.mxu0 0.0
    %1065 = vmatpush1.msra.mxu0 0.0
    %1066 = vmatprep.subr.mxu0 0.0
    %1067 = vmatpush1.msra.mxu0 0.0
    %1068 = vmatprep.subr.mxu0 0.0
    %1069 = vmatpush1.msra.mxu0 0.0
    %1070 = vmatprep.subr.mxu0 0.0
    %1071 = vmatpush1.msra.mxu0 0.0
    %1072 = vmatprep.mubr.f32.mxu0 0.0
    %1073 = vmatmul.mubr.f32.gmra.mrb[0].mxu0 %v1003
    %v1074 = vpop.f32.mrb[0].mxu0
    %v1075 = vadd.f32 0.0, %v1074
    %v1076 = vpop.f32.mrb[0].mxu0
    %1077 = vmatprep.mubr.f32.mxu0 0.0
    %1078 = vmatmul.mubr.f32.gmra.mrb[0].mxu0 %v1006
    %v1079 = vpop.f32.mrb[0].mxu0
    %v1080 = vadd.f32 0.0, %v1079
    %v1081 = vpop.f32.mrb[0].mxu0
    %1082 = vdwg.mxu0
    %v1083 = vld [vmem:[#allocation16] sm:$0xff]
    %v1084 = vld [vmem:[#allocation16 + $0x8] sm:$0xff]
    %v1085 = vld [vmem:[#allocation16 + $0x10] sm:$0xff]
    %v1086 = vld [vmem:[#allocation16 + $0x18] sm:$0xff]
    %v1088 = vsel %vm333, %v1075, 0
    %v1091 = vsel %vm333, %v1080, 0
    %1093 = vmatprep.subr.mxu0 0.0
    %1094 = vmatpush1.msra.mxu0 %v1083
    %1095 = vmatprep.subr.mxu0 0.0
    %1096 = vmatpush1.msra.mxu0 %v1084
    %1097 = vmatprep.subr.mxu0 0.0
    %1098 = vmatpush1.msra.mxu0 %v1085
    %1099 = vmatprep.subr.mxu0 0.0
    %1100 = vmatpush1.msra.mxu0 %v1086
    %1101 = vmatprep.subr.mxu0 0.0
    %1102 = vmatpush1.msra.mxu0 0.0
    %1103 = vmatprep.subr.mxu0 0.0
    %1104 = vmatpush1.msra.mxu0 0.0
    %1105 = vmatprep.subr.mxu0 0.0
    %1106 = vmatpush1.msra.mxu0 0.0
    %1107 = vmatprep.subr.mxu0 0.0
    %1108 = vmatpush1.msra.mxu0 0.0
    %1109 = vmatprep.subr.mxu0 0.0
    %1110 = vmatpush1.msra.mxu0 0.0
    %1111 = vmatprep.subr.mxu0 0.0
    %1112 = vmatpush1.msra.mxu0 0.0
    %1113 = vmatprep.subr.mxu0 0.0
    %1114 = vmatpush1.msra.mxu0 0.0
    %1115 = vmatprep.subr.mxu0 0.0
    %1116 = vmatpush1.msra.mxu0 0.0
    %1117 = vmatprep.subr.mxu0 0.0
    %1118 = vmatpush1.msra.mxu0 0.0
    %1119 = vmatprep.subr.mxu0 0.0
    %1120 = vmatpush1.msra.mxu0 0.0
    %1121 = vmatprep.subr.mxu0 0.0
    %1122 = vmatpush1.msra.mxu0 0.0
    %1123 = vmatprep.subr.mxu0 0.0
    %1124 = vmatpush1.msra.mxu0 0.0
    %1125 = vmatprep.subr.mxu0 0.0
    %1126 = vmatpush1.msra.mxu0 0.0
    %1127 = vmatprep.subr.mxu0 0.0
    %1128 = vmatpush1.msra.mxu0 0.0
    %1129 = vmatprep.subr.mxu0 0.0
    %1130 = vmatpush1.msra.mxu0 0.0
    %1131 = vmatprep.subr.mxu0 0.0
    %1132 = vmatpush1.msra.mxu0 0.0
    %1133 = vmatprep.subr.mxu0 0.0
    %1134 = vmatpush1.msra.mxu0 0.0
    %1135 = vmatprep.subr.mxu0 0.0
    %1136 = vmatpush1.msra.mxu0 0.0
    %1137 = vmatprep.subr.mxu0 0.0
    %1138 = vmatpush1.msra.mxu0 0.0
    %1139 = vmatprep.subr.mxu0 0.0
    %1140 = vmatpush1.msra.mxu0 0.0
    %1141 = vmatprep.subr.mxu0 0.0
    %1142 = vmatpush1.msra.mxu0 0.0
    %1143 = vmatprep.subr.mxu0 0.0
    %1144 = vmatpush1.msra.mxu0 0.0
    %1145 = vmatprep.subr.mxu0 0.0
    %1146 = vmatpush1.msra.mxu0 0.0
    %1147 = vmatprep.subr.mxu0 0.0
    %1148 = vmatpush1.msra.mxu0 0.0
    %1149 = vmatprep.subr.mxu0 0.0
    %1150 = vmatpush1.msra.mxu0 0.0
    %1151 = vmatprep.subr.mxu0 0.0
    %1152 = vmatpush1.msra.mxu0 0.0
    %1153 = vmatprep.subr.mxu0 0.0
    %1154 = vmatpush1.msra.mxu0 0.0
    %1155 = vmatprep.subr.mxu0 0.0
    %1156 = vmatpush1.msra.mxu0 0.0
    %1157 = vmatprep.mubr.f32.mxu0 0.0
    %1158 = vmatmul.mubr.f32.gmra.mrb[0].mxu0 %v1088
    %v1159 = vpop.f32.mrb[0].mxu0
    %v1160 = vadd.f32 0.0, %v1159
    %v1161 = vpop.f32.mrb[0].mxu0
    %1162 = vmatprep.mubr.f32.mxu0 0.0
    %1163 = vmatmul.mubr.f32.gmra.mrb[0].mxu0 %v1091
    %v1164 = vpop.f32.mrb[0].mxu0
    %v1165 = vadd.f32 0.0, %v1164
    %v1166 = vpop.f32.mrb[0].mxu0
    %1167 = vdwg.mxu0
    %v1168 = vadd.f32 %v293, %v1160
    %v1169 = vadd.f32 %v294, %v1165
    %v1170 = vld [vmem:[#allocation17] sm:$0x1]
    %v1172 = vlaneseq
    %v1173 = vshrl.u32 %v1172, 7
    %v1174 = vsub.s32 0, %v1173
    %v1175 = vrot.slane %v1170, %v1174
    %v1177 = vadd.f32 %v1168, %v1175
    %v1178 = vadd.f32 %v1169, %v1175
    %s1179 = scalar_lea.vmem %s22, 1
    %v1180 = vld [vmem:[%s1179] sm:$0x1]
    %s1181 = scalar_lea.vmem %s23, 1
    %v1182 = vld [vmem:[%s1181] sm:$0x1]
    %v1183 = vsel %vm333, %v1177, 0.0
    %1184 = vadd.xlane.f32.xlu0 %v1183
    %v1185 = vpop.xlane.xlu0 %1184
    %v1186 = vsel %vm333, %v1178, 0.0
    %1187 = vadd.xlane.f32.xlu0 %v1186
    %v1188 = vpop.xlane.xlu0 %1187
    %v1189 = vmul.f32 %v1185, %v340
    %v1190 = vmul.f32 %v1188, %v340
    %v1191 = vsub.f32 %v1177, %v1189
    %v1192 = vsub.f32 %v1178, %v1190
    %v1193 = vmul.f32 %v1191, %v1191
    %v1194 = vmul.f32 %v1192, %v1192
    %v1195 = vsel %vm333, %v1193, 0.0
    %1196 = vadd.xlane.f32.xlu0 %v1195
    %v1197 = vpop.xlane.xlu0 %1196
    %v1198 = vsel %vm333, %v1194, 0.0
    %1199 = vadd.xlane.f32.xlu0 %v1198
    %v1200 = vpop.xlane.xlu0 %1199
    %v1201 = vmul.f32 %v1197, %v340
    %v1202 = vmul.f32 %v1200, %v340
    %v1203 = vadd.f32 %v1201, 1e-05
    %v1204 = vadd.f32 %v1202, 1e-05
    %v1205 = vrsqrt.pop %v1203
    %v1206 = vrsqrt.pop %v1204
    %v1207 = vmul.f32 %v1191, %v1205
    %v1208 = vmul.f32 %v1192, %v1206
    %v1210 = vlaneseq
    %v1211 = vshrl.u32 %v1210, 7
    %v1212 = vsub.s32 0, %v1211
    %v1213 = vrot.slane %v1180, %v1212
    %v1215 = vmul.f32 %v1207, %v1213
    %v1216 = vmul.f32 %v1208, %v1213
    %v1218 = vlaneseq
    %v1219 = vshrl.u32 %v1218, 7
    %v1220 = vsub.s32 0, %v1219
    %v1221 = vrot.slane %v1182, %v1220
    %v1223 = vadd.f32 %v1215, %v1221
    %v1224 = vadd.f32 %v1216, %v1221
    %v1225 = vld [vmem:[#allocation19] sm:$0xff]
    %v1226 = vld [vmem:[#allocation19 + $0x8] sm:$0xff]
    %v1227 = vld [vmem:[#allocation19 + $0x10] sm:$0xff]
    %v1228 = vld [vmem:[#allocation19 + $0x18] sm:$0xff]
    %v1229 = vld [vmem:[#allocation20] sm:$0x1]
    %v1231 = vlaneseq
    %v1232 = vshrl.u32 %v1231, 7
    %v1233 = vsub.s32 0, %v1232
    %v1234 = vrot.slane %v1229, %v1233
    %v1237 = vsel %vm333, %v1223, 0
    %v1240 = vsel %vm333, %v1224, 0
    %1242 = vmatprep.subr.mxu0 0.0
    %1243 = vmatpush1.msra.mxu0 %v1225
    %1244 = vmatprep.subr.mxu0 0.0
    %1245 = vmatpush1.msra.mxu0 %v1226
    %1246 = vmatprep.subr.mxu0 0.0
    %1247 = vmatpush1.msra.mxu0 %v1227
    %1248 = vmatprep.subr.mxu0 0.0
    %1249 = vmatpush1.msra.mxu0 %v1228
    %1250 = vmatprep.subr.mxu0 0.0
    %1251 = vmatpush1.msra.mxu0 0.0
    %1252 = vmatprep.subr.mxu0 0.0
    %1253 = vmatpush1.msra.mxu0 0.0
    %1254 = vmatprep.subr.mxu0 0.0
    %1255 = vmatpush1.msra.mxu0 0.0
    %1256 = vmatprep.subr.mxu0 0.0
    %1257 = vmatpush1.msra.mxu0 0.0
    %1258 = vmatprep.subr.mxu0 0.0
    %1259 = vmatpush1.msra.mxu0 0.0
    %1260 = vmatprep.subr.mxu0 0.0
    %1261 = vmatpush1.msra.mxu0 0.0
    %1262 = vmatprep.subr.mxu0 0.0
    %1263 = vmatpush1.msra.mxu0 0.0
    %1264 = vmatprep.subr.mxu0 0.0
    %1265 = vmatpush1.msra.mxu0 0.0
    %1266 = vmatprep.subr.mxu0 0.0
    %1267 = vmatpush1.msra.mxu0 0.0
    %1268 = vmatprep.subr.mxu0 0.0
    %1269 = vmatpush1.msra.mxu0 0.0
    %1270 = vmatprep.subr.mxu0 0.0
    %1271 = vmatpush1.msra.mxu0 0.0
    %1272 = vmatprep.subr.mxu0 0.0
    %1273 = vmatpush1.msra.mxu0 0.0
    %1274 = vmatprep.subr.mxu0 0.0
    %1275 = vmatpush1.msra.mxu0 0.0
    %1276 = vmatprep.subr.mxu0 0.0
    %1277 = vmatpush1.msra.mxu0 0.0
    %1278 = vmatprep.subr.mxu0 0.0
    %1279 = vmatpush1.msra.mxu0 0.0
    %1280 = vmatprep.subr.mxu0 0.0
    %1281 = vmatpush1.msra.mxu0 0.0
    %1282 = vmatprep.subr.mxu0 0.0
    %1283 = vmatpush1.msra.mxu0 0.0
    %1284 = vmatprep.subr.mxu0 0.0
    %1285 = vmatpush1.msra.mxu0 0.0
    %1286 = vmatprep.subr.mxu0 0.0
    %1287 = vmatpush1.msra.mxu0 0.0
    %1288 = vmatprep.subr.mxu0 0.0
    %1289 = vmatpush1.msra.mxu0 0.0
    %1290 = vmatprep.subr.mxu0 0.0
    %1291 = vmatpush1.msra.mxu0 0.0
    %1292 = vmatprep.subr.mxu0 0.0
    %1293 = vmatpush1.msra.mxu0 0.0
    %1294 = vmatprep.subr.mxu0 0.0
    %1295 = vmatpush1.msra.mxu0 0.0
    %1296 = vmatprep.subr.mxu0 0.0
    %1297 = vmatpush1.msra.mxu0 0.0
    %1298 = vmatprep.subr.mxu0 0.0
    %1299 = vmatpush1.msra.mxu0 0.0
    %1300 = vmatprep.subr.mxu0 0.0
    %1301 = vmatpush1.msra.mxu0 0.0
    %1302 = vmatprep.subr.mxu0 0.0
    %1303 = vmatpush1.msra.mxu0 0.0
    %1304 = vmatprep.subr.mxu0 0.0
    %1305 = vmatpush1.msra.mxu0 0.0
    %1306 = vmatprep.mubr.f32.mxu0 0.0
    %1307 = vmatmul.mubr.f32.gmra.mrb[0].mxu0 %v1237
    %v1308 = vpop.f32.mrb[0].mxu0
    %v1309 = vadd.f32 %v1234, %v1308
    %v1310 = vpop.f32.mrb[0].mxu0
    %1311 = vmatprep.mubr.f32.mxu0 0.0
    %1312 = vmatmul.mubr.f32.gmra.mrb[0].mxu0 %v1240
    %v1313 = vpop.f32.mrb[0].mxu0
    %v1314 = vadd.f32 %v1234, %v1313
    %v1315 = vpop.f32.mrb[0].mxu0
    %1316 = vdwg.mxu0
    %v1317 = vld [vmem:[#allocation22] sm:$0xff]
    %v1318 = vld [vmem:[#allocation22 + $0x8] sm:$0xff]
    %v1319 = vld [vmem:[#allocation22 + $0x10] sm:$0xff]
    %v1320 = vld [vmem:[#allocation22 + $0x18] sm:$0xff]
    %v1321 = vld [vmem:[%s15] sm:$0x1]
    %v1323 = vlaneseq
    %v1324 = vshrl.u32 %v1323, 7
    %v1325 = vsub.s32 0, %v1324
    %v1326 = vrot.slane %v1321, %v1325
    %v1329 = vsel %vm333, %v295, 0
    %v1332 = vsel %vm333, %v296, 0
    %1334 = vmatprep.subr.mxu0 0.0
    %1335 = vmatpush1.msra.mxu0 %v1317
    %1336 = vmatprep.subr.mxu0 0.0
    %1337 = vmatpush1.msra.mxu0 %v1318
    %1338 = vmatprep.subr.mxu0 0.0
    %1339 = vmatpush1.msra.mxu0 %v1319
    %1340 = vmatprep.subr.mxu0 0.0
    %1341 = vmatpush1.msra.mxu0 %v1320
    %1342 = vmatprep.subr.mxu0 0.0
    %1343 = vmatpush1.msra.mxu0 0.0
    %1344 = vmatprep.subr.mxu0 0.0
    %1345 = vmatpush1.msra.mxu0 0.0
    %1346 = vmatprep.subr.mxu0 0.0
    %1347 = vmatpush1.msra.mxu0 0.0
    %1348 = vmatprep.subr.mxu0 0.0
    %1349 = vmatpush1.msra.mxu0 0.0
    %1350 = vmatprep.subr.mxu0 0.0
    %1351 = vmatpush1.msra.mxu0 0.0
    %1352 = vmatprep.subr.mxu0 0.0
    %1353 = vmatpush1.msra.mxu0 0.0
    %1354 = vmatprep.subr.mxu0 0.0
    %1355 = vmatpush1.msra.mxu0 0.0
    %1356 = vmatprep.subr.mxu0 0.0
    %1357 = vmatpush1.msra.mxu0 0.0
    %1358 = vmatprep.subr.mxu0 0.0
    %1359 = vmatpush1.msra.mxu0 0.0
    %1360 = vmatprep.subr.mxu0 0.0
    %1361 = vmatpush1.msra.mxu0 0.0
    %1362 = vmatprep.subr.mxu0 0.0
    %1363 = vmatpush1.msra.mxu0 0.0
    %1364 = vmatprep.subr.mxu0 0.0
    %1365 = vmatpush1.msra.mxu0 0.0
    %1366 = vmatprep.subr.mxu0 0.0
    %1367 = vmatpush1.msra.mxu0 0.0
    %1368 = vmatprep.subr.mxu0 0.0
    %1369 = vmatpush1.msra.mxu0 0.0
    %1370 = vmatprep.subr.mxu0 0.0
    %1371 = vmatpush1.msra.mxu0 0.0
    %1372 = vmatprep.subr.mxu0 0.0
    %1373 = vmatpush1.msra.mxu0 0.0
    %1374 = vmatprep.subr.mxu0 0.0
    %1375 = vmatpush1.msra.mxu0 0.0
    %1376 = vmatprep.subr.mxu0 0.0
    %1377 = vmatpush1.msra.mxu0 0.0
    %1378 = vmatprep.subr.mxu0 0.0
    %1379 = vmatpush1.msra.mxu0 0.0
    %1380 = vmatprep.subr.mxu0 0.0
    %1381 = vmatpush1.msra.mxu0 0.0
    %1382 = vmatprep.subr.mxu0 0.0
    %1383 = vmatpush1.msra.mxu0 0.0
    %1384 = vmatprep.subr.mxu0 0.0
    %1385 = vmatpush1.msra.mxu0 0.0
    %1386 = vmatprep.subr.mxu0 0.0
    %1387 = vmatpush1.msra.mxu0 0.0
    %1388 = vmatprep.subr.mxu0 0.0
    %1389 = vmatpush1.msra.mxu0 0.0
    %1390 = vmatprep.subr.mxu0 0.0
    %1391 = vmatpush1.msra.mxu0 0.0
    %1392 = vmatprep.subr.mxu0 0.0
    %1393 = vmatpush1.msra.mxu0 0.0
    %1394 = vmatprep.subr.mxu0 0.0
    %1395 = vmatpush1.msra.mxu0 0.0
    %1396 = vmatprep.subr.mxu0 0.0
    %1397 = vmatpush1.msra.mxu0 0.0
    %1398 = vmatprep.mubr.f32.mxu0 0.0
    %1399 = vmatmul.mubr.f32.gmra.mrb[0].mxu0 %v1329
    %v1400 = vpop.f32.mrb[0].mxu0
    %v1401 = vadd.f32 %v1326, %v1400
    %v1402 = vpop.f32.mrb[0].mxu0
    %1403 = vmatprep.mubr.f32.mxu0 0.0
    %1404 = vmatmul.mubr.f32.gmra.mrb[0].mxu0 %v1332
    %v1405 = vpop.f32.mrb[0].mxu0
    %v1406 = vadd.f32 %v1326, %v1405
    %v1407 = vpop.f32.mrb[0].mxu0
    %1408 = vdwg.mxu0
    %1409 = vmatprep.subr.mxu0 0.0
    %1410 = vmatpush1.msra.mxu0 %v1309
    %1411 = vmatprep.subr.mxu0 0.0
    %1412 = vmatpush1.msra.mxu0 %v1314
    %1413 = vmatprep.subr.mxu0 0.0
    %1414 = vmatpush1.msra.mxu0 0.0
    %1415 = vmatprep.subr.mxu0 0.0
    %1416 = vmatpush1.msra.mxu0 0.0
    %1417 = vmatprep.subr.mxu0 0.0
    %1418 = vmatpush1.msra.mxu0 0.0
    %1419 = vmatprep.subr.mxu0 0.0
    %1420 = vmatpush1.msra.mxu0 0.0
    %1421 = vmatprep.subr.mxu0 0.0
    %1422 = vmatpush1.msra.mxu0 0.0
    %1423 = vmatprep.subr.mxu0 0.0
    %1424 = vmatpush1.msra.mxu0 0.0
    %1425 = vmatprep.subr.mxu0 0.0
    %1426 = vmatpush1.msra.mxu0 0.0
    %1427 = vmatprep.subr.mxu0 0.0
    %1428 = vmatpush1.msra.mxu0 0.0
    %1429 = vmatprep.subr.mxu0 0.0
    %1430 = vmatpush1.msra.mxu0 0.0
    %1431 = vmatprep.subr.mxu0 0.0
    %1432 = vmatpush1.msra.mxu0 0.0
    %1433 = vmatprep.subr.mxu0 0.0
    %1434 = vmatpush1.msra.mxu0 0.0
    %1435 = vmatprep.subr.mxu0 0.0
    %1436 = vmatpush1.msra.mxu0 0.0
    %1437 = vmatprep.subr.mxu0 0.0
    %1438 = vmatpush1.msra.mxu0 0.0
    %1439 = vmatprep.subr.mxu0 0.0
    %1440 = vmatpush1.msra.mxu0 0.0
    %1441 = vmatprep.subr.mxu0 0.0
    %1442 = vmatpush1.msra.mxu0 0.0
    %1443 = vmatprep.subr.mxu0 0.0
    %1444 = vmatpush1.msra.mxu0 0.0
    %1445 = vmatprep.subr.mxu0 0.0
    %1446 = vmatpush1.msra.mxu0 0.0
    %1447 = vmatprep.subr.mxu0 0.0
    %1448 = vmatpush1.msra.mxu0 0.0
    %1449 = vmatprep.subr.mxu0 0.0
    %1450 = vmatpush1.msra.mxu0 0.0
    %1451 = vmatprep.subr.mxu0 0.0
    %1452 = vmatpush1.msra.mxu0 0.0
    %1453 = vmatprep.subr.mxu0 0.0
    %1454 = vmatpush1.msra.mxu0 0.0
    %1455 = vmatprep.subr.mxu0 0.0
    %1456 = vmatpush1.msra.mxu0 0.0
    %1457 = vmatprep.subr.mxu0 0.0
    %1458 = vmatpush1.msra.mxu0 0.0
    %1459 = vmatprep.subr.mxu0 0.0
    %1460 = vmatpush1.msra.mxu0 0.0
    %1461 = vmatprep.subr.mxu0 0.0
    %1462 = vmatpush1.msra.mxu0 0.0
    %1463 = vmatprep.subr.mxu0 0.0
    %1464 = vmatpush1.msra.mxu0 0.0
    %1465 = vmatprep.subr.mxu0 0.0
    %1466 = vmatpush1.msra.mxu0 0.0
    %1467 = vmatprep.subr.mxu0 0.0
    %1468 = vmatpush1.msra.mxu0 0.0
    %1469 = vmatprep.subr.mxu0 0.0
    %1470 = vmatpush1.msra.mxu0 0.0
    %1471 = vmatprep.subr.mxu0 0.0
    %1472 = vmatpush1.msra.mxu0 0.0
    %1473 = vmatprep.mubr.f32.mxu0 0.0
    %1474 = vmatmul.mubr.f32.gmra.mrb[0].mxu0 %v471
    %v1475 = vpop.f32.mrb[0].mxu0
    %v1476 = vadd.f32 0.0, %v1475
    %v1477 = vpop.f32.mrb[0].mxu0
    %1478 = vmatprep.mubr.f32.mxu0 0.0
    %1479 = vmatmul.mubr.f32.gmra.mrb[0].mxu0 %v474
    %v1480 = vpop.f32.mrb[0].mxu0
    %v1481 = vadd.f32 0.0, %v1480
    %v1482 = vpop.f32.mrb[0].mxu0
    %1483 = vmatprep.mubr.f32.mxu0 0.0
    %1484 = vmatmul.mubr.f32.gmra.mrb[0].mxu0 %v477
    %v1485 = vpop.f32.mrb[0].mxu0
    %v1486 = vadd.f32 0.0, %v1485
    %v1487 = vpop.f32.mrb[0].mxu0
    %1488 = vmatprep.mubr.f32.mxu0 0.0
    %1489 = vmatmul.mubr.f32.gmra.mrb[0].mxu0 %v480
    %v1490 = vpop.f32.mrb[0].mxu0
    %v1491 = vadd.f32 0.0, %v1490
    %v1492 = vpop.f32.mrb[0].mxu0
    %1493 = vmatprep.mubr.f32.mxu0 0.0
    %1494 = vmatmul.mubr.f32.gmra.mrb[0].mxu0 %v483
    %v1495 = vpop.f32.mrb[0].mxu0
    %v1496 = vadd.f32 0.0, %v1495
    %v1497 = vpop.f32.mrb[0].mxu0
    %1498 = vmatprep.mubr.f32.mxu0 0.0
    %1499 = vmatmul.mubr.f32.gmra.mrb[0].mxu0 %v486
    %v1500 = vpop.f32.mrb[0].mxu0
    %v1501 = vadd.f32 0.0, %v1500
    %v1502 = vpop.f32.mrb[0].mxu0
    %1503 = vmatprep.mubr.f32.mxu0 0.0
    %1504 = vmatmul.mubr.f32.gmra.mrb[0].mxu0 %v489
    %v1505 = vpop.f32.mrb[0].mxu0
    %v1506 = vadd.f32 0.0, %v1505
    %v1507 = vpop.f32.mrb[0].mxu0
    %1508 = vmatprep.mubr.f32.mxu0 0.0
    %1509 = vmatmul.mubr.f32.gmra.mrb[0].mxu0 %v492
    %v1510 = vpop.f32.mrb[0].mxu0
    %v1511 = vadd.f32 0.0, %v1510
    %v1512 = vpop.f32.mrb[0].mxu0
    %1513 = vdwg.mxu0
    %1514 = vmatprep.subr.mxu0 0.0
    %1515 = vmatpush1.msra.mxu0 %v1401
    %1516 = vmatprep.subr.mxu0 0.0
    %1517 = vmatpush1.msra.mxu0 %v1406
    %1518 = vmatprep.subr.mxu0 0.0
    %1519 = vmatpush1.msra.mxu0 0.0
    %1520 = vmatprep.subr.mxu0 0.0
    %1521 = vmatpush1.msra.mxu0 0.0
    %1522 = vmatprep.subr.mxu0 0.0
    %1523 = vmatpush1.msra.mxu0 0.0
    %1524 = vmatprep.subr.mxu0 0.0
    %1525 = vmatpush1.msra.mxu0 0.0
    %1526 = vmatprep.subr.mxu0 0.0
    %1527 = vmatpush1.msra.mxu0 0.0
    %1528 = vmatprep.subr.mxu0 0.0
    %1529 = vmatpush1.msra.mxu0 0.0
    %1530 = vmatprep.subr.mxu0 0.0
    %1531 = vmatpush1.msra.mxu0 0.0
    %1532 = vmatprep.subr.mxu0 0.0
    %1533 = vmatpush1.msra.mxu0 0.0
    %1534 = vmatprep.subr.mxu0 0.0
    %1535 = vmatpush1.msra.mxu0 0.0
    %1536 = vmatprep.subr.mxu0 0.0
    %1537 = vmatpush1.msra.mxu0 0.0
    %1538 = vmatprep.subr.mxu0 0.0
    %1539 = vmatpush1.msra.mxu0 0.0
    %1540 = vmatprep.subr.mxu0 0.0
    %1541 = vmatpush1.msra.mxu0 0.0
    %1542 = vmatprep.subr.mxu0 0.0
    %1543 = vmatpush1.msra.mxu0 0.0
    %1544 = vmatprep.subr.mxu0 0.0
    %1545 = vmatpush1.msra.mxu0 0.0
    %1546 = vmatprep.subr.mxu0 0.0
    %1547 = vmatpush1.msra.mxu0 0.0
    %1548 = vmatprep.subr.mxu0 0.0
    %1549 = vmatpush1.msra.mxu0 0.0
    %1550 = vmatprep.subr.mxu0 0.0
    %1551 = vmatpush1.msra.mxu0 0.0
    %1552 = vmatprep.subr.mxu0 0.0
    %1553 = vmatpush1.msra.mxu0 0.0
    %1554 = vmatprep.subr.mxu0 0.0
    %1555 = vmatpush1.msra.mxu0 0.0
    %1556 = vmatprep.subr.mxu0 0.0
    %1557 = vmatpush1.msra.mxu0 0.0
    %1558 = vmatprep.subr.mxu0 0.0
    %1559 = vmatpush1.msra.mxu0 0.0
    %1560 = vmatprep.subr.mxu0 0.0
    %1561 = vmatpush1.msra.mxu0 0.0
    %1562 = vmatprep.subr.mxu0 0.0
    %1563 = vmatpush1.msra.mxu0 0.0
    %1564 = vmatprep.subr.mxu0 0.0
    %1565 = vmatpush1.msra.mxu0 0.0
    %1566 = vmatprep.subr.mxu0 0.0
    %1567 = vmatpush1.msra.mxu0 0.0
    %1568 = vmatprep.subr.mxu0 0.0
    %1569 = vmatpush1.msra.mxu0 0.0
    %1570 = vmatprep.subr.mxu0 0.0
    %1571 = vmatpush1.msra.mxu0 0.0
    %1572 = vmatprep.subr.mxu0 0.0
    %1573 = vmatpush1.msra.mxu0 0.0
    %1574 = vmatprep.subr.mxu0 0.0
    %1575 = vmatpush1.msra.mxu0 0.0
    %1576 = vmatprep.subr.mxu0 0.0
    %1577 = vmatpush1.msra.mxu0 0.0
    %1578 = vmatprep.mubr.f32.mxu0 0.0
    %1579 = vmatmul.mubr.f32.gmra.mrb[0].mxu0 %v471
    %v1580 = vpop.f32.mrb[0].mxu0
    %v1581 = vadd.f32 0.0, %v1580
    %v1582 = vpop.f32.mrb[0].mxu0
    %1583 = vmatprep.mubr.f32.mxu0 0.0
    %1584 = vmatmul.mubr.f32.gmra.mrb[0].mxu0 %v474
    %v1585 = vpop.f32.mrb[0].mxu0
    %v1586 = vadd.f32 0.0, %v1585
    %v1587 = vpop.f32.mrb[0].mxu0
    %1588 = vmatprep.mubr.f32.mxu0 0.0
    %1589 = vmatmul.mubr.f32.gmra.mrb[0].mxu0 %v477
    %v1590 = vpop.f32.mrb[0].mxu0
    %v1591 = vadd.f32 0.0, %v1590
    %v1592 = vpop.f32.mrb[0].mxu0
    %1593 = vmatprep.mubr.f32.mxu0 0.0
    %1594 = vmatmul.mubr.f32.gmra.mrb[0].mxu0 %v480
    %v1595 = vpop.f32.mrb[0].mxu0
    %v1596 = vadd.f32 0.0, %v1595
    %v1597 = vpop.f32.mrb[0].mxu0
    %1598 = vmatprep.mubr.f32.mxu0 0.0
    %1599 = vmatmul.mubr.f32.gmra.mrb[0].mxu0 %v483
    %v1600 = vpop.f32.mrb[0].mxu0
    %v1601 = vadd.f32 0.0, %v1600
    %v1602 = vpop.f32.mrb[0].mxu0
    %1603 = vmatprep.mubr.f32.mxu0 0.0
    %1604 = vmatmul.mubr.f32.gmra.mrb[0].mxu0 %v486
    %v1605 = vpop.f32.mrb[0].mxu0
    %v1606 = vadd.f32 0.0, %v1605
    %v1607 = vpop.f32.mrb[0].mxu0
    %1608 = vmatprep.mubr.f32.mxu0 0.0
    %1609 = vmatmul.mubr.f32.gmra.mrb[0].mxu0 %v489
    %v1610 = vpop.f32.mrb[0].mxu0
    %v1611 = vadd.f32 0.0, %v1610
    %v1612 = vpop.f32.mrb[0].mxu0
    %1613 = vmatprep.mubr.f32.mxu0 0.0
    %1614 = vmatmul.mubr.f32.gmra.mrb[0].mxu0 %v492
    %v1615 = vpop.f32.mrb[0].mxu0
    %v1616 = vadd.f32 0.0, %v1615
    %v1617 = vpop.f32.mrb[0].mxu0
    %1618 = vdwg.mxu0
    %v1619 = vmul.f32 %v1581, %v323
    %v1620 = vmul.f32 %v1586, %v324
    %v1621 = vmul.f32 %v1591, %v325
    %v1622 = vmul.f32 %v1596, %v326
    %v1623 = vmul.f32 %v1601, %v327
    %v1624 = vmul.f32 %v1606, %v328
    %v1625 = vmul.f32 %v1611, %v329
    %v1626 = vmul.f32 %v1616, %v330
    %v1628 = vsel %vm333, %v1476, 0
    %v1631 = vsel %vm333, %v1481, 0
    %v1634 = vsel %vm333, %v1486, 0
    %v1637 = vsel %vm333, %v1491, 0
    %v1640 = vsel %vm333, %v1496, 0
    %v1643 = vsel %vm333, %v1501, 0
    %v1646 = vsel %vm333, %v1506, 0
    %v1649 = vsel %vm333, %v1511, 0
    %v1652 = vsel %vm333, %v1619, 0
    %v1655 = vsel %vm333, %v1620, 0
    %v1658 = vsel %vm333, %v1621, 0
    %v1661 = vsel %vm333, %v1622, 0
    %v1664 = vsel %vm333, %v1623, 0
    %v1667 = vsel %vm333, %v1624, 0
    %v1670 = vsel %vm333, %v1625, 0
    %v1673 = vsel %vm333, %v1626, 0
    %1675 = vmatprep.subr.mxu0 0.0
    %1676 = vmatpush1.xpose.msra.mxu0 %v1652
    %1677 = vmatprep.subr.mxu0 0.0
    %1678 = vmatpush1.xpose.msra.mxu0 %v1655
    %1679 = vmatprep.subr.mxu0 0.0
    %1680 = vmatpush1.xpose.msra.mxu0 %v1658
    %1681 = vmatprep.subr.mxu0 0.0
    %1682 = vmatpush1.xpose.msra.mxu0 %v1661
    %1683 = vmatprep.subr.mxu0 0.0
    %1684 = vmatpush1.xpose.msra.mxu0 %v1664
    %1685 = vmatprep.subr.mxu0 0.0
    %1686 = vmatpush1.xpose.msra.mxu0 %v1667
    %1687 = vmatprep.subr.mxu0 0.0
    %1688 = vmatpush1.xpose.msra.mxu0 %v1670
    %1689 = vmatprep.subr.mxu0 0.0
    %1690 = vmatpush1.xpose.msra.mxu0 %v1673
    %1691 = vmatprep.subr.mxu0 0.0
    %1692 = vmatpush1.xpose.msra.mxu0 0.0
    %1693 = vmatprep.subr.mxu0 0.0
    %1694 = vmatpush1.xpose.msra.mxu0 0.0
    %1695 = vmatprep.subr.mxu0 0.0
    %1696 = vmatpush1.xpose.msra.mxu0 0.0
    %1697 = vmatprep.subr.mxu0 0.0
    %1698 = vmatpush1.xpose.msra.mxu0 0.0
    %1699 = vmatprep.subr.mxu0 0.0
    %1700 = vmatpush1.xpose.msra.mxu0 0.0
    %1701 = vmatprep.subr.mxu0 0.0
    %1702 = vmatpush1.xpose.msra.mxu0 0.0
    %1703 = vmatprep.subr.mxu0 0.0
    %1704 = vmatpush1.xpose.msra.mxu0 0.0
    %1705 = vmatprep.subr.mxu0 0.0
    %1706 = vmatpush1.xpose.msra.mxu0 0.0
    %1707 = vmatprep.subr.mxu0 0.0
    %1708 = vmatpush1.xpose.msra.mxu0 0.0
    %1709 = vmatprep.subr.mxu0 0.0
    %1710 = vmatpush1.xpose.msra.mxu0 0.0
    %1711 = vmatprep.subr.mxu0 0.0
    %1712 = vmatpush1.xpose.msra.mxu0 0.0
    %1713 = vmatprep.subr.mxu0 0.0
    %1714 = vmatpush1.xpose.msra.mxu0 0.0
    %1715 = vmatprep.subr.mxu0 0.0
    %1716 = vmatpush1.xpose.msra.mxu0 0.0
    %1717 = vmatprep.subr.mxu0 0.0
    %1718 = vmatpush1.xpose.msra.mxu0 0.0
    %1719 = vmatprep.subr.mxu0 0.0
    %1720 = vmatpush1.xpose.msra.mxu0 0.0
    %1721 = vmatprep.subr.mxu0 0.0
    %1722 = vmatpush1.xpose.msra.mxu0 0.0
    %1723 = vmatprep.subr.mxu0 0.0
    %1724 = vmatpush1.xpose.msra.mxu0 0.0
    %1725 = vmatprep.subr.mxu0 0.0
    %1726 = vmatpush1.xpose.msra.mxu0 0.0
    %1727 = vmatprep.subr.mxu0 0.0
    %1728 = vmatpush1.xpose.msra.mxu0 0.0
    %1729 = vmatprep.subr.mxu0 0.0
    %1730 = vmatpush1.xpose.msra.mxu0 0.0
    %1731 = vmatprep.subr.mxu0 0.0
    %1732 = vmatpush1.xpose.msra.mxu0 0.0
    %1733 = vmatprep.subr.mxu0 0.0
    %1734 = vmatpush1.xpose.msra.mxu0 0.0
    %1735 = vmatprep.subr.mxu0 0.0
    %1736 = vmatpush1.xpose.msra.mxu0 0.0
    %1737 = vmatprep.subr.mxu0 0.0
    %1738 = vmatpush1.xpose.msra.mxu0 0.0
    %1739 = vmatprep.mubr.f32.mxu0 0.0
    %1740 = vmatmul.mubr.f32.gmra.mrb[0].mxu0 %v1628
    %v1741 = vpop.f32.mrb[0].mxu0
    %v1742 = vadd.f32 %v305, %v1741
    %v1743 = vpop.f32.mrb[0].mxu0
    %1744 = vmatprep.mubr.f32.mxu0 0.0
    %1745 = vmatmul.mubr.f32.gmra.mrb[0].mxu0 %v1631
    %v1746 = vpop.f32.mrb[0].mxu0
    %v1747 = vadd.f32 %v306, %v1746
    %v1748 = vpop.f32.mrb[0].mxu0
    %1749 = vmatprep.mubr.f32.mxu0 0.0
    %1750 = vmatmul.mubr.f32.gmra.mrb[0].mxu0 %v1634
    %v1751 = vpop.f32.mrb[0].mxu0
    %v1752 = vadd.f32 %v307, %v1751
    %v1753 = vpop.f32.mrb[0].mxu0
    %1754 = vmatprep.mubr.f32.mxu0 0.0
    %1755 = vmatmul.mubr.f32.gmra.mrb[0].mxu0 %v1637
    %v1756 = vpop.f32.mrb[0].mxu0
    %v1757 = vadd.f32 %v308, %v1756
    %v1758 = vpop.f32.mrb[0].mxu0
    %1759 = vmatprep.mubr.f32.mxu0 0.0
    %1760 = vmatmul.mubr.f32.gmra.mrb[0].mxu0 %v1640
    %v1761 = vpop.f32.mrb[0].mxu0
    %v1762 = vadd.f32 %v309, %v1761
    %v1763 = vpop.f32.mrb[0].mxu0
    %1764 = vmatprep.mubr.f32.mxu0 0.0
    %1765 = vmatmul.mubr.f32.gmra.mrb[0].mxu0 %v1643
    %v1766 = vpop.f32.mrb[0].mxu0
    %v1767 = vadd.f32 %v310, %v1766
    %v1768 = vpop.f32.mrb[0].mxu0
    %1769 = vmatprep.mubr.f32.mxu0 0.0
    %1770 = vmatmul.mubr.f32.gmra.mrb[0].mxu0 %v1646
    %v1771 = vpop.f32.mrb[0].mxu0
    %v1772 = vadd.f32 %v311, %v1771
    %v1773 = vpop.f32.mrb[0].mxu0
    %1774 = vmatprep.mubr.f32.mxu0 0.0
    %1775 = vmatmul.mubr.f32.gmra.mrb[0].mxu0 %v1649
    %v1776 = vpop.f32.mrb[0].mxu0
    %v1777 = vadd.f32 %v312, %v1776
    %v1778 = vpop.f32.mrb[0].mxu0
    %1779 = vdwg.mxu0
    %v1780 = vsel %vm808, %v1742, -inf
    %1781 = vmax.xlane.f32.xlu0 %v1780
    %v1782 = vpop.xlane.xlu0 %1781
    %v1783 = vsel %vm808, %v1747, -inf
    %1784 = vmax.xlane.f32.xlu0 %v1783
    %v1785 = vpop.xlane.xlu0 %1784
    %v1786 = vsel %vm808, %v1752, -inf
    %1787 = vmax.xlane.f32.xlu0 %v1786
    %v1788 = vpop.xlane.xlu0 %1787
    %v1789 = vsel %vm808, %v1757, -inf
    %1790 = vmax.xlane.f32.xlu0 %v1789
    %v1791 = vpop.xlane.xlu0 %1790
    %v1792 = vsel %vm808, %v1762, -inf
    %1793 = vmax.xlane.f32.xlu0 %v1792
    %v1794 = vpop.xlane.xlu0 %1793
    %v1795 = vsel %vm808, %v1767, -inf
    %1796 = vmax.xlane.f32.xlu0 %v1795
    %v1797 = vpop.xlane.xlu0 %1796
    %v1798 = vsel %vm808, %v1772, -inf
    %1799 = vmax.xlane.f32.xlu0 %v1798
    %v1800 = vpop.xlane.xlu0 %1799
    %v1801 = vsel %vm808, %v1777, -inf
    %1802 = vmax.xlane.f32.xlu0 %v1801
    %v1803 = vpop.xlane.xlu0 %1802
    %v1804 = vsub.f32 %v1742, %v1782
    %v1805 = vsub.f32 %v1747, %v1785
    %v1806 = vsub.f32 %v1752, %v1788
    %v1807 = vsub.f32 %v1757, %v1791
    %v1808 = vsub.f32 %v1762, %v1794
    %v1809 = vsub.f32 %v1767, %v1797
    %v1810 = vsub.f32 %v1772, %v1800
    %v1811 = vsub.f32 %v1777, %v1803
    %v1812 = vmul.f32 %v1804, 1.442695
    %v1813 = vpow.pop %v1812
    %v1814 = vmul.f32 %v1805, 1.442695
    %v1815 = vpow.pop %v1814
    %v1816 = vmul.f32 %v1806, 1.442695
    %v1817 = vpow.pop %v1816
    %v1818 = vmul.f32 %v1807, 1.442695
    %v1819 = vpow.pop %v1818
    %v1820 = vmul.f32 %v1808, 1.442695
    %v1821 = vpow.pop %v1820
    %v1822 = vmul.f32 %v1809, 1.442695
    %v1823 = vpow.pop %v1822
    %v1824 = vmul.f32 %v1810, 1.442695
    %v1825 = vpow.pop %v1824
    %v1826 = vmul.f32 %v1811, 1.442695
    %v1827 = vpow.pop %v1826
    %v1828 = vsel %vm808, %v1813, 0.0
    %1829 = vadd.xlane.f32.xlu0 %v1828
    %v1830 = vpop.xlane.xlu0 %1829
    %v1831 = vsel %vm808, %v1815, 0.0
    %1832 = vadd.xlane.f32.xlu0 %v1831
    %v1833 = vpop.xlane.xlu0 %1832
    %v1834 = vsel %vm808, %v1817, 0.0
    %1835 = vadd.xlane.f32.xlu0 %v1834
    %v1836 = vpop.xlane.xlu0 %1835
    %v1837 = vsel %vm808, %v1819, 0.0
    %1838 = vadd.xlane.f32.xlu0 %v1837
    %v1839 = vpop.xlane.xlu0 %1838
    %v1840 = vsel %vm808, %v1821, 0.0
    %1841 = vadd.xlane.f32.xlu0 %v1840
    %v1842 = vpop.xlane.xlu0 %1841
    %v1843 = vsel %vm808, %v1823, 0.0
    %1844 = vadd.xlane.f32.xlu0 %v1843
    %v1845 = vpop.xlane.xlu0 %1844
    %v1846 = vsel %vm808, %v1825, 0.0
    %1847 = vadd.xlane.f32.xlu0 %v1846
    %v1848 = vpop.xlane.xlu0 %1847
    %v1849 = vsel %vm808, %v1827, 0.0
    %1850 = vadd.xlane.f32.xlu0 %v1849
    %v1851 = vpop.xlane.xlu0 %1850
    %v1852 = vrcp.pop %v1830
    %v1853 = vrcp.pop %v1833
    %v1854 = vrcp.pop %v1836
    %v1855 = vrcp.pop %v1839
    %v1856 = vrcp.pop %v1842
    %v1857 = vrcp.pop %v1845
    %v1858 = vrcp.pop %v1848
    %v1859 = vrcp.pop %v1851
    %v1860 = vmul.f32 %v1813, %v1852
    %v1861 = vmul.f32 %v1815, %v1853
    %v1862 = vmul.f32 %v1817, %v1854
    %v1863 = vmul.f32 %v1819, %v1855
    %v1864 = vmul.f32 %v1821, %v1856
    %v1865 = vmul.f32 %v1823, %v1857
    %v1866 = vmul.f32 %v1825, %v1858
    %v1867 = vmul.f32 %v1827, %v1859
    %1868 = vmatprep.subr.mxu0 0.0
    %1869 = vmatpush1.msra.mxu0 %v1860
    %1870 = vmatprep.subr.mxu0 0.0
    %1871 = vmatpush1.msra.mxu0 %v1861
    %1872 = vmatprep.subr.mxu0 0.0
    %1873 = vmatpush1.msra.mxu0 %v1862
    %1874 = vmatprep.subr.mxu0 0.0
    %1875 = vmatpush1.msra.mxu0 %v1863
    %1876 = vmatprep.subr.mxu0 0.0
    %1877 = vmatpush1.msra.mxu0 %v1864
    %1878 = vmatprep.subr.mxu0 0.0
    %1879 = vmatpush1.msra.mxu0 %v1865
    %1880 = vmatprep.subr.mxu0 0.0
    %1881 = vmatpush1.msra.mxu0 %v1866
    %1882 = vmatprep.subr.mxu0 0.0
    %1883 = vmatpush1.msra.mxu0 %v1867
    %1884 = vmatprep.subr.mxu0 0.0
    %1885 = vmatpush1.msra.mxu0 0.0
    %1886 = vmatprep.subr.mxu0 0.0
    %1887 = vmatpush1.msra.mxu0 0.0
    %1888 = vmatprep.subr.mxu0 0.0
    %1889 = vmatpush1.msra.mxu0 0.0
    %1890 = vmatprep.subr.mxu0 0.0
    %1891 = vmatpush1.msra.mxu0 0.0
    %1892 = vmatprep.subr.mxu0 0.0
    %1893 = vmatpush1.msra.mxu0 0.0
    %1894 = vmatprep.subr.mxu0 0.0
    %1895 = vmatpush1.msra.mxu0 0.0
    %1896 = vmatprep.subr.mxu0 0.0
    %1897 = vmatpush1.msra.mxu0 0.0
    %1898 = vmatprep.subr.mxu0 0.0
    %1899 = vmatpush1.msra.mxu0 0.0
    %1900 = vmatprep.subr.mxu0 0.0
    %1901 = vmatpush1.msra.mxu0 0.0
    %1902 = vmatprep.subr.mxu0 0.0
    %1903 = vmatpush1.msra.mxu0 0.0
    %1904 = vmatprep.subr.mxu0 0.0
    %1905 = vmatpush1.msra.mxu0 0.0
    %1906 = vmatprep.subr.mxu0 0.0
    %1907 = vmatpush1.msra.mxu0 0.0
    %1908 = vmatprep.subr.mxu0 0.0
    %1909 = vmatpush1.msra.mxu0 0.0
    %1910 = vmatprep.subr.mxu0 0.0
    %1911 = vmatpush1.msra.mxu0 0.0
    %1912 = vmatprep.subr.mxu0 0.0
    %1913 = vmatpush1.msra.mxu0 0.0
    %1914 = vmatprep.subr.mxu0 0.0
    %1915 = vmatpush1.msra.mxu0 0.0
    %1916 = vmatprep.subr.mxu0 0.0
    %1917 = vmatpush1.msra.mxu0 0.0
    %1918 = vmatprep.subr.mxu0 0.0
    %1919 = vmatpush1.msra.mxu0 0.0
    %1920 = vmatprep.subr.mxu0 0.0
    %1921 = vmatpush1.msra.mxu0 0.0
    %1922 = vmatprep.subr.mxu0 0.0
    %1923 = vmatpush1.msra.mxu0 0.0
    %1924 = vmatprep.subr.mxu0 0.0
    %1925 = vmatpush1.msra.mxu0 0.0
    %1926 = vmatprep.subr.mxu0 0.0
    %1927 = vmatpush1.msra.mxu0 0.0
    %1928 = vmatprep.subr.mxu0 0.0
    %1929 = vmatpush1.msra.mxu0 0.0
    %1930 = vmatprep.subr.mxu0 0.0
    %1931 = vmatpush1.msra.mxu0 0.0
    %1932 = vmatprep.mubr.f32.mxu0 0.0
    %1933 = vmatmul.mubr.f32.gmra.mrb[0].mxu0 %v898
    %v1934 = vpop.f32.mrb[0].mxu0
    %v1935 = vadd.f32 0.0, %v1934
    %v1936 = vpop.f32.mrb[0].mxu0
    %1937 = vmatprep.mubr.f32.mxu0 0.0
    %1938 = vmatmul.mubr.f32.gmra.mrb[0].mxu0 %v901
    %v1939 = vpop.f32.mrb[0].mxu0
    %v1940 = vadd.f32 0.0, %v1939
    %v1941 = vpop.f32.mrb[0].mxu0
    %1942 = vdwg.mxu0
    %1943 = vrot.lane.b32.xlu0 %v1619, 96
    %v1944 = vpop.permute.xlu0 %1943
    %1945 = vrot.lane.b32.xlu0 %v1620, 96
    %v1946 = vpop.permute.xlu0 %1945
    %1947 = vrot.lane.b32.xlu0 %v1621, 96
    %v1948 = vpop.permute.xlu0 %1947
    %1949 = vrot.lane.b32.xlu0 %v1622, 96
    %v1950 = vpop.permute.xlu0 %1949
    %1951 = vrot.lane.b32.xlu0 %v1623, 96
    %v1952 = vpop.permute.xlu0 %1951
    %1953 = vrot.lane.b32.xlu0 %v1624, 96
    %v1954 = vpop.permute.xlu0 %1953
    %1955 = vrot.lane.b32.xlu0 %v1625, 96
    %v1956 = vpop.permute.xlu0 %1955
    %1957 = vrot.lane.b32.xlu0 %v1626, 96
    %v1958 = vpop.permute.xlu0 %1957
    %v1968 = vsel %vm808, %v1935, 0
    %v1971 = vsel %vm808, %v1940, 0
    %1973 = vmatprep.subr.mxu0 0.0
    %1974 = vmatpush1.msra.mxu0 %v1944
    %1975 = vmatprep.subr.mxu0 0.0
    %1976 = vmatpush1.msra.mxu0 %v1946
    %1977 = vmatprep.subr.mxu0 0.0
    %1978 = vmatpush1.msra.mxu0 %v1948
    %1979 = vmatprep.subr.mxu0 0.0
    %1980 = vmatpush1.msra.mxu0 %v1950
    %1981 = vmatprep.subr.mxu0 0.0
    %1982 = vmatpush1.msra.mxu0 %v1952
    %1983 = vmatprep.subr.mxu0 0.0
    %1984 = vmatpush1.msra.mxu0 %v1954
    %1985 = vmatprep.subr.mxu0 0.0
    %1986 = vmatpush1.msra.mxu0 %v1956
    %1987 = vmatprep.subr.mxu0 0.0
    %1988 = vmatpush1.msra.mxu0 %v1958
    %1989 = vmatprep.subr.mxu0 0.0
    %1990 = vmatpush1.msra.mxu0 0.0
    %1991 = vmatprep.subr.mxu0 0.0
    %1992 = vmatpush1.msra.mxu0 0.0
    %1993 = vmatprep.subr.mxu0 0.0
    %1994 = vmatpush1.msra.mxu0 0.0
    %1995 = vmatprep.subr.mxu0 0.0
    %1996 = vmatpush1.msra.mxu0 0.0
    %1997 = vmatprep.subr.mxu0 0.0
    %1998 = vmatpush1.msra.mxu0 0.0
    %1999 = vmatprep.subr.mxu0 0.0
    %2000 = vmatpush1.msra.mxu0 0.0
    %2001 = vmatprep.subr.mxu0 0.0
    %2002 = vmatpush1.msra.mxu0 0.0
    %2003 = vmatprep.subr.mxu0 0.0
    %2004 = vmatpush1.msra.mxu0 0.0
    %2005 = vmatprep.subr.mxu0 0.0
    %2006 = vmatpush1.msra.mxu0 0.0
    %2007 = vmatprep.subr.mxu0 0.0
    %2008 = vmatpush1.msra.mxu0 0.0
    %2009 = vmatprep.subr.mxu0 0.0
    %2010 = vmatpush1.msra.mxu0 0.0
    %2011 = vmatprep.subr.mxu0 0.0
    %2012 = vmatpush1.msra.mxu0 0.0
    %2013 = vmatprep.subr.mxu0 0.0
    %2014 = vmatpush1.msra.mxu0 0.0
    %2015 = vmatprep.subr.mxu0 0.0
    %2016 = vmatpush1.msra.mxu0 0.0
    %2017 = vmatprep.subr.mxu0 0.0
    %2018 = vmatpush1.msra.mxu0 0.0
    %2019 = vmatprep.subr.mxu0 0.0
    %2020 = vmatpush1.msra.mxu0 0.0
    %2021 = vmatprep.subr.mxu0 0.0
    %2022 = vmatpush1.msra.mxu0 0.0
    %2023 = vmatprep.subr.mxu0 0.0
    %2024 = vmatpush1.msra.mxu0 0.0
    %2025 = vmatprep.subr.mxu0 0.0
    %2026 = vmatpush1.msra.mxu0 0.0
    %2027 = vmatprep.subr.mxu0 0.0
    %2028 = vmatpush1.msra.mxu0 0.0
    %2029 = vmatprep.subr.mxu0 0.0
    %2030 = vmatpush1.msra.mxu0 0.0
    %2031 = vmatprep.subr.mxu0 0.0
    %2032 = vmatpush1.msra.mxu0 0.0
    %2033 = vmatprep.subr.mxu0 0.0
    %2034 = vmatpush1.msra.mxu0 0.0
    %2035 = vmatprep.subr.mxu0 0.0
    %2036 = vmatpush1.msra.mxu0 0.0
    %2037 = vmatprep.mubr.f32.mxu0 0.0
    %2038 = vmatmul.mubr.f32.gmra.mrb[0].mxu0 %v1968
    %v2039 = vpop.f32.mrb[0].mxu0
    %v2040 = vadd.f32 0.0, %v2039
    %v2041 = vpop.f32.mrb[0].mxu0
    %2042 = vmatprep.mubr.f32.mxu0 0.0
    %2043 = vmatmul.mubr.f32.gmra.mrb[0].mxu0 %v1971
    %v2044 = vpop.f32.mrb[0].mxu0
    %v2045 = vadd.f32 0.0, %v2044
    %v2046 = vpop.f32.mrb[0].mxu0
    %2047 = vdwg.mxu0
    %v2048 = vld [vmem:[#allocation23] sm:$0xff]
    %v2049 = vld [vmem:[#allocation23 + $0x8] sm:$0xff]
    %v2050 = vld [vmem:[#allocation23 + $0x10] sm:$0xff]
    %v2051 = vld [vmem:[#allocation23 + $0x18] sm:$0xff]
    %v2053 = vsel %vm333, %v2040, 0
    %v2056 = vsel %vm333, %v2045, 0
    %2058 = vmatprep.subr.mxu0 0.0
    %2059 = vmatpush1.msra.mxu0 %v2048
    %2060 = vmatprep.subr.mxu0 0.0
    %2061 = vmatpush1.msra.mxu0 %v2049
    %2062 = vmatprep.subr.mxu0 0.0
    %2063 = vmatpush1.msra.mxu0 %v2050
    %2064 = vmatprep.subr.mxu0 0.0
    %2065 = vmatpush1.msra.mxu0 %v2051
    %2066 = vmatprep.subr.mxu0 0.0
    %2067 = vmatpush1.msra.mxu0 0.0
    %2068 = vmatprep.subr.mxu0 0.0
    %2069 = vmatpush1.msra.mxu0 0.0
    %2070 = vmatprep.subr.mxu0 0.0
    %2071 = vmatpush1.msra.mxu0 0.0
    %2072 = vmatprep.subr.mxu0 0.0
    %2073 = vmatpush1.msra.mxu0 0.0
    %2074 = vmatprep.subr.mxu0 0.0
    %2075 = vmatpush1.msra.mxu0 0.0
    %2076 = vmatprep.subr.mxu0 0.0
    %2077 = vmatpush1.msra.mxu0 0.0
    %2078 = vmatprep.subr.mxu0 0.0
    %2079 = vmatpush1.msra.mxu0 0.0
    %2080 = vmatprep.subr.mxu0 0.0
    %2081 = vmatpush1.msra.mxu0 0.0
    %2082 = vmatprep.subr.mxu0 0.0
    %2083 = vmatpush1.msra.mxu0 0.0
    %2084 = vmatprep.subr.mxu0 0.0
    %2085 = vmatpush1.msra.mxu0 0.0
    %2086 = vmatprep.subr.mxu0 0.0
    %2087 = vmatpush1.msra.mxu0 0.0
    %2088 = vmatprep.subr.mxu0 0.0
    %2089 = vmatpush1.msra.mxu0 0.0
    %2090 = vmatprep.subr.mxu0 0.0
    %2091 = vmatpush1.msra.mxu0 0.0
    %2092 = vmatprep.subr.mxu0 0.0
    %2093 = vmatpush1.msra.mxu0 0.0
    %2094 = vmatprep.subr.mxu0 0.0
    %2095 = vmatpush1.msra.mxu0 0.0
    %2096 = vmatprep.subr.mxu0 0.0
    %2097 = vmatpush1.msra.mxu0 0.0
    %2098 = vmatprep.subr.mxu0 0.0
    %2099 = vmatpush1.msra.mxu0 0.0
    %2100 = vmatprep.subr.mxu0 0.0
    %2101 = vmatpush1.msra.mxu0 0.0
    %2102 = vmatprep.subr.mxu0 0.0
    %2103 = vmatpush1.msra.mxu0 0.0
    %2104 = vmatprep.subr.mxu0 0.0
    %2105 = vmatpush1.msra.mxu0 0.0
    %2106 = vmatprep.subr.mxu0 0.0
    %2107 = vmatpush1.msra.mxu0 0.0
    %2108 = vmatprep.subr.mxu0 0.0
    %2109 = vmatpush1.msra.mxu0 0.0
    %2110 = vmatprep.subr.mxu0 0.0
    %2111 = vmatpush1.msra.mxu0 0.0
    %2112 = vmatprep.subr.mxu0 0.0
    %2113 = vmatpush1.msra.mxu0 0.0
    %2114 = vmatprep.subr.mxu0 0.0
    %2115 = vmatpush1.msra.mxu0 0.0
    %2116 = vmatprep.subr.mxu0 0.0
    %2117 = vmatpush1.msra.mxu0 0.0
    %2118 = vmatprep.subr.mxu0 0.0
    %2119 = vmatpush1.msra.mxu0 0.0
    %2120 = vmatprep.subr.mxu0 0.0
    %2121 = vmatpush1.msra.mxu0 0.0
    %2122 = vmatprep.mubr.f32.mxu0 0.0
    %2123 = vmatmul.mubr.f32.gmra.mrb[0].mxu0 %v2053
    %v2124 = vpop.f32.mrb[0].mxu0
    %v2125 = vadd.f32 0.0, %v2124
    %v2126 = vpop.f32.mrb[0].mxu0
    %2127 = vmatprep.mubr.f32.mxu0 0.0
    %2128 = vmatmul.mubr.f32.gmra.mrb[0].mxu0 %v2056
    %v2129 = vpop.f32.mrb[0].mxu0
    %v2130 = vadd.f32 0.0, %v2129
    %v2131 = vpop.f32.mrb[0].mxu0
    %2132 = vdwg.mxu0
    %v2133 = vadd.f32 %v1177, %v2125
    %v2134 = vadd.f32 %v1178, %v2130
    %v2135 = vld [vmem:[%s17] sm:$0x1]
    %v2137 = vlaneseq
    %v2138 = vshrl.u32 %v2137, 7
    %v2139 = vsub.s32 0, %v2138
    %v2140 = vrot.slane %v2135, %v2139
    %v2142 = vadd.f32 %v2133, %v2140
    %v2143 = vadd.f32 %v2134, %v2140
    %s2144 = scalar_lea.vmem %s22, 2
    %v2145 = vld [vmem:[%s2144] sm:$0x1]
    %s2146 = scalar_lea.vmem %s23, 2
    %v2147 = vld [vmem:[%s2146] sm:$0x1]
    %v2148 = vsel %vm333, %v2142, 0.0
    %2149 = vadd.xlane.f32.xlu0 %v2148
    %v2150 = vpop.xlane.xlu0 %2149
    %v2151 = vsel %vm333, %v2143, 0.0
    %2152 = vadd.xlane.f32.xlu0 %v2151
    %v2153 = vpop.xlane.xlu0 %2152
    %v2154 = vmul.f32 %v2150, %v340
    %v2155 = vmul.f32 %v2153, %v340
    %v2156 = vsub.f32 %v2142, %v2154
    %v2157 = vsub.f32 %v2143, %v2155
    %v2158 = vmul.f32 %v2156, %v2156
    %v2159 = vmul.f32 %v2157, %v2157
    %v2160 = vsel %vm333, %v2158, 0.0
    %2161 = vadd.xlane.f32.xlu0 %v2160
    %v2162 = vpop.xlane.xlu0 %2161
    %v2163 = vsel %vm333, %v2159, 0.0
    %2164 = vadd.xlane.f32.xlu0 %v2163
    %v2165 = vpop.xlane.xlu0 %2164
    %v2166 = vmul.f32 %v2162, %v340
    %v2167 = vmul.f32 %v2165, %v340
    %v2168 = vadd.f32 %v2166, 1e-05
    %v2169 = vadd.f32 %v2167, 1e-05
    %v2170 = vrsqrt.pop %v2168
    %v2171 = vrsqrt.pop %v2169
    %v2172 = vmul.f32 %v2156, %v2170
    %v2173 = vmul.f32 %v2157, %v2171
    %v2175 = vlaneseq
    %v2176 = vshrl.u32 %v2175, 7
    %v2177 = vsub.s32 0, %v2176
    %v2178 = vrot.slane %v2145, %v2177
    %v2180 = vmul.f32 %v2172, %v2178
    %v2181 = vmul.f32 %v2173, %v2178
    %v2183 = vlaneseq
    %v2184 = vshrl.u32 %v2183, 7
    %v2185 = vsub.s32 0, %v2184
    %v2186 = vrot.slane %v2147, %v2185
    %v2188 = vadd.f32 %v2180, %v2186
    %v2189 = vadd.f32 %v2181, %v2186
    %v2190 = vld [vmem:[%s18] sm:$0xff]
    %v2191 = vld [vmem:[%s18 + $0x8] sm:$0xff]
    %v2192 = vld [vmem:[%s18 + $0x10] sm:$0xff]
    %v2193 = vld [vmem:[%s18 + $0x18] sm:$0xff]
    %v2194 = vld [vmem:[%s19] sm:$0x1]
    %v2196 = vlaneseq
    %v2197 = vshrl.u32 %v2196, 7
    %v2198 = vsub.s32 0, %v2197
    %v2199 = vrot.slane %v2194, %v2198
    %v2202 = vsel %vm333, %v2188, 0
    %v2205 = vsel %vm333, %v2189, 0
    %2207 = vmatprep.subr.mxu0 0.0
    %2208 = vmatpush1.msra.mxu0 %v2190
    %2209 = vmatprep.subr.mxu0 0.0
    %2210 = vmatpush1.msra.mxu0 %v2191
    %2211 = vmatprep.subr.mxu0 0.0
    %2212 = vmatpush1.msra.mxu0 %v2192
    %2213 = vmatprep.subr.mxu0 0.0
    %2214 = vmatpush1.msra.mxu0 %v2193
    %2215 = vmatprep.subr.mxu0 0.0
    %2216 = vmatpush1.msra.mxu0 0.0
    %2217 = vmatprep.subr.mxu0 0.0
    %2218 = vmatpush1.msra.mxu0 0.0
    %2219 = vmatprep.subr.mxu0 0.0
    %2220 = vmatpush1.msra.mxu0 0.0
    %2221 = vmatprep.subr.mxu0 0.0
    %2222 = vmatpush1.msra.mxu0 0.0
    %2223 = vmatprep.subr.mxu0 0.0
    %2224 = vmatpush1.msra.mxu0 0.0
    %2225 = vmatprep.subr.mxu0 0.0
    %2226 = vmatpush1.msra.mxu0 0.0
    %2227 = vmatprep.subr.mxu0 0.0
    %2228 = vmatpush1.msra.mxu0 0.0
    %2229 = vmatprep.subr.mxu0 0.0
    %2230 = vmatpush1.msra.mxu0 0.0
    %2231 = vmatprep.subr.mxu0 0.0
    %2232 = vmatpush1.msra.mxu0 0.0
    %2233 = vmatprep.subr.mxu0 0.0
    %2234 = vmatpush1.msra.mxu0 0.0
    %2235 = vmatprep.subr.mxu0 0.0
    %2236 = vmatpush1.msra.mxu0 0.0
    %2237 = vmatprep.subr.mxu0 0.0
    %2238 = vmatpush1.msra.mxu0 0.0
    %2239 = vmatprep.subr.mxu0 0.0
    %2240 = vmatpush1.msra.mxu0 0.0
    %2241 = vmatprep.subr.mxu0 0.0
    %2242 = vmatpush1.msra.mxu0 0.0
    %2243 = vmatprep.subr.mxu0 0.0
    %2244 = vmatpush1.msra.mxu0 0.0
    %2245 = vmatprep.subr.mxu0 0.0
    %2246 = vmatpush1.msra.mxu0 0.0
    %2247 = vmatprep.subr.mxu0 0.0
    %2248 = vmatpush1.msra.mxu0 0.0
    %2249 = vmatprep.subr.mxu0 0.0
    %2250 = vmatpush1.msra.mxu0 0.0
    %2251 = vmatprep.subr.mxu0 0.0
    %2252 = vmatpush1.msra.mxu0 0.0
    %2253 = vmatprep.subr.mxu0 0.0
    %2254 = vmatpush1.msra.mxu0 0.0
    %2255 = vmatprep.subr.mxu0 0.0
    %2256 = vmatpush1.msra.mxu0 0.0
    %2257 = vmatprep.subr.mxu0 0.0
    %2258 = vmatpush1.msra.mxu0 0.0
    %2259 = vmatprep.subr.mxu0 0.0
    %2260 = vmatpush1.msra.mxu0 0.0
    %2261 = vmatprep.subr.mxu0 0.0
    %2262 = vmatpush1.msra.mxu0 0.0
    %2263 = vmatprep.subr.mxu0 0.0
    %2264 = vmatpush1.msra.mxu0 0.0
    %2265 = vmatprep.subr.mxu0 0.0
    %2266 = vmatpush1.msra.mxu0 0.0
    %2267 = vmatprep.subr.mxu0 0.0
    %2268 = vmatpush1.msra.mxu0 0.0
    %2269 = vmatprep.subr.mxu0 0.0
    %2270 = vmatpush1.msra.mxu0 0.0
    %2271 = vmatprep.mubr.f32.mxu0 0.0
    %2272 = vmatmul.mubr.f32.gmra.mrb[0].mxu0 %v2202
    %v2273 = vpop.f32.mrb[0].mxu0
    %v2274 = vadd.f32 %v2199, %v2273
    %v2275 = vpop.f32.mrb[0].mxu0
    %2276 = vmatprep.mubr.f32.mxu0 0.0
    %2277 = vmatmul.mubr.f32.gmra.mrb[0].mxu0 %v2205
    %v2278 = vpop.f32.mrb[0].mxu0
    %v2279 = vadd.f32 %v2199, %v2278
    %v2280 = vpop.f32.mrb[0].mxu0
    %2281 = vdwg.mxu0
    %v2282 = vmax.f32 %v2274, 0.0
    %v2283 = vmax.f32 %v2279, 0.0
    %v2284 = vld [vmem:[#allocation25] sm:$0xff]
    %v2285 = vld [vmem:[#allocation25 + $0x8] sm:$0xff]
    %v2286 = vld [vmem:[#allocation25 + $0x10] sm:$0xff]
    %v2287 = vld [vmem:[#allocation25 + $0x18] sm:$0xff]
    %v2288 = vld [vmem:[#allocation25 + $0x20] sm:$0xff]
    %v2289 = vld [vmem:[#allocation25 + $0x28] sm:$0xff]
    %v2290 = vld [vmem:[#allocation25 + $0x30] sm:$0xff]
    %v2291 = vld [vmem:[#allocation25 + $0x38] sm:$0xff]
    %v2293 = vsel %vm808, %v2282, 0
    %v2296 = vsel %vm808, %v2283, 0
    %2298 = vmatprep.subr.mxu0 0.0
    %2299 = vmatpush1.msra.mxu0 %v2284
    %2300 = vmatprep.subr.mxu0 0.0
    %2301 = vmatpush1.msra.mxu0 %v2285
    %2302 = vmatprep.subr.mxu0 0.0
    %2303 = vmatpush1.msra.mxu0 %v2286
    %2304 = vmatprep.subr.mxu0 0.0
    %2305 = vmatpush1.msra.mxu0 %v2287
    %2306 = vmatprep.subr.mxu0 0.0
    %2307 = vmatpush1.msra.mxu0 %v2288
    %2308 = vmatprep.subr.mxu0 0.0
    %2309 = vmatpush1.msra.mxu0 %v2289
    %2310 = vmatprep.subr.mxu0 0.0
    %2311 = vmatpush1.msra.mxu0 %v2290
    %2312 = vmatprep.subr.mxu0 0.0
    %2313 = vmatpush1.msra.mxu0 %v2291
    %2314 = vmatprep.subr.mxu0 0.0
    %2315 = vmatpush1.msra.mxu0 0.0
    %2316 = vmatprep.subr.mxu0 0.0
    %2317 = vmatpush1.msra.mxu0 0.0
    %2318 = vmatprep.subr.mxu0 0.0
    %2319 = vmatpush1.msra.mxu0 0.0
    %2320 = vmatprep.subr.mxu0 0.0
    %2321 = vmatpush1.msra.mxu0 0.0
    %2322 = vmatprep.subr.mxu0 0.0
    %2323 = vmatpush1.msra.mxu0 0.0
    %2324 = vmatprep.subr.mxu0 0.0
    %2325 = vmatpush1.msra.mxu0 0.0
    %2326 = vmatprep.subr.mxu0 0.0
    %2327 = vmatpush1.msra.mxu0 0.0
    %2328 = vmatprep.subr.mxu0 0.0
    %2329 = vmatpush1.msra.mxu0 0.0
    %2330 = vmatprep.subr.mxu0 0.0
    %2331 = vmatpush1.msra.mxu0 0.0
    %2332 = vmatprep.subr.mxu0 0.0
    %2333 = vmatpush1.msra.mxu0 0.0
    %2334 = vmatprep.subr.mxu0 0.0
    %2335 = vmatpush1.msra.mxu0 0.0
    %2336 = vmatprep.subr.mxu0 0.0
    %2337 = vmatpush1.msra.mxu0 0.0
    %2338 = vmatprep.subr.mxu0 0.0
    %2339 = vmatpush1.msra.mxu0 0.0
    %2340 = vmatprep.subr.mxu0 0.0
    %2341 = vmatpush1.msra.mxu0 0.0
    %2342 = vmatprep.subr.mxu0 0.0
    %2343 = vmatpush1.msra.mxu0 0.0
    %2344 = vmatprep.subr.mxu0 0.0
    %2345 = vmatpush1.msra.mxu0 0.0
    %2346 = vmatprep.subr.mxu0 0.0
    %2347 = vmatpush1.msra.mxu0 0.0
    %2348 = vmatprep.subr.mxu0 0.0
    %2349 = vmatpush1.msra.mxu0 0.0
    %2350 = vmatprep.subr.mxu0 0.0
    %2351 = vmatpush1.msra.mxu0 0.0
    %2352 = vmatprep.subr.mxu0 0.0
    %2353 = vmatpush1.msra.mxu0 0.0
    %2354 = vmatprep.subr.mxu0 0.0
    %2355 = vmatpush1.msra.mxu0 0.0
    %2356 = vmatprep.subr.mxu0 0.0
    %2357 = vmatpush1.msra.mxu0 0.0
    %2358 = vmatprep.subr.mxu0 0.0
    %2359 = vmatpush1.msra.mxu0 0.0
    %2360 = vmatprep.subr.mxu0 0.0
    %2361 = vmatpush1.msra.mxu0 0.0
    %2362 = vmatprep.mubr.f32.mxu0 0.0
    %2363 = vmatmul.mubr.f32.gmra.mrb[0].mxu0 %v2293
    %v2364 = vpop.f32.mrb[0].mxu0
    %v2365 = vadd.f32 0.0, %v2364
    %v2366 = vpop.f32.mrb[0].mxu0
    %2367 = vmatprep.mubr.f32.mxu0 0.0
    %2368 = vmatmul.mubr.f32.gmra.mrb[0].mxu0 %v2296
    %v2369 = vpop.f32.mrb[0].mxu0
    %v2370 = vadd.f32 0.0, %v2369
    %v2371 = vpop.f32.mrb[0].mxu0
    %2372 = vdwg.mxu0
    %v2373 = vadd.f32 %v2142, %v2365
    %v2374 = vadd.f32 %v2143, %v2370
    %v2375 = vld [vmem:[%s21] sm:$0x1]
    %v2377 = vlaneseq
    %v2378 = vshrl.u32 %v2377, 7
    %v2379 = vsub.s32 0, %v2378
    %v2380 = vrot.slane %v2375, %v2379
    %v2382 = vadd.f32 %v2373, %v2380
    %v2383 = vadd.f32 %v2374, %v2380
    %s2384 = scalar_lea.vmem %s22, 3
    %v2385 = vld [vmem:[%s2384] sm:$0x1]
    %s2386 = scalar_lea.vmem %s23, 3
    %v2387 = vld [vmem:[%s2386] sm:$0x1]
    %v2388 = vsel %vm333, %v2382, 0.0
    %2389 = vadd.xlane.f32.xlu0 %v2388
    %v2390 = vpop.xlane.xlu0 %2389
    %v2391 = vsel %vm333, %v2383, 0.0
    %2392 = vadd.xlane.f32.xlu0 %v2391
    %v2393 = vpop.xlane.xlu0 %2392
    %v2394 = vmul.f32 %v2390, %v340
    %v2395 = vmul.f32 %v2393, %v340
    %v2396 = vsub.f32 %v2382, %v2394
    %v2397 = vsub.f32 %v2383, %v2395
    %v2398 = vmul.f32 %v2396, %v2396
    %v2399 = vmul.f32 %v2397, %v2397
    %v2400 = vsel %vm333, %v2398, 0.0
    %2401 = vadd.xlane.f32.xlu0 %v2400
    %v2402 = vpop.xlane.xlu0 %2401
    %v2403 = vsel %vm333, %v2399, 0.0
    %2404 = vadd.xlane.f32.xlu0 %v2403
    %v2405 = vpop.xlane.xlu0 %2404
    %v2406 = vmul.f32 %v2402, %v340
    %v2407 = vmul.f32 %v2405, %v340
    %v2408 = vadd.f32 %v2406, 1e-05
    %v2409 = vadd.f32 %v2407, 1e-05
    %v2410 = vrsqrt.pop %v2408
    %v2411 = vrsqrt.pop %v2409
    %v2412 = vmul.f32 %v2396, %v2410
    %v2413 = vmul.f32 %v2397, %v2411
    %v2415 = vlaneseq
    %v2416 = vshrl.u32 %v2415, 7
    %v2417 = vsub.s32 0, %v2416
    %v2418 = vrot.slane %v2385, %v2417
    %v2420 = vmul.f32 %v2412, %v2418
    %v2421 = vmul.f32 %v2413, %v2418
    %v2423 = vlaneseq
    %v2424 = vshrl.u32 %v2423, 7
    %v2425 = vsub.s32 0, %v2424
    %v2426 = vrot.slane %v2387, %v2425
    %v2428 = vadd.f32 %v2420, %v2426
    %v2429 = vadd.f32 %v2421, %v2426
    %s2430 = scalar_lea.vmem [#allocation13], 32
    %v2431 = vld [vmem:[%s2430] sm:$0xff]
    %v2432 = vld [vmem:[%s2430 + $0x8] sm:$0xff]
    %v2433 = vld [vmem:[%s2430 + $0x10] sm:$0xff]
    %v2434 = vld [vmem:[%s2430 + $0x18] sm:$0xff]
    %s2435 = scalar_lea.vmem [#allocation14], 1
    %v2436 = vld [vmem:[%s2435] sm:$0x1]
    %v2438 = vlaneseq
    %v2439 = vshrl.u32 %v2438, 7
    %v2440 = vsub.s32 0, %v2439
    %v2441 = vrot.slane %v2436, %v2440
    %v2444 = vsel %vm333, %v2428, 0
    %v2447 = vsel %vm333, %v2429, 0
    %2449 = vmatprep.subr.mxu0 0.0
    %2450 = vmatpush1.msra.mxu0 %v2431
    %2451 = vmatprep.subr.mxu0 0.0
    %2452 = vmatpush1.msra.mxu0 %v2432
    %2453 = vmatprep.subr.mxu0 0.0
    %2454 = vmatpush1.msra.mxu0 %v2433
    %2455 = vmatprep.subr.mxu0 0.0
    %2456 = vmatpush1.msra.mxu0 %v2434
    %2457 = vmatprep.subr.mxu0 0.0
    %2458 = vmatpush1.msra.mxu0 0.0
    %2459 = vmatprep.subr.mxu0 0.0
    %2460 = vmatpush1.msra.mxu0 0.0
    %2461 = vmatprep.subr.mxu0 0.0
    %2462 = vmatpush1.msra.mxu0 0.0
    %2463 = vmatprep.subr.mxu0 0.0
    %2464 = vmatpush1.msra.mxu0 0.0
    %2465 = vmatprep.subr.mxu0 0.0
    %2466 = vmatpush1.msra.mxu0 0.0
    %2467 = vmatprep.subr.mxu0 0.0
    %2468 = vmatpush1.msra.mxu0 0.0
    %2469 = vmatprep.subr.mxu0 0.0
    %2470 = vmatpush1.msra.mxu0 0.0
    %2471 = vmatprep.subr.mxu0 0.0
    %2472 = vmatpush1.msra.mxu0 0.0
    %2473 = vmatprep.subr.mxu0 0.0
    %2474 = vmatpush1.msra.mxu0 0.0
    %2475 = vmatprep.subr.mxu0 0.0
    %2476 = vmatpush1.msra.mxu0 0.0
    %2477 = vmatprep.subr.mxu0 0.0
    %2478 = vmatpush1.msra.mxu0 0.0
    %2479 = vmatprep.subr.mxu0 0.0
    %2480 = vmatpush1.msra.mxu0 0.0
    %2481 = vmatprep.subr.mxu0 0.0
    %2482 = vmatpush1.msra.mxu0 0.0
    %2483 = vmatprep.subr.mxu0 0.0
    %2484 = vmatpush1.msra.mxu0 0.0
    %2485 = vmatprep.subr.mxu0 0.0
    %2486 = vmatpush1.msra.mxu0 0.0
    %2487 = vmatprep.subr.mxu0 0.0
    %2488 = vmatpush1.msra.mxu0 0.0
    %2489 = vmatprep.subr.mxu0 0.0
    %2490 = vmatpush1.msra.mxu0 0.0
    %2491 = vmatprep.subr.mxu0 0.0
    %2492 = vmatpush1.msra.mxu0 0.0
    %2493 = vmatprep.subr.mxu0 0.0
    %2494 = vmatpush1.msra.mxu0 0.0
    %2495 = vmatprep.subr.mxu0 0.0
    %2496 = vmatpush1.msra.mxu0 0.0
    %2497 = vmatprep.subr.mxu0 0.0
    %2498 = vmatpush1.msra.mxu0 0.0
    %2499 = vmatprep.subr.mxu0 0.0
    %2500 = vmatpush1.msra.mxu0 0.0
    %2501 = vmatprep.subr.mxu0 0.0
    %2502 = vmatpush1.msra.mxu0 0.0
    %2503 = vmatprep.subr.mxu0 0.0
    %2504 = vmatpush1.msra.mxu0 0.0
    %2505 = vmatprep.subr.mxu0 0.0
    %2506 = vmatpush1.msra.mxu0 0.0
    %2507 = vmatprep.subr.mxu0 0.0
    %2508 = vmatpush1.msra.mxu0 0.0
    %2509 = vmatprep.subr.mxu0 0.0
    %2510 = vmatpush1.msra.mxu0 0.0
    %2511 = vmatprep.subr.mxu0 0.0
    %2512 = vmatpush1.msra.mxu0 0.0
    %2513 = vmatprep.mubr.f32.mxu0 0.0
    %2514 = vmatmul.mubr.f32.gmra.mrb[0].mxu0 %v2444
    %v2515 = vpop.f32.mrb[0].mxu0
    %v2516 = vadd.f32 %v2441, %v2515
    %v2517 = vpop.f32.mrb[0].mxu0
    %2518 = vmatprep.mubr.f32.mxu0 0.0
    %2519 = vmatmul.mubr.f32.gmra.mrb[0].mxu0 %v2447
    %v2520 = vpop.f32.mrb[0].mxu0
    %v2521 = vadd.f32 %v2441, %v2520
    %v2522 = vpop.f32.mrb[0].mxu0
    %2523 = vdwg.mxu0
    %2524 = vmatprep.subr.mxu0 0.0
    %2525 = vmatpush1.msra.mxu0 %v2516
    %2526 = vmatprep.subr.mxu0 0.0
    %2527 = vmatpush1.msra.mxu0 %v2521
    %2528 = vmatprep.subr.mxu0 0.0
    %2529 = vmatpush1.msra.mxu0 0.0
    %2530 = vmatprep.subr.mxu0 0.0
    %2531 = vmatpush1.msra.mxu0 0.0
    %2532 = vmatprep.subr.mxu0 0.0
    %2533 = vmatpush1.msra.mxu0 0.0
    %2534 = vmatprep.subr.mxu0 0.0
    %2535 = vmatpush1.msra.mxu0 0.0
    %2536 = vmatprep.subr.mxu0 0.0
    %2537 = vmatpush1.msra.mxu0 0.0
    %2538 = vmatprep.subr.mxu0 0.0
    %2539 = vmatpush1.msra.mxu0 0.0
    %2540 = vmatprep.subr.mxu0 0.0
    %2541 = vmatpush1.msra.mxu0 0.0
    %2542 = vmatprep.subr.mxu0 0.0
    %2543 = vmatpush1.msra.mxu0 0.0
    %2544 = vmatprep.subr.mxu0 0.0
    %2545 = vmatpush1.msra.mxu0 0.0
    %2546 = vmatprep.subr.mxu0 0.0
    %2547 = vmatpush1.msra.mxu0 0.0
    %2548 = vmatprep.subr.mxu0 0.0
    %2549 = vmatpush1.msra.mxu0 0.0
    %2550 = vmatprep.subr.mxu0 0.0
    %2551 = vmatpush1.msra.mxu0 0.0
    %2552 = vmatprep.subr.mxu0 0.0
    %2553 = vmatpush1.msra.mxu0 0.0
    %2554 = vmatprep.subr.mxu0 0.0
    %2555 = vmatpush1.msra.mxu0 0.0
    %2556 = vmatprep.subr.mxu0 0.0
    %2557 = vmatpush1.msra.mxu0 0.0
    %2558 = vmatprep.subr.mxu0 0.0
    %2559 = vmatpush1.msra.mxu0 0.0
    %2560 = vmatprep.subr.mxu0 0.0
    %2561 = vmatpush1.msra.mxu0 0.0
    %2562 = vmatprep.subr.mxu0 0.0
    %2563 = vmatpush1.msra.mxu0 0.0
    %2564 = vmatprep.subr.mxu0 0.0
    %2565 = vmatpush1.msra.mxu0 0.0
    %2566 = vmatprep.subr.mxu0 0.0
    %2567 = vmatpush1.msra.mxu0 0.0
    %2568 = vmatprep.subr.mxu0 0.0
    %2569 = vmatpush1.msra.mxu0 0.0
    %2570 = vmatprep.subr.mxu0 0.0
    %2571 = vmatpush1.msra.mxu0 0.0
    %2572 = vmatprep.subr.mxu0 0.0
    %2573 = vmatpush1.msra.mxu0 0.0
    %2574 = vmatprep.subr.mxu0 0.0
    %2575 = vmatpush1.msra.mxu0 0.0
    %2576 = vmatprep.subr.mxu0 0.0
    %2577 = vmatpush1.msra.mxu0 0.0
    %2578 = vmatprep.subr.mxu0 0.0
    %2579 = vmatpush1.msra.mxu0 0.0
    %2580 = vmatprep.subr.mxu0 0.0
    %2581 = vmatpush1.msra.mxu0 0.0
    %2582 = vmatprep.subr.mxu0 0.0
    %2583 = vmatpush1.msra.mxu0 0.0
    %2584 = vmatprep.subr.mxu0 0.0
    %2585 = vmatpush1.msra.mxu0 0.0
    %2586 = vmatprep.subr.mxu0 0.0
    %2587 = vmatpush1.msra.mxu0 0.0
    %2588 = vmatprep.mubr.f32.mxu0 0.0
    %2589 = vmatmul.mubr.f32.gmra.mrb[0].mxu0 %v471
    %v2590 = vpop.f32.mrb[0].mxu0
    %v2591 = vadd.f32 0.0, %v2590
    %v2592 = vpop.f32.mrb[0].mxu0
    %2593 = vmatprep.mubr.f32.mxu0 0.0
    %2594 = vmatmul.mubr.f32.gmra.mrb[0].mxu0 %v474
    %v2595 = vpop.f32.mrb[0].mxu0
    %v2596 = vadd.f32 0.0, %v2595
    %v2597 = vpop.f32.mrb[0].mxu0
    %2598 = vmatprep.mubr.f32.mxu0 0.0
    %2599 = vmatmul.mubr.f32.gmra.mrb[0].mxu0 %v477
    %v2600 = vpop.f32.mrb[0].mxu0
    %v2601 = vadd.f32 0.0, %v2600
    %v2602 = vpop.f32.mrb[0].mxu0
    %2603 = vmatprep.mubr.f32.mxu0 0.0
    %2604 = vmatmul.mubr.f32.gmra.mrb[0].mxu0 %v480
    %v2605 = vpop.f32.mrb[0].mxu0
    %v2606 = vadd.f32 0.0, %v2605
    %v2607 = vpop.f32.mrb[0].mxu0
    %2608 = vmatprep.mubr.f32.mxu0 0.0
    %2609 = vmatmul.mubr.f32.gmra.mrb[0].mxu0 %v483
    %v2610 = vpop.f32.mrb[0].mxu0
    %v2611 = vadd.f32 0.0, %v2610
    %v2612 = vpop.f32.mrb[0].mxu0
    %2613 = vmatprep.mubr.f32.mxu0 0.0
    %2614 = vmatmul.mubr.f32.gmra.mrb[0].mxu0 %v486
    %v2615 = vpop.f32.mrb[0].mxu0
    %v2616 = vadd.f32 0.0, %v2615
    %v2617 = vpop.f32.mrb[0].mxu0
    %2618 = vmatprep.mubr.f32.mxu0 0.0
    %2619 = vmatmul.mubr.f32.gmra.mrb[0].mxu0 %v489
    %v2620 = vpop.f32.mrb[0].mxu0
    %v2621 = vadd.f32 0.0, %v2620
    %v2622 = vpop.f32.mrb[0].mxu0
    %2623 = vmatprep.mubr.f32.mxu0 0.0
    %2624 = vmatmul.mubr.f32.gmra.mrb[0].mxu0 %v492
    %v2625 = vpop.f32.mrb[0].mxu0
    %v2626 = vadd.f32 0.0, %v2625
    %v2627 = vpop.f32.mrb[0].mxu0
    %2628 = vdwg.mxu0
    %v2629 = vmul.f32 %v2591, %v608
    %v2630 = vmul.f32 %v2596, %v610
    %v2631 = vmul.f32 %v2601, %v612
    %v2632 = vmul.f32 %v2606, %v614
    %v2633 = vmul.f32 %v2611, %v616
    %v2634 = vmul.f32 %v2616, %v618
    %v2635 = vmul.f32 %v2621, %v620
    %v2636 = vmul.f32 %v2626, %v622
    %2645 = vrot.lane.b32.xlu0 %v2629, 96
    %v2646 = vpop.permute.xlu0 %2645
    %2647 = vrot.lane.b32.xlu0 %v2630, 96
    %v2648 = vpop.permute.xlu0 %2647
    %2649 = vrot.lane.b32.xlu0 %v2631, 96
    %v2650 = vpop.permute.xlu0 %2649
    %2651 = vrot.lane.b32.xlu0 %v2632, 96
    %v2652 = vpop.permute.xlu0 %2651
    %2653 = vrot.lane.b32.xlu0 %v2633, 96
    %v2654 = vpop.permute.xlu0 %2653
    %2655 = vrot.lane.b32.xlu0 %v2634, 96
    %v2656 = vpop.permute.xlu0 %2655
    %2657 = vrot.lane.b32.xlu0 %v2635, 96
    %v2658 = vpop.permute.xlu0 %2657
    %2659 = vrot.lane.b32.xlu0 %v2636, 96
    %v2660 = vpop.permute.xlu0 %2659
    %v2662 = vsel %vm333, %v2591, 0
    %v2665 = vsel %vm333, %v2596, 0
    %v2668 = vsel %vm333, %v2601, 0
    %v2671 = vsel %vm333, %v2606, 0
    %v2674 = vsel %vm333, %v2611, 0
    %v2677 = vsel %vm333, %v2616, 0
    %v2680 = vsel %vm333, %v2621, 0
    %v2683 = vsel %vm333, %v2626, 0
    %v2685 = vsel %vm333, %v2646, 0
    %v2687 = vsel %vm333, %v2648, 0
    %v2689 = vsel %vm333, %v2650, 0
    %v2691 = vsel %vm333, %v2652, 0
    %v2693 = vsel %vm333, %v2654, 0
    %v2695 = vsel %vm333, %v2656, 0
    %v2697 = vsel %vm333, %v2658, 0
    %v2699 = vsel %vm333, %v2660, 0
    %2701 = vmatprep.subr.mxu0 0.0
    %2702 = vmatpush1.xpose.msra.mxu0 %v2685
    %2703 = vmatprep.subr.mxu0 0.0
    %2704 = vmatpush1.xpose.msra.mxu0 %v2687
    %2705 = vmatprep.subr.mxu0 0.0
    %2706 = vmatpush1.xpose.msra.mxu0 %v2689
    %2707 = vmatprep.subr.mxu0 0.0
    %2708 = vmatpush1.xpose.msra.mxu0 %v2691
    %2709 = vmatprep.subr.mxu0 0.0
    %2710 = vmatpush1.xpose.msra.mxu0 %v2693
    %2711 = vmatprep.subr.mxu0 0.0
    %2712 = vmatpush1.xpose.msra.mxu0 %v2695
    %2713 = vmatprep.subr.mxu0 0.0
    %2714 = vmatpush1.xpose.msra.mxu0 %v2697
    %2715 = vmatprep.subr.mxu0 0.0
    %2716 = vmatpush1.xpose.msra.mxu0 %v2699
    %2717 = vmatprep.subr.mxu0 0.0
    %2718 = vmatpush1.xpose.msra.mxu0 0.0
    %2719 = vmatprep.subr.mxu0 0.0
    %2720 = vmatpush1.xpose.msra.mxu0 0.0
    %2721 = vmatprep.subr.mxu0 0.0
    %2722 = vmatpush1.xpose.msra.mxu0 0.0
    %2723 = vmatprep.subr.mxu0 0.0
    %2724 = vmatpush1.xpose.msra.mxu0 0.0
    %2725 = vmatprep.subr.mxu0 0.0
    %2726 = vmatpush1.xpose.msra.mxu0 0.0
    %2727 = vmatprep.subr.mxu0 0.0
    %2728 = vmatpush1.xpose.msra.mxu0 0.0
    %2729 = vmatprep.subr.mxu0 0.0
    %2730 = vmatpush1.xpose.msra.mxu0 0.0
    %2731 = vmatprep.subr.mxu0 0.0
    %2732 = vmatpush1.xpose.msra.mxu0 0.0
    %2733 = vmatprep.subr.mxu0 0.0
    %2734 = vmatpush1.xpose.msra.mxu0 0.0
    %2735 = vmatprep.subr.mxu0 0.0
    %2736 = vmatpush1.xpose.msra.mxu0 0.0
    %2737 = vmatprep.subr.mxu0 0.0
    %2738 = vmatpush1.xpose.msra.mxu0 0.0
    %2739 = vmatprep.subr.mxu0 0.0
    %2740 = vmatpush1.xpose.msra.mxu0 0.0
    %2741 = vmatprep.subr.mxu0 0.0
    %2742 = vmatpush1.xpose.msra.mxu0 0.0
    %2743 = vmatprep.subr.mxu0 0.0
    %2744 = vmatpush1.xpose.msra.mxu0 0.0
    %2745 = vmatprep.subr.mxu0 0.0
    %2746 = vmatpush1.xpose.msra.mxu0 0.0
    %2747 = vmatprep.subr.mxu0 0.0
    %2748 = vmatpush1.xpose.msra.mxu0 0.0
    %2749 = vmatprep.subr.mxu0 0.0
    %2750 = vmatpush1.xpose.msra.mxu0 0.0
    %2751 = vmatprep.subr.mxu0 0.0
    %2752 = vmatpush1.xpose.msra.mxu0 0.0
    %2753 = vmatprep.subr.mxu0 0.0
    %2754 = vmatpush1.xpose.msra.mxu0 0.0
    %2755 = vmatprep.subr.mxu0 0.0
    %2756 = vmatpush1.xpose.msra.mxu0 0.0
    %2757 = vmatprep.subr.mxu0 0.0
    %2758 = vmatpush1.xpose.msra.mxu0 0.0
    %2759 = vmatprep.subr.mxu0 0.0
    %2760 = vmatpush1.xpose.msra.mxu0 0.0
    %2761 = vmatprep.subr.mxu0 0.0
    %2762 = vmatpush1.xpose.msra.mxu0 0.0
    %2763 = vmatprep.subr.mxu0 0.0
    %2764 = vmatpush1.xpose.msra.mxu0 0.0
    %2765 = vmatprep.mubr.f32.mxu0 0.0
    %2766 = vmatmul.mubr.f32.gmra.mrb[0].mxu0 %v2662
    %v2767 = vpop.f32.mrb[0].mxu0
    %v2768 = vadd.f32 %v297, %v2767
    %v2769 = vpop.f32.mrb[0].mxu0
    %2770 = vmatprep.mubr.f32.mxu0 0.0
    %2771 = vmatmul.mubr.f32.gmra.mrb[0].mxu0 %v2665
    %v2772 = vpop.f32.mrb[0].mxu0
    %v2773 = vadd.f32 %v298, %v2772
    %v2774 = vpop.f32.mrb[0].mxu0
    %2775 = vmatprep.mubr.f32.mxu0 0.0
    %2776 = vmatmul.mubr.f32.gmra.mrb[0].mxu0 %v2668
    %v2777 = vpop.f32.mrb[0].mxu0
    %v2778 = vadd.f32 %v299, %v2777
    %v2779 = vpop.f32.mrb[0].mxu0
    %2780 = vmatprep.mubr.f32.mxu0 0.0
    %2781 = vmatmul.mubr.f32.gmra.mrb[0].mxu0 %v2671
    %v2782 = vpop.f32.mrb[0].mxu0
    %v2783 = vadd.f32 %v300, %v2782
    %v2784 = vpop.f32.mrb[0].mxu0
    %2785 = vmatprep.mubr.f32.mxu0 0.0
    %2786 = vmatmul.mubr.f32.gmra.mrb[0].mxu0 %v2674
    %v2787 = vpop.f32.mrb[0].mxu0
    %v2788 = vadd.f32 %v301, %v2787
    %v2789 = vpop.f32.mrb[0].mxu0
    %2790 = vmatprep.mubr.f32.mxu0 0.0
    %2791 = vmatmul.mubr.f32.gmra.mrb[0].mxu0 %v2677
    %v2792 = vpop.f32.mrb[0].mxu0
    %v2793 = vadd.f32 %v302, %v2792
    %v2794 = vpop.f32.mrb[0].mxu0
    %2795 = vmatprep.mubr.f32.mxu0 0.0
    %2796 = vmatmul.mubr.f32.gmra.mrb[0].mxu0 %v2680
    %v2797 = vpop.f32.mrb[0].mxu0
    %v2798 = vadd.f32 %v303, %v2797
    %v2799 = vpop.f32.mrb[0].mxu0
    %2800 = vmatprep.mubr.f32.mxu0 0.0
    %2801 = vmatmul.mubr.f32.gmra.mrb[0].mxu0 %v2683
    %v2802 = vpop.f32.mrb[0].mxu0
    %v2803 = vadd.f32 %v304, %v2802
    %v2804 = vpop.f32.mrb[0].mxu0
    %2805 = vdwg.mxu0
    %v2806 = vsel %vm808, %v2768, -inf
    %2807 = vmax.xlane.f32.xlu0 %v2806
    %v2808 = vpop.xlane.xlu0 %2807
    %v2809 = vsel %vm808, %v2773, -inf
    %2810 = vmax.xlane.f32.xlu0 %v2809
    %v2811 = vpop.xlane.xlu0 %2810
    %v2812 = vsel %vm808, %v2778, -inf
    %2813 = vmax.xlane.f32.xlu0 %v2812
    %v2814 = vpop.xlane.xlu0 %2813
    %v2815 = vsel %vm808, %v2783, -inf
    %2816 = vmax.xlane.f32.xlu0 %v2815
    %v2817 = vpop.xlane.xlu0 %2816
    %v2818 = vsel %vm808, %v2788, -inf
    %2819 = vmax.xlane.f32.xlu0 %v2818
    %v2820 = vpop.xlane.xlu0 %2819
    %v2821 = vsel %vm808, %v2793, -inf
    %2822 = vmax.xlane.f32.xlu0 %v2821
    %v2823 = vpop.xlane.xlu0 %2822
    %v2824 = vsel %vm808, %v2798, -inf
    %2825 = vmax.xlane.f32.xlu0 %v2824
    %v2826 = vpop.xlane.xlu0 %2825
    %v2827 = vsel %vm808, %v2803, -inf
    %2828 = vmax.xlane.f32.xlu0 %v2827
    %v2829 = vpop.xlane.xlu0 %2828
    %v2830 = vsub.f32 %v2768, %v2808
    %v2831 = vsub.f32 %v2773, %v2811
    %v2832 = vsub.f32 %v2778, %v2814
    %v2833 = vsub.f32 %v2783, %v2817
    %v2834 = vsub.f32 %v2788, %v2820
    %v2835 = vsub.f32 %v2793, %v2823
    %v2836 = vsub.f32 %v2798, %v2826
    %v2837 = vsub.f32 %v2803, %v2829
    %v2838 = vmul.f32 %v2830, 1.442695
    %v2839 = vpow.pop %v2838
    %v2840 = vmul.f32 %v2831, 1.442695
    %v2841 = vpow.pop %v2840
    %v2842 = vmul.f32 %v2832, 1.442695
    %v2843 = vpow.pop %v2842
    %v2844 = vmul.f32 %v2833, 1.442695
    %v2845 = vpow.pop %v2844
    %v2846 = vmul.f32 %v2834, 1.442695
    %v2847 = vpow.pop %v2846
    %v2848 = vmul.f32 %v2835, 1.442695
    %v2849 = vpow.pop %v2848
    %v2850 = vmul.f32 %v2836, 1.442695
    %v2851 = vpow.pop %v2850
    %v2852 = vmul.f32 %v2837, 1.442695
    %v2853 = vpow.pop %v2852
    %v2854 = vsel %vm808, %v2839, 0.0
    %2855 = vadd.xlane.f32.xlu0 %v2854
    %v2856 = vpop.xlane.xlu0 %2855
    %v2857 = vsel %vm808, %v2841, 0.0
    %2858 = vadd.xlane.f32.xlu0 %v2857
    %v2859 = vpop.xlane.xlu0 %2858
    %v2860 = vsel %vm808, %v2843, 0.0
    %2861 = vadd.xlane.f32.xlu0 %v2860
    %v2862 = vpop.xlane.xlu0 %2861
    %v2863 = vsel %vm808, %v2845, 0.0
    %2864 = vadd.xlane.f32.xlu0 %v2863
    %v2865 = vpop.xlane.xlu0 %2864
    %v2866 = vsel %vm808, %v2847, 0.0
    %2867 = vadd.xlane.f32.xlu0 %v2866
    %v2868 = vpop.xlane.xlu0 %2867
    %v2869 = vsel %vm808, %v2849, 0.0
    %2870 = vadd.xlane.f32.xlu0 %v2869
    %v2871 = vpop.xlane.xlu0 %2870
    %v2872 = vsel %vm808, %v2851, 0.0
    %2873 = vadd.xlane.f32.xlu0 %v2872
    %v2874 = vpop.xlane.xlu0 %2873
    %v2875 = vsel %vm808, %v2853, 0.0
    %2876 = vadd.xlane.f32.xlu0 %v2875
    %v2877 = vpop.xlane.xlu0 %2876
    %v2878 = vrcp.pop %v2856
    %v2879 = vrcp.pop %v2859
    %v2880 = vrcp.pop %v2862
    %v2881 = vrcp.pop %v2865
    %v2882 = vrcp.pop %v2868
    %v2883 = vrcp.pop %v2871
    %v2884 = vrcp.pop %v2874
    %v2885 = vrcp.pop %v2877
    %v2886 = vmul.f32 %v2839, %v2878
    %v2887 = vmul.f32 %v2841, %v2879
    %v2888 = vmul.f32 %v2843, %v2880
    %v2889 = vmul.f32 %v2845, %v2881
    %v2890 = vmul.f32 %v2847, %v2882
    %v2891 = vmul.f32 %v2849, %v2883
    %v2892 = vmul.f32 %v2851, %v2884
    %v2893 = vmul.f32 %v2853, %v2885
    %2894 = vmatprep.subr.mxu0 0.0
    %2895 = vmatpush1.msra.mxu0 %v2886
    %2896 = vmatprep.subr.mxu0 0.0
    %2897 = vmatpush1.msra.mxu0 %v2887
    %2898 = vmatprep.subr.mxu0 0.0
    %2899 = vmatpush1.msra.mxu0 %v2888
    %2900 = vmatprep.subr.mxu0 0.0
    %2901 = vmatpush1.msra.mxu0 %v2889
    %2902 = vmatprep.subr.mxu0 0.0
    %2903 = vmatpush1.msra.mxu0 %v2890
    %2904 = vmatprep.subr.mxu0 0.0
    %2905 = vmatpush1.msra.mxu0 %v2891
    %2906 = vmatprep.subr.mxu0 0.0
    %2907 = vmatpush1.msra.mxu0 %v2892
    %2908 = vmatprep.subr.mxu0 0.0
    %2909 = vmatpush1.msra.mxu0 %v2893
    %2910 = vmatprep.subr.mxu0 0.0
    %2911 = vmatpush1.msra.mxu0 0.0
    %2912 = vmatprep.subr.mxu0 0.0
    %2913 = vmatpush1.msra.mxu0 0.0
    %2914 = vmatprep.subr.mxu0 0.0
    %2915 = vmatpush1.msra.mxu0 0.0
    %2916 = vmatprep.subr.mxu0 0.0
    %2917 = vmatpush1.msra.mxu0 0.0
    %2918 = vmatprep.subr.mxu0 0.0
    %2919 = vmatpush1.msra.mxu0 0.0
    %2920 = vmatprep.subr.mxu0 0.0
    %2921 = vmatpush1.msra.mxu0 0.0
    %2922 = vmatprep.subr.mxu0 0.0
    %2923 = vmatpush1.msra.mxu0 0.0
    %2924 = vmatprep.subr.mxu0 0.0
    %2925 = vmatpush1.msra.mxu0 0.0
    %2926 = vmatprep.subr.mxu0 0.0
    %2927 = vmatpush1.msra.mxu0 0.0
    %2928 = vmatprep.subr.mxu0 0.0
    %2929 = vmatpush1.msra.mxu0 0.0
    %2930 = vmatprep.subr.mxu0 0.0
    %2931 = vmatpush1.msra.mxu0 0.0
    %2932 = vmatprep.subr.mxu0 0.0
    %2933 = vmatpush1.msra.mxu0 0.0
    %2934 = vmatprep.subr.mxu0 0.0
    %2935 = vmatpush1.msra.mxu0 0.0
    %2936 = vmatprep.subr.mxu0 0.0
    %2937 = vmatpush1.msra.mxu0 0.0
    %2938 = vmatprep.subr.mxu0 0.0
    %2939 = vmatpush1.msra.mxu0 0.0
    %2940 = vmatprep.subr.mxu0 0.0
    %2941 = vmatpush1.msra.mxu0 0.0
    %2942 = vmatprep.subr.mxu0 0.0
    %2943 = vmatpush1.msra.mxu0 0.0
    %2944 = vmatprep.subr.mxu0 0.0
    %2945 = vmatpush1.msra.mxu0 0.0
    %2946 = vmatprep.subr.mxu0 0.0
    %2947 = vmatpush1.msra.mxu0 0.0
    %2948 = vmatprep.subr.mxu0 0.0
    %2949 = vmatpush1.msra.mxu0 0.0
    %2950 = vmatprep.subr.mxu0 0.0
    %2951 = vmatpush1.msra.mxu0 0.0
    %2952 = vmatprep.subr.mxu0 0.0
    %2953 = vmatpush1.msra.mxu0 0.0
    %2954 = vmatprep.subr.mxu0 0.0
    %2955 = vmatpush1.msra.mxu0 0.0
    %2956 = vmatprep.subr.mxu0 0.0
    %2957 = vmatpush1.msra.mxu0 0.0
    %2958 = vmatprep.mubr.f32.mxu0 0.0
    %2959 = vmatmul.mubr.f32.gmra.mrb[0].mxu0 %v898
    %v2960 = vpop.f32.mrb[0].mxu0
    %v2961 = vadd.f32 0.0, %v2960
    %v2962 = vpop.f32.mrb[0].mxu0
    %2963 = vmatprep.mubr.f32.mxu0 0.0
    %2964 = vmatmul.mubr.f32.gmra.mrb[0].mxu0 %v901
    %v2965 = vpop.f32.mrb[0].mxu0
    %v2966 = vadd.f32 0.0, %v2965
    %v2967 = vpop.f32.mrb[0].mxu0
    %2968 = vdwg.mxu0
    %2969 = vrot.lane.b32.xlu0 %v2629, 64
    %v2970 = vpop.permute.xlu0 %2969
    %2971 = vrot.lane.b32.xlu0 %v2630, 64
    %v2972 = vpop.permute.xlu0 %2971
    %2973 = vrot.lane.b32.xlu0 %v2631, 64
    %v2974 = vpop.permute.xlu0 %2973
    %2975 = vrot.lane.b32.xlu0 %v2632, 64
    %v2976 = vpop.permute.xlu0 %2975
    %2977 = vrot.lane.b32.xlu0 %v2633, 64
    %v2978 = vpop.permute.xlu0 %2977
    %2979 = vrot.lane.b32.xlu0 %v2634, 64
    %v2980 = vpop.permute.xlu0 %2979
    %2981 = vrot.lane.b32.xlu0 %v2635, 64
    %v2982 = vpop.permute.xlu0 %2981
    %2983 = vrot.lane.b32.xlu0 %v2636, 64
    %v2984 = vpop.permute.xlu0 %2983
    %v2994 = vsel %vm808, %v2961, 0
    %v2997 = vsel %vm808, %v2966, 0
    %2999 = vmatprep.subr.mxu0 0.0
    %3000 = vmatpush1.msra.mxu0 %v2970
    %3001 = vmatprep.subr.mxu0 0.0
    %3002 = vmatpush1.msra.mxu0 %v2972
    %3003 = vmatprep.subr.mxu0 0.0
    %3004 = vmatpush1.msra.mxu0 %v2974
    %3005 = vmatprep.subr.mxu0 0.0
    %3006 = vmatpush1.msra.mxu0 %v2976
    %3007 = vmatprep.subr.mxu0 0.0
    %3008 = vmatpush1.msra.mxu0 %v2978
    %3009 = vmatprep.subr.mxu0 0.0
    %3010 = vmatpush1.msra.mxu0 %v2980
    %3011 = vmatprep.subr.mxu0 0.0
    %3012 = vmatpush1.msra.mxu0 %v2982
    %3013 = vmatprep.subr.mxu0 0.0
    %3014 = vmatpush1.msra.mxu0 %v2984
    %3015 = vmatprep.subr.mxu0 0.0
    %3016 = vmatpush1.msra.mxu0 0.0
    %3017 = vmatprep.subr.mxu0 0.0
    %3018 = vmatpush1.msra.mxu0 0.0
    %3019 = vmatprep.subr.mxu0 0.0
    %3020 = vmatpush1.msra.mxu0 0.0
    %3021 = vmatprep.subr.mxu0 0.0
    %3022 = vmatpush1.msra.mxu0 0.0
    %3023 = vmatprep.subr.mxu0 0.0
    %3024 = vmatpush1.msra.mxu0 0.0
    %3025 = vmatprep.subr.mxu0 0.0
    %3026 = vmatpush1.msra.mxu0 0.0
    %3027 = vmatprep.subr.mxu0 0.0
    %3028 = vmatpush1.msra.mxu0 0.0
    %3029 = vmatprep.subr.mxu0 0.0
    %3030 = vmatpush1.msra.mxu0 0.0
    %3031 = vmatprep.subr.mxu0 0.0
    %3032 = vmatpush1.msra.mxu0 0.0
    %3033 = vmatprep.subr.mxu0 0.0
    %3034 = vmatpush1.msra.mxu0 0.0
    %3035 = vmatprep.subr.mxu0 0.0
    %3036 = vmatpush1.msra.mxu0 0.0
    %3037 = vmatprep.subr.mxu0 0.0
    %3038 = vmatpush1.msra.mxu0 0.0
    %3039 = vmatprep.subr.mxu0 0.0
    %3040 = vmatpush1.msra.mxu0 0.0
    %3041 = vmatprep.subr.mxu0 0.0
    %3042 = vmatpush1.msra.mxu0 0.0
    %3043 = vmatprep.subr.mxu0 0.0
    %3044 = vmatpush1.msra.mxu0 0.0
    %3045 = vmatprep.subr.mxu0 0.0
    %3046 = vmatpush1.msra.mxu0 0.0
    %3047 = vmatprep.subr.mxu0 0.0
    %3048 = vmatpush1.msra.mxu0 0.0
    %3049 = vmatprep.subr.mxu0 0.0
    %3050 = vmatpush1.msra.mxu0 0.0
    %3051 = vmatprep.subr.mxu0 0.0
    %3052 = vmatpush1.msra.mxu0 0.0
    %3053 = vmatprep.subr.mxu0 0.0
    %3054 = vmatpush1.msra.mxu0 0.0
    %3055 = vmatprep.subr.mxu0 0.0
    %3056 = vmatpush1.msra.mxu0 0.0
    %3057 = vmatprep.subr.mxu0 0.0
    %3058 = vmatpush1.msra.mxu0 0.0
    %3059 = vmatprep.subr.mxu0 0.0
    %3060 = vmatpush1.msra.mxu0 0.0
    %3061 = vmatprep.subr.mxu0 0.0
    %3062 = vmatpush1.msra.mxu0 0.0
    %3063 = vmatprep.mubr.f32.mxu0 0.0
    %3064 = vmatmul.mubr.f32.gmra.mrb[0].mxu0 %v2994
    %v3065 = vpop.f32.mrb[0].mxu0
    %v3066 = vadd.f32 0.0, %v3065
    %v3067 = vpop.f32.mrb[0].mxu0
    %3068 = vmatprep.mubr.f32.mxu0 0.0
    %3069 = vmatmul.mubr.f32.gmra.mrb[0].mxu0 %v2997
    %v3070 = vpop.f32.mrb[0].mxu0
    %v3071 = vadd.f32 0.0, %v3070
    %v3072 = vpop.f32.mrb[0].mxu0
    %3073 = vdwg.mxu0
    %s3074 = scalar_lea.vmem [#allocation16], 32
    %v3075 = vld [vmem:[%s3074] sm:$0xff]
    %v3076 = vld [vmem:[%s3074 + $0x8] sm:$0xff]
    %v3077 = vld [vmem:[%s3074 + $0x10] sm:$0xff]
    %v3078 = vld [vmem:[%s3074 + $0x18] sm:$0xff]
    %v3080 = vsel %vm333, %v3066, 0
    %v3083 = vsel %vm333, %v3071, 0
    %3085 = vmatprep.subr.mxu0 0.0
    %3086 = vmatpush1.msra.mxu0 %v3075
    %3087 = vmatprep.subr.mxu0 0.0
    %3088 = vmatpush1.msra.mxu0 %v3076
    %3089 = vmatprep.subr.mxu0 0.0
    %3090 = vmatpush1.msra.mxu0 %v3077
    %3091 = vmatprep.subr.mxu0 0.0
    %3092 = vmatpush1.msra.mxu0 %v3078
    %3093 = vmatprep.subr.mxu0 0.0
    %3094 = vmatpush1.msra.mxu0 0.0
    %3095 = vmatprep.subr.mxu0 0.0
    %3096 = vmatpush1.msra.mxu0 0.0
    %3097 = vmatprep.subr.mxu0 0.0
    %3098 = vmatpush1.msra.mxu0 0.0
    %3099 = vmatprep.subr.mxu0 0.0
    %3100 = vmatpush1.msra.mxu0 0.0
    %3101 = vmatprep.subr.mxu0 0.0
    %3102 = vmatpush1.msra.mxu0 0.0
    %3103 = vmatprep.subr.mxu0 0.0
    %3104 = vmatpush1.msra.mxu0 0.0
    %3105 = vmatprep.subr.mxu0 0.0
    %3106 = vmatpush1.msra.mxu0 0.0
    %3107 = vmatprep.subr.mxu0 0.0
    %3108 = vmatpush1.msra.mxu0 0.0
    %3109 = vmatprep.subr.mxu0 0.0
    %3110 = vmatpush1.msra.mxu0 0.0
    %3111 = vmatprep.subr.mxu0 0.0
    %3112 = vmatpush1.msra.mxu0 0.0
    %3113 = vmatprep.subr.mxu0 0.0
    %3114 = vmatpush1.msra.mxu0 0.0
    %3115 = vmatprep.subr.mxu0 0.0
    %3116 = vmatpush1.msra.mxu0 0.0
    %3117 = vmatprep.subr.mxu0 0.0
    %3118 = vmatpush1.msra.mxu0 0.0
    %3119 = vmatprep.subr.mxu0 0.0
    %3120 = vmatpush1.msra.mxu0 0.0
    %3121 = vmatprep.subr.mxu0 0.0
    %3122 = vmatpush1.msra.mxu0 0.0
    %3123 = vmatprep.subr.mxu0 0.0
    %3124 = vmatpush1.msra.mxu0 0.0
    %3125 = vmatprep.subr.mxu0 0.0
    %3126 = vmatpush1.msra.mxu0 0.0
    %3127 = vmatprep.subr.mxu0 0.0
    %3128 = vmatpush1.msra.mxu0 0.0
    %3129 = vmatprep.subr.mxu0 0.0
    %3130 = vmatpush1.msra.mxu0 0.0
    %3131 = vmatprep.subr.mxu0 0.0
    %3132 = vmatpush1.msra.mxu0 0.0
    %3133 = vmatprep.subr.mxu0 0.0
    %3134 = vmatpush1.msra.mxu0 0.0
    %3135 = vmatprep.subr.mxu0 0.0
    %3136 = vmatpush1.msra.mxu0 0.0
    %3137 = vmatprep.subr.mxu0 0.0
    %3138 = vmatpush1.msra.mxu0 0.0
    %3139 = vmatprep.subr.mxu0 0.0
    %3140 = vmatpush1.msra.mxu0 0.0
    %3141 = vmatprep.subr.mxu0 0.0
    %3142 = vmatpush1.msra.mxu0 0.0
    %3143 = vmatprep.subr.mxu0 0.0
    %3144 = vmatpush1.msra.mxu0 0.0
    %3145 = vmatprep.subr.mxu0 0.0
    %3146 = vmatpush1.msra.mxu0 0.0
    %3147 = vmatprep.subr.mxu0 0.0
    %3148 = vmatpush1.msra.mxu0 0.0
    %3149 = vmatprep.mubr.f32.mxu0 0.0
    %3150 = vmatmul.mubr.f32.gmra.mrb[0].mxu0 %v3080
    %v3151 = vpop.f32.mrb[0].mxu0
    %v3152 = vadd.f32 0.0, %v3151
    %v3153 = vpop.f32.mrb[0].mxu0
    %3154 = vmatprep.mubr.f32.mxu0 0.0
    %3155 = vmatmul.mubr.f32.gmra.mrb[0].mxu0 %v3083
    %v3156 = vpop.f32.mrb[0].mxu0
    %v3157 = vadd.f32 0.0, %v3156
    %v3158 = vpop.f32.mrb[0].mxu0
    %3159 = vdwg.mxu0
    %v3160 = vadd.f32 %v2382, %v3152
    %v3161 = vadd.f32 %v2383, %v3157
    %s3162 = scalar_lea.vmem [#allocation17], 1
    %v3163 = vld [vmem:[%s3162] sm:$0x1]
    %v3165 = vlaneseq
    %v3166 = vshrl.u32 %v3165, 7
    %v3167 = vsub.s32 0, %v3166
    %v3168 = vrot.slane %v3163, %v3167
    %v3170 = vadd.f32 %v3160, %v3168
    %v3171 = vadd.f32 %v3161, %v3168
    %s3172 = scalar_lea.vmem %s22, 4
    %v3173 = vld [vmem:[%s3172] sm:$0x1]
    %s3174 = scalar_lea.vmem %s23, 4
    %v3175 = vld [vmem:[%s3174] sm:$0x1]
    %v3176 = vsel %vm333, %v3170, 0.0
    %3177 = vadd.xlane.f32.xlu0 %v3176
    %v3178 = vpop.xlane.xlu0 %3177
    %v3179 = vsel %vm333, %v3171, 0.0
    %3180 = vadd.xlane.f32.xlu0 %v3179
    %v3181 = vpop.xlane.xlu0 %3180
    %v3182 = vmul.f32 %v3178, %v340
    %v3183 = vmul.f32 %v3181, %v340
    %v3184 = vsub.f32 %v3170, %v3182
    %v3185 = vsub.f32 %v3171, %v3183
    %v3186 = vmul.f32 %v3184, %v3184
    %v3187 = vmul.f32 %v3185, %v3185
    %v3188 = vsel %vm333, %v3186, 0.0
    %3189 = vadd.xlane.f32.xlu0 %v3188
    %v3190 = vpop.xlane.xlu0 %3189
    %v3191 = vsel %vm333, %v3187, 0.0
    %3192 = vadd.xlane.f32.xlu0 %v3191
    %v3193 = vpop.xlane.xlu0 %3192
    %v3194 = vmul.f32 %v3190, %v340
    %v3195 = vmul.f32 %v3193, %v340
    %v3196 = vadd.f32 %v3194, 1e-05
    %v3197 = vadd.f32 %v3195, 1e-05
    %v3198 = vrsqrt.pop %v3196
    %v3199 = vrsqrt.pop %v3197
    %v3200 = vmul.f32 %v3184, %v3198
    %v3201 = vmul.f32 %v3185, %v3199
    %v3203 = vlaneseq
    %v3204 = vshrl.u32 %v3203, 7
    %v3205 = vsub.s32 0, %v3204
    %v3206 = vrot.slane %v3173, %v3205
    %v3208 = vmul.f32 %v3200, %v3206
    %v3209 = vmul.f32 %v3201, %v3206
    %v3211 = vlaneseq
    %v3212 = vshrl.u32 %v3211, 7
    %v3213 = vsub.s32 0, %v3212
    %v3214 = vrot.slane %v3175, %v3213
    %v3216 = vadd.f32 %v3208, %v3214
    %v3217 = vadd.f32 %v3209, %v3214
    %s3218 = scalar_lea.vmem [#allocation19], 32
    %v3219 = vld [vmem:[%s3218] sm:$0xff]
    %v3220 = vld [vmem:[%s3218 + $0x8] sm:$0xff]
    %v3221 = vld [vmem:[%s3218 + $0x10] sm:$0xff]
    %v3222 = vld [vmem:[%s3218 + $0x18] sm:$0xff]
    %s3223 = scalar_lea.vmem [#allocation20], 1
    %v3224 = vld [vmem:[%s3223] sm:$0x1]
    %v3226 = vlaneseq
    %v3227 = vshrl.u32 %v3226, 7
    %v3228 = vsub.s32 0, %v3227
    %v3229 = vrot.slane %v3224, %v3228
    %v3232 = vsel %vm333, %v3216, 0
    %v3235 = vsel %vm333, %v3217, 0
    %3237 = vmatprep.subr.mxu0 0.0
    %3238 = vmatpush1.msra.mxu0 %v3219
    %3239 = vmatprep.subr.mxu0 0.0
    %3240 = vmatpush1.msra.mxu0 %v3220
    %3241 = vmatprep.subr.mxu0 0.0
    %3242 = vmatpush1.msra.mxu0 %v3221
    %3243 = vmatprep.subr.mxu0 0.0
    %3244 = vmatpush1.msra.mxu0 %v3222
    %3245 = vmatprep.subr.mxu0 0.0
    %3246 = vmatpush1.msra.mxu0 0.0
    %3247 = vmatprep.subr.mxu0 0.0
    %3248 = vmatpush1.msra.mxu0 0.0
    %3249 = vmatprep.subr.mxu0 0.0
    %3250 = vmatpush1.msra.mxu0 0.0
    %3251 = vmatprep.subr.mxu0 0.0
    %3252 = vmatpush1.msra.mxu0 0.0
    %3253 = vmatprep.subr.mxu0 0.0
    %3254 = vmatpush1.msra.mxu0 0.0
    %3255 = vmatprep.subr.mxu0 0.0
    %3256 = vmatpush1.msra.mxu0 0.0
    %3257 = vmatprep.subr.mxu0 0.0
    %3258 = vmatpush1.msra.mxu0 0.0
    %3259 = vmatprep.subr.mxu0 0.0
    %3260 = vmatpush1.msra.mxu0 0.0
    %3261 = vmatprep.subr.mxu0 0.0
    %3262 = vmatpush1.msra.mxu0 0.0
    %3263 = vmatprep.subr.mxu0 0.0
    %3264 = vmatpush1.msra.mxu0 0.0
    %3265 = vmatprep.subr.mxu0 0.0
    %3266 = vmatpush1.msra.mxu0 0.0
    %3267 = vmatprep.subr.mxu0 0.0
    %3268 = vmatpush1.msra.mxu0 0.0
    %3269 = vmatprep.subr.mxu0 0.0
    %3270 = vmatpush1.msra.mxu0 0.0
    %3271 = vmatprep.subr.mxu0 0.0
    %3272 = vmatpush1.msra.mxu0 0.0
    %3273 = vmatprep.subr.mxu0 0.0
    %3274 = vmatpush1.msra.mxu0 0.0
    %3275 = vmatprep.subr.mxu0 0.0
    %3276 = vmatpush1.msra.mxu0 0.0
    %3277 = vmatprep.subr.mxu0 0.0
    %3278 = vmatpush1.msra.mxu0 0.0
    %3279 = vmatprep.subr.mxu0 0.0
    %3280 = vmatpush1.msra.mxu0 0.0
    %3281 = vmatprep.subr.mxu0 0.0
    %3282 = vmatpush1.msra.mxu0 0.0
    %3283 = vmatprep.subr.mxu0 0.0
    %3284 = vmatpush1.msra.mxu0 0.0
    %3285 = vmatprep.subr.mxu0 0.0
    %3286 = vmatpush1.msra.mxu0 0.0
    %3287 = vmatprep.subr.mxu0 0.0
    %3288 = vmatpush1.msra.mxu0 0.0
    %3289 = vmatprep.subr.mxu0 0.0
    %3290 = vmatpush1.msra.mxu0 0.0
    %3291 = vmatprep.subr.mxu0 0.0
    %3292 = vmatpush1.msra.mxu0 0.0
    %3293 = vmatprep.subr.mxu0 0.0
    %3294 = vmatpush1.msra.mxu0 0.0
    %3295 = vmatprep.subr.mxu0 0.0
    %3296 = vmatpush1.msra.mxu0 0.0
    %3297 = vmatprep.subr.mxu0 0.0
    %3298 = vmatpush1.msra.mxu0 0.0
    %3299 = vmatprep.subr.mxu0 0.0
    %3300 = vmatpush1.msra.mxu0 0.0
    %3301 = vmatprep.mubr.f32.mxu0 0.0
    %3302 = vmatmul.mubr.f32.gmra.mrb[0].mxu0 %v3232
    %v3303 = vpop.f32.mrb[0].mxu0
    %v3304 = vadd.f32 %v3229, %v3303
    %v3305 = vpop.f32.mrb[0].mxu0
    %3306 = vmatprep.mubr.f32.mxu0 0.0
    %3307 = vmatmul.mubr.f32.gmra.mrb[0].mxu0 %v3235
    %v3308 = vpop.f32.mrb[0].mxu0
    %v3309 = vadd.f32 %v3229, %v3308
    %v3310 = vpop.f32.mrb[0].mxu0
    %3311 = vdwg.mxu0
    %s3312 = scalar_lea.vmem [#allocation22], 32
    %v3313 = vld [vmem:[%s3312] sm:$0xff]
    %v3314 = vld [vmem:[%s3312 + $0x8] sm:$0xff]
    %v3315 = vld [vmem:[%s3312 + $0x10] sm:$0xff]
    %v3316 = vld [vmem:[%s3312 + $0x18] sm:$0xff]
    %s3317 = scalar_lea.vmem %s15, 1
    %v3318 = vld [vmem:[%s3317] sm:$0x1]
    %v3320 = vlaneseq
    %v3321 = vshrl.u32 %v3320, 7
    %v3322 = vsub.s32 0, %v3321
    %v3323 = vrot.slane %v3318, %v3322
    %3325 = vmatprep.subr.mxu0 0.0
    %3326 = vmatpush1.msra.mxu0 %v3313
    %3327 = vmatprep.subr.mxu0 0.0
    %3328 = vmatpush1.msra.mxu0 %v3314
    %3329 = vmatprep.subr.mxu0 0.0
    %3330 = vmatpush1.msra.mxu0 %v3315
    %3331 = vmatprep.subr.mxu0 0.0
    %3332 = vmatpush1.msra.mxu0 %v3316
    %3333 = vmatprep.subr.mxu0 0.0
    %3334 = vmatpush1.msra.mxu0 0.0
    %3335 = vmatprep.subr.mxu0 0.0
    %3336 = vmatpush1.msra.mxu0 0.0
    %3337 = vmatprep.subr.mxu0 0.0
    %3338 = vmatpush1.msra.mxu0 0.0
    %3339 = vmatprep.subr.mxu0 0.0
    %3340 = vmatpush1.msra.mxu0 0.0
    %3341 = vmatprep.subr.mxu0 0.0
    %3342 = vmatpush1.msra.mxu0 0.0
    %3343 = vmatprep.subr.mxu0 0.0
    %3344 = vmatpush1.msra.mxu0 0.0
    %3345 = vmatprep.subr.mxu0 0.0
    %3346 = vmatpush1.msra.mxu0 0.0
    %3347 = vmatprep.subr.mxu0 0.0
    %3348 = vmatpush1.msra.mxu0 0.0
    %3349 = vmatprep.subr.mxu0 0.0
    %3350 = vmatpush1.msra.mxu0 0.0
    %3351 = vmatprep.subr.mxu0 0.0
    %3352 = vmatpush1.msra.mxu0 0.0
    %3353 = vmatprep.subr.mxu0 0.0
    %3354 = vmatpush1.msra.mxu0 0.0
    %3355 = vmatprep.subr.mxu0 0.0
    %3356 = vmatpush1.msra.mxu0 0.0
    %3357 = vmatprep.subr.mxu0 0.0
    %3358 = vmatpush1.msra.mxu0 0.0
    %3359 = vmatprep.subr.mxu0 0.0
    %3360 = vmatpush1.msra.mxu0 0.0
    %3361 = vmatprep.subr.mxu0 0.0
    %3362 = vmatpush1.msra.mxu0 0.0
    %3363 = vmatprep.subr.mxu0 0.0
    %3364 = vmatpush1.msra.mxu0 0.0
    %3365 = vmatprep.subr.mxu0 0.0
    %3366 = vmatpush1.msra.mxu0 0.0
    %3367 = vmatprep.subr.mxu0 0.0
    %3368 = vmatpush1.msra.mxu0 0.0
    %3369 = vmatprep.subr.mxu0 0.0
    %3370 = vmatpush1.msra.mxu0 0.0
    %3371 = vmatprep.subr.mxu0 0.0
    %3372 = vmatpush1.msra.mxu0 0.0
    %3373 = vmatprep.subr.mxu0 0.0
    %3374 = vmatpush1.msra.mxu0 0.0
    %3375 = vmatprep.subr.mxu0 0.0
    %3376 = vmatpush1.msra.mxu0 0.0
    %3377 = vmatprep.subr.mxu0 0.0
    %3378 = vmatpush1.msra.mxu0 0.0
    %3379 = vmatprep.subr.mxu0 0.0
    %3380 = vmatpush1.msra.mxu0 0.0
    %3381 = vmatprep.subr.mxu0 0.0
    %3382 = vmatpush1.msra.mxu0 0.0
    %3383 = vmatprep.subr.mxu0 0.0
    %3384 = vmatpush1.msra.mxu0 0.0
    %3385 = vmatprep.subr.mxu0 0.0
    %3386 = vmatpush1.msra.mxu0 0.0
    %3387 = vmatprep.subr.mxu0 0.0
    %3388 = vmatpush1.msra.mxu0 0.0
    %3389 = vmatprep.mubr.f32.mxu0 0.0
    %3390 = vmatmul.mubr.f32.gmra.mrb[0].mxu0 %v1329
    %v3391 = vpop.f32.mrb[0].mxu0
    %v3392 = vadd.f32 %v3323, %v3391
    %v3393 = vpop.f32.mrb[0].mxu0
    %3394 = vmatprep.mubr.f32.mxu0 0.0
    %3395 = vmatmul.mubr.f32.gmra.mrb[0].mxu0 %v1332
    %v3396 = vpop.f32.mrb[0].mxu0
    %v3397 = vadd.f32 %v3323, %v3396
    %v3398 = vpop.f32.mrb[0].mxu0
    %3399 = vdwg.mxu0
    %3400 = vmatprep.subr.mxu0 0.0
    %3401 = vmatpush1.msra.mxu0 %v3304
    %3402 = vmatprep.subr.mxu0 0.0
    %3403 = vmatpush1.msra.mxu0 %v3309
    %3404 = vmatprep.subr.mxu0 0.0
    %3405 = vmatpush1.msra.mxu0 0.0
    %3406 = vmatprep.subr.mxu0 0.0
    %3407 = vmatpush1.msra.mxu0 0.0
    %3408 = vmatprep.subr.mxu0 0.0
    %3409 = vmatpush1.msra.mxu0 0.0
    %3410 = vmatprep.subr.mxu0 0.0
    %3411 = vmatpush1.msra.mxu0 0.0
    %3412 = vmatprep.subr.mxu0 0.0
    %3413 = vmatpush1.msra.mxu0 0.0
    %3414 = vmatprep.subr.mxu0 0.0
    %3415 = vmatpush1.msra.mxu0 0.0
    %3416 = vmatprep.subr.mxu0 0.0
    %3417 = vmatpush1.msra.mxu0 0.0
    %3418 = vmatprep.subr.mxu0 0.0
    %3419 = vmatpush1.msra.mxu0 0.0
    %3420 = vmatprep.subr.mxu0 0.0
    %3421 = vmatpush1.msra.mxu0 0.0
    %3422 = vmatprep.subr.mxu0 0.0
    %3423 = vmatpush1.msra.mxu0 0.0
    %3424 = vmatprep.subr.mxu0 0.0
    %3425 = vmatpush1.msra.mxu0 0.0
    %3426 = vmatprep.subr.mxu0 0.0
    %3427 = vmatpush1.msra.mxu0 0.0
    %3428 = vmatprep.subr.mxu0 0.0
    %3429 = vmatpush1.msra.mxu0 0.0
    %3430 = vmatprep.subr.mxu0 0.0
    %3431 = vmatpush1.msra.mxu0 0.0
    %3432 = vmatprep.subr.mxu0 0.0
    %3433 = vmatpush1.msra.mxu0 0.0
    %3434 = vmatprep.subr.mxu0 0.0
    %3435 = vmatpush1.msra.mxu0 0.0
    %3436 = vmatprep.subr.mxu0 0.0
    %3437 = vmatpush1.msra.mxu0 0.0
    %3438 = vmatprep.subr.mxu0 0.0
    %3439 = vmatpush1.msra.mxu0 0.0
    %3440 = vmatprep.subr.mxu0 0.0
    %3441 = vmatpush1.msra.mxu0 0.0
    %3442 = vmatprep.subr.mxu0 0.0
    %3443 = vmatpush1.msra.mxu0 0.0
    %3444 = vmatprep.subr.mxu0 0.0
    %3445 = vmatpush1.msra.mxu0 0.0
    %3446 = vmatprep.subr.mxu0 0.0
    %3447 = vmatpush1.msra.mxu0 0.0
    %3448 = vmatprep.subr.mxu0 0.0
    %3449 = vmatpush1.msra.mxu0 0.0
    %3450 = vmatprep.subr.mxu0 0.0
    %3451 = vmatpush1.msra.mxu0 0.0
    %3452 = vmatprep.subr.mxu0 0.0
    %3453 = vmatpush1.msra.mxu0 0.0
    %3454 = vmatprep.subr.mxu0 0.0
    %3455 = vmatpush1.msra.mxu0 0.0
    %3456 = vmatprep.subr.mxu0 0.0
    %3457 = vmatpush1.msra.mxu0 0.0
    %3458 = vmatprep.subr.mxu0 0.0
    %3459 = vmatpush1.msra.mxu0 0.0
    %3460 = vmatprep.subr.mxu0 0.0
    %3461 = vmatpush1.msra.mxu0 0.0
    %3462 = vmatprep.subr.mxu0 0.0
    %3463 = vmatpush1.msra.mxu0 0.0
    %3464 = vmatprep.mubr.f32.mxu0 0.0
    %3465 = vmatmul.mubr.f32.gmra.mrb[0].mxu0 %v471
    %v3466 = vpop.f32.mrb[0].mxu0
    %v3467 = vadd.f32 0.0, %v3466
    %v3468 = vpop.f32.mrb[0].mxu0
    %3469 = vmatprep.mubr.f32.mxu0 0.0
    %3470 = vmatmul.mubr.f32.gmra.mrb[0].mxu0 %v474
    %v3471 = vpop.f32.mrb[0].mxu0
    %v3472 = vadd.f32 0.0, %v3471
    %v3473 = vpop.f32.mrb[0].mxu0
    %3474 = vmatprep.mubr.f32.mxu0 0.0
    %3475 = vmatmul.mubr.f32.gmra.mrb[0].mxu0 %v477
    %v3476 = vpop.f32.mrb[0].mxu0
    %v3477 = vadd.f32 0.0, %v3476
    %v3478 = vpop.f32.mrb[0].mxu0
    %3479 = vmatprep.mubr.f32.mxu0 0.0
    %3480 = vmatmul.mubr.f32.gmra.mrb[0].mxu0 %v480
    %v3481 = vpop.f32.mrb[0].mxu0
    %v3482 = vadd.f32 0.0, %v3481
    %v3483 = vpop.f32.mrb[0].mxu0
    %3484 = vmatprep.mubr.f32.mxu0 0.0
    %3485 = vmatmul.mubr.f32.gmra.mrb[0].mxu0 %v483
    %v3486 = vpop.f32.mrb[0].mxu0
    %v3487 = vadd.f32 0.0, %v3486
    %v3488 = vpop.f32.mrb[0].mxu0
    %3489 = vmatprep.mubr.f32.mxu0 0.0
    %3490 = vmatmul.mubr.f32.gmra.mrb[0].mxu0 %v486
    %v3491 = vpop.f32.mrb[0].mxu0
    %v3492 = vadd.f32 0.0, %v3491
    %v3493 = vpop.f32.mrb[0].mxu0
    %3494 = vmatprep.mubr.f32.mxu0 0.0
    %3495 = vmatmul.mubr.f32.gmra.mrb[0].mxu0 %v489
    %v3496 = vpop.f32.mrb[0].mxu0
    %v3497 = vadd.f32 0.0, %v3496
    %v3498 = vpop.f32.mrb[0].mxu0
    %3499 = vmatprep.mubr.f32.mxu0 0.0
    %3500 = vmatmul.mubr.f32.gmra.mrb[0].mxu0 %v492
    %v3501 = vpop.f32.mrb[0].mxu0
    %v3502 = vadd.f32 0.0, %v3501
    %v3503 = vpop.f32.mrb[0].mxu0
    %3504 = vdwg.mxu0
    %3505 = vmatprep.subr.mxu0 0.0
    %3506 = vmatpush1.msra.mxu0 %v3392
    %3507 = vmatprep.subr.mxu0 0.0
    %3508 = vmatpush1.msra.mxu0 %v3397
    %3509 = vmatprep.subr.mxu0 0.0
    %3510 = vmatpush1.msra.mxu0 0.0
    %3511 = vmatprep.subr.mxu0 0.0
    %3512 = vmatpush1.msra.mxu0 0.0
    %3513 = vmatprep.subr.mxu0 0.0
    %3514 = vmatpush1.msra.mxu0 0.0
    %3515 = vmatprep.subr.mxu0 0.0
    %3516 = vmatpush1.msra.mxu0 0.0
    %3517 = vmatprep.subr.mxu0 0.0
    %3518 = vmatpush1.msra.mxu0 0.0
    %3519 = vmatprep.subr.mxu0 0.0
    %3520 = vmatpush1.msra.mxu0 0.0
    %3521 = vmatprep.subr.mxu0 0.0
    %3522 = vmatpush1.msra.mxu0 0.0
    %3523 = vmatprep.subr.mxu0 0.0
    %3524 = vmatpush1.msra.mxu0 0.0
    %3525 = vmatprep.subr.mxu0 0.0
    %3526 = vmatpush1.msra.mxu0 0.0
    %3527 = vmatprep.subr.mxu0 0.0
    %3528 = vmatpush1.msra.mxu0 0.0
    %3529 = vmatprep.subr.mxu0 0.0
    %3530 = vmatpush1.msra.mxu0 0.0
    %3531 = vmatprep.subr.mxu0 0.0
    %3532 = vmatpush1.msra.mxu0 0.0
    %3533 = vmatprep.subr.mxu0 0.0
    %3534 = vmatpush1.msra.mxu0 0.0
    %3535 = vmatprep.subr.mxu0 0.0
    %3536 = vmatpush1.msra.mxu0 0.0
    %3537 = vmatprep.subr.mxu0 0.0
    %3538 = vmatpush1.msra.mxu0 0.0
    %3539 = vmatprep.subr.mxu0 0.0
    %3540 = vmatpush1.msra.mxu0 0.0
    %3541 = vmatprep.subr.mxu0 0.0
    %3542 = vmatpush1.msra.mxu0 0.0
    %3543 = vmatprep.subr.mxu0 0.0
    %3544 = vmatpush1.msra.mxu0 0.0
    %3545 = vmatprep.subr.mxu0 0.0
    %3546 = vmatpush1.msra.mxu0 0.0
    %3547 = vmatprep.subr.mxu0 0.0
    %3548 = vmatpush1.msra.mxu0 0.0
    %3549 = vmatprep.subr.mxu0 0.0
    %3550 = vmatpush1.msra.mxu0 0.0
    %3551 = vmatprep.subr.mxu0 0.0
    %3552 = vmatpush1.msra.mxu0 0.0
    %3553 = vmatprep.subr.mxu0 0.0
    %3554 = vmatpush1.msra.mxu0 0.0
    %3555 = vmatprep.subr.mxu0 0.0
    %3556 = vmatpush1.msra.mxu0 0.0
    %3557 = vmatprep.subr.mxu0 0.0
    %3558 = vmatpush1.msra.mxu0 0.0
    %3559 = vmatprep.subr.mxu0 0.0
    %3560 = vmatpush1.msra.mxu0 0.0
    %3561 = vmatprep.subr.mxu0 0.0
    %3562 = vmatpush1.msra.mxu0 0.0
    %3563 = vmatprep.subr.mxu0 0.0
    %3564 = vmatpush1.msra.mxu0 0.0
    %3565 = vmatprep.subr.mxu0 0.0
    %3566 = vmatpush1.msra.mxu0 0.0
    %3567 = vmatprep.subr.mxu0 0.0
    %3568 = vmatpush1.msra.mxu0 0.0
    %3569 = vmatprep.mubr.f32.mxu0 0.0
    %3570 = vmatmul.mubr.f32.gmra.mrb[0].mxu0 %v471
    %v3571 = vpop.f32.mrb[0].mxu0
    %v3572 = vadd.f32 0.0, %v3571
    %v3573 = vpop.f32.mrb[0].mxu0
    %3574 = vmatprep.mubr.f32.mxu0 0.0
    %3575 = vmatmul.mubr.f32.gmra.mrb[0].mxu0 %v474
    %v3576 = vpop.f32.mrb[0].mxu0
    %v3577 = vadd.f32 0.0, %v3576
    %v3578 = vpop.f32.mrb[0].mxu0
    %3579 = vmatprep.mubr.f32.mxu0 0.0
    %3580 = vmatmul.mubr.f32.gmra.mrb[0].mxu0 %v477
    %v3581 = vpop.f32.mrb[0].mxu0
    %v3582 = vadd.f32 0.0, %v3581
    %v3583 = vpop.f32.mrb[0].mxu0
    %3584 = vmatprep.mubr.f32.mxu0 0.0
    %3585 = vmatmul.mubr.f32.gmra.mrb[0].mxu0 %v480
    %v3586 = vpop.f32.mrb[0].mxu0
    %v3587 = vadd.f32 0.0, %v3586
    %v3588 = vpop.f32.mrb[0].mxu0
    %3589 = vmatprep.mubr.f32.mxu0 0.0
    %3590 = vmatmul.mubr.f32.gmra.mrb[0].mxu0 %v483
    %v3591 = vpop.f32.mrb[0].mxu0
    %v3592 = vadd.f32 0.0, %v3591
    %v3593 = vpop.f32.mrb[0].mxu0
    %3594 = vmatprep.mubr.f32.mxu0 0.0
    %3595 = vmatmul.mubr.f32.gmra.mrb[0].mxu0 %v486
    %v3596 = vpop.f32.mrb[0].mxu0
    %v3597 = vadd.f32 0.0, %v3596
    %v3598 = vpop.f32.mrb[0].mxu0
    %3599 = vmatprep.mubr.f32.mxu0 0.0
    %3600 = vmatmul.mubr.f32.gmra.mrb[0].mxu0 %v489
    %v3601 = vpop.f32.mrb[0].mxu0
    %v3602 = vadd.f32 0.0, %v3601
    %v3603 = vpop.f32.mrb[0].mxu0
    %3604 = vmatprep.mubr.f32.mxu0 0.0
    %3605 = vmatmul.mubr.f32.gmra.mrb[0].mxu0 %v492
    %v3606 = vpop.f32.mrb[0].mxu0
    %v3607 = vadd.f32 0.0, %v3606
    %v3608 = vpop.f32.mrb[0].mxu0
    %3609 = vdwg.mxu0
    %v3610 = vmul.f32 %v3572, %v323
    %v3611 = vmul.f32 %v3577, %v324
    %v3612 = vmul.f32 %v3582, %v325
    %v3613 = vmul.f32 %v3587, %v326
    %v3614 = vmul.f32 %v3592, %v327
    %v3615 = vmul.f32 %v3597, %v328
    %v3616 = vmul.f32 %v3602, %v329
    %v3617 = vmul.f32 %v3607, %v330
    %v3619 = vsel %vm333, %v3467, 0
    %v3622 = vsel %vm333, %v3472, 0
    %v3625 = vsel %vm333, %v3477, 0
    %v3628 = vsel %vm333, %v3482, 0
    %v3631 = vsel %vm333, %v3487, 0
    %v3634 = vsel %vm333, %v3492, 0
    %v3637 = vsel %vm333, %v3497, 0
    %v3640 = vsel %vm333, %v3502, 0
    %v3643 = vsel %vm333, %v3610, 0
    %v3646 = vsel %vm333, %v3611, 0
    %v3649 = vsel %vm333, %v3612, 0
    %v3652 = vsel %vm333, %v3613, 0
    %v3655 = vsel %vm333, %v3614, 0
    %v3658 = vsel %vm333, %v3615, 0
    %v3661 = vsel %vm333, %v3616, 0
    %v3664 = vsel %vm333, %v3617, 0
    %3666 = vmatprep.subr.mxu0 0.0
    %3667 = vmatpush1.xpose.msra.mxu0 %v3643
    %3668 = vmatprep.subr.mxu0 0.0
    %3669 = vmatpush1.xpose.msra.mxu0 %v3646
    %3670 = vmatprep.subr.mxu0 0.0
    %3671 = vmatpush1.xpose.msra.mxu0 %v3649
    %3672 = vmatprep.subr.mxu0 0.0
    %3673 = vmatpush1.xpose.msra.mxu0 %v3652
    %3674 = vmatprep.subr.mxu0 0.0
    %3675 = vmatpush1.xpose.msra.mxu0 %v3655
    %3676 = vmatprep.subr.mxu0 0.0
    %3677 = vmatpush1.xpose.msra.mxu0 %v3658
    %3678 = vmatprep.subr.mxu0 0.0
    %3679 = vmatpush1.xpose.msra.mxu0 %v3661
    %3680 = vmatprep.subr.mxu0 0.0
    %3681 = vmatpush1.xpose.msra.mxu0 %v3664
    %3682 = vmatprep.subr.mxu0 0.0
    %3683 = vmatpush1.xpose.msra.mxu0 0.0
    %3684 = vmatprep.subr.mxu0 0.0
    %3685 = vmatpush1.xpose.msra.mxu0 0.0
    %3686 = vmatprep.subr.mxu0 0.0
    %3687 = vmatpush1.xpose.msra.mxu0 0.0
    %3688 = vmatprep.subr.mxu0 0.0
    %3689 = vmatpush1.xpose.msra.mxu0 0.0
    %3690 = vmatprep.subr.mxu0 0.0
    %3691 = vmatpush1.xpose.msra.mxu0 0.0
    %3692 = vmatprep.subr.mxu0 0.0
    %3693 = vmatpush1.xpose.msra.mxu0 0.0
    %3694 = vmatprep.subr.mxu0 0.0
    %3695 = vmatpush1.xpose.msra.mxu0 0.0
    %3696 = vmatprep.subr.mxu0 0.0
    %3697 = vmatpush1.xpose.msra.mxu0 0.0
    %3698 = vmatprep.subr.mxu0 0.0
    %3699 = vmatpush1.xpose.msra.mxu0 0.0
    %3700 = vmatprep.subr.mxu0 0.0
    %3701 = vmatpush1.xpose.msra.mxu0 0.0
    %3702 = vmatprep.subr.mxu0 0.0
    %3703 = vmatpush1.xpose.msra.mxu0 0.0
    %3704 = vmatprep.subr.mxu0 0.0
    %3705 = vmatpush1.xpose.msra.mxu0 0.0
    %3706 = vmatprep.subr.mxu0 0.0
    %3707 = vmatpush1.xpose.msra.mxu0 0.0
    %3708 = vmatprep.subr.mxu0 0.0
    %3709 = vmatpush1.xpose.msra.mxu0 0.0
    %3710 = vmatprep.subr.mxu0 0.0
    %3711 = vmatpush1.xpose.msra.mxu0 0.0
    %3712 = vmatprep.subr.mxu0 0.0
    %3713 = vmatpush1.xpose.msra.mxu0 0.0
    %3714 = vmatprep.subr.mxu0 0.0
    %3715 = vmatpush1.xpose.msra.mxu0 0.0
    %3716 = vmatprep.subr.mxu0 0.0
    %3717 = vmatpush1.xpose.msra.mxu0 0.0
    %3718 = vmatprep.subr.mxu0 0.0
    %3719 = vmatpush1.xpose.msra.mxu0 0.0
    %3720 = vmatprep.subr.mxu0 0.0
    %3721 = vmatpush1.xpose.msra.mxu0 0.0
    %3722 = vmatprep.subr.mxu0 0.0
    %3723 = vmatpush1.xpose.msra.mxu0 0.0
    %3724 = vmatprep.subr.mxu0 0.0
    %3725 = vmatpush1.xpose.msra.mxu0 0.0
    %3726 = vmatprep.subr.mxu0 0.0
    %3727 = vmatpush1.xpose.msra.mxu0 0.0
    %3728 = vmatprep.subr.mxu0 0.0
    %3729 = vmatpush1.xpose.msra.mxu0 0.0
    %3730 = vmatprep.mubr.f32.mxu0 0.0
    %3731 = vmatmul.mubr.f32.gmra.mrb[0].mxu0 %v3619
    %v3732 = vpop.f32.mrb[0].mxu0
    %v3733 = vadd.f32 %v305, %v3732
    %v3734 = vpop.f32.mrb[0].mxu0
    %3735 = vmatprep.mubr.f32.mxu0 0.0
    %3736 = vmatmul.mubr.f32.gmra.mrb[0].mxu0 %v3622
    %v3737 = vpop.f32.mrb[0].mxu0
    %v3738 = vadd.f32 %v306, %v3737
    %v3739 = vpop.f32.mrb[0].mxu0
    %3740 = vmatprep.mubr.f32.mxu0 0.0
    %3741 = vmatmul.mubr.f32.gmra.mrb[0].mxu0 %v3625
    %v3742 = vpop.f32.mrb[0].mxu0
    %v3743 = vadd.f32 %v307, %v3742
    %v3744 = vpop.f32.mrb[0].mxu0
    %3745 = vmatprep.mubr.f32.mxu0 0.0
    %3746 = vmatmul.mubr.f32.gmra.mrb[0].mxu0 %v3628
    %v3747 = vpop.f32.mrb[0].mxu0
    %v3748 = vadd.f32 %v308, %v3747
    %v3749 = vpop.f32.mrb[0].mxu0
    %3750 = vmatprep.mubr.f32.mxu0 0.0
    %3751 = vmatmul.mubr.f32.gmra.mrb[0].mxu0 %v3631
    %v3752 = vpop.f32.mrb[0].mxu0
    %v3753 = vadd.f32 %v309, %v3752
    %v3754 = vpop.f32.mrb[0].mxu0
    %3755 = vmatprep.mubr.f32.mxu0 0.0
    %3756 = vmatmul.mubr.f32.gmra.mrb[0].mxu0 %v3634
    %v3757 = vpop.f32.mrb[0].mxu0
    %v3758 = vadd.f32 %v310, %v3757
    %v3759 = vpop.f32.mrb[0].mxu0
    %3760 = vmatprep.mubr.f32.mxu0 0.0
    %3761 = vmatmul.mubr.f32.gmra.mrb[0].mxu0 %v3637
    %v3762 = vpop.f32.mrb[0].mxu0
    %v3763 = vadd.f32 %v311, %v3762
    %v3764 = vpop.f32.mrb[0].mxu0
    %3765 = vmatprep.mubr.f32.mxu0 0.0
    %3766 = vmatmul.mubr.f32.gmra.mrb[0].mxu0 %v3640
    %v3767 = vpop.f32.mrb[0].mxu0
    %v3768 = vadd.f32 %v312, %v3767
    %v3769 = vpop.f32.mrb[0].mxu0
    %3770 = vdwg.mxu0
    %v3771 = vsel %vm808, %v3733, -inf
    %3772 = vmax.xlane.f32.xlu0 %v3771
    %v3773 = vpop.xlane.xlu0 %3772
    %v3774 = vsel %vm808, %v3738, -inf
    %3775 = vmax.xlane.f32.xlu0 %v3774
    %v3776 = vpop.xlane.xlu0 %3775
    %v3777 = vsel %vm808, %v3743, -inf
    %3778 = vmax.xlane.f32.xlu0 %v3777
    %v3779 = vpop.xlane.xlu0 %3778
    %v3780 = vsel %vm808, %v3748, -inf
    %3781 = vmax.xlane.f32.xlu0 %v3780
    %v3782 = vpop.xlane.xlu0 %3781
    %v3783 = vsel %vm808, %v3753, -inf
    %3784 = vmax.xlane.f32.xlu0 %v3783
    %v3785 = vpop.xlane.xlu0 %3784
    %v3786 = vsel %vm808, %v3758, -inf
    %3787 = vmax.xlane.f32.xlu0 %v3786
    %v3788 = vpop.xlane.xlu0 %3787
    %v3789 = vsel %vm808, %v3763, -inf
    %3790 = vmax.xlane.f32.xlu0 %v3789
    %v3791 = vpop.xlane.xlu0 %3790
    %v3792 = vsel %vm808, %v3768, -inf
    %3793 = vmax.xlane.f32.xlu0 %v3792
    %v3794 = vpop.xlane.xlu0 %3793
    %v3795 = vsub.f32 %v3733, %v3773
    %v3796 = vsub.f32 %v3738, %v3776
    %v3797 = vsub.f32 %v3743, %v3779
    %v3798 = vsub.f32 %v3748, %v3782
    %v3799 = vsub.f32 %v3753, %v3785
    %v3800 = vsub.f32 %v3758, %v3788
    %v3801 = vsub.f32 %v3763, %v3791
    %v3802 = vsub.f32 %v3768, %v3794
    %v3803 = vmul.f32 %v3795, 1.442695
    %v3804 = vpow.pop %v3803
    %v3805 = vmul.f32 %v3796, 1.442695
    %v3806 = vpow.pop %v3805
    %v3807 = vmul.f32 %v3797, 1.442695
    %v3808 = vpow.pop %v3807
    %v3809 = vmul.f32 %v3798, 1.442695
    %v3810 = vpow.pop %v3809
    %v3811 = vmul.f32 %v3799, 1.442695
    %v3812 = vpow.pop %v3811
    %v3813 = vmul.f32 %v3800, 1.442695
    %v3814 = vpow.pop %v3813
    %v3815 = vmul.f32 %v3801, 1.442695
    %v3816 = vpow.pop %v3815
    %v3817 = vmul.f32 %v3802, 1.442695
    %v3818 = vpow.pop %v3817
    %v3819 = vsel %vm808, %v3804, 0.0
    %3820 = vadd.xlane.f32.xlu0 %v3819
    %v3821 = vpop.xlane.xlu0 %3820
    %v3822 = vsel %vm808, %v3806, 0.0
    %3823 = vadd.xlane.f32.xlu0 %v3822
    %v3824 = vpop.xlane.xlu0 %3823
    %v3825 = vsel %vm808, %v3808, 0.0
    %3826 = vadd.xlane.f32.xlu0 %v3825
    %v3827 = vpop.xlane.xlu0 %3826
    %v3828 = vsel %vm808, %v3810, 0.0
    %3829 = vadd.xlane.f32.xlu0 %v3828
    %v3830 = vpop.xlane.xlu0 %3829
    %v3831 = vsel %vm808, %v3812, 0.0
    %3832 = vadd.xlane.f32.xlu0 %v3831
    %v3833 = vpop.xlane.xlu0 %3832
    %v3834 = vsel %vm808, %v3814, 0.0
    %3835 = vadd.xlane.f32.xlu0 %v3834
    %v3836 = vpop.xlane.xlu0 %3835
    %v3837 = vsel %vm808, %v3816, 0.0
    %3838 = vadd.xlane.f32.xlu0 %v3837
    %v3839 = vpop.xlane.xlu0 %3838
    %v3840 = vsel %vm808, %v3818, 0.0
    %3841 = vadd.xlane.f32.xlu0 %v3840
    %v3842 = vpop.xlane.xlu0 %3841
    %v3843 = vrcp.pop %v3821
    %v3844 = vrcp.pop %v3824
    %v3845 = vrcp.pop %v3827
    %v3846 = vrcp.pop %v3830
    %v3847 = vrcp.pop %v3833
    %v3848 = vrcp.pop %v3836
    %v3849 = vrcp.pop %v3839
    %v3850 = vrcp.pop %v3842
    %v3851 = vmul.f32 %v3804, %v3843
    %v3852 = vmul.f32 %v3806, %v3844
    %v3853 = vmul.f32 %v3808, %v3845
    %v3854 = vmul.f32 %v3810, %v3846
    %v3855 = vmul.f32 %v3812, %v3847
    %v3856 = vmul.f32 %v3814, %v3848
    %v3857 = vmul.f32 %v3816, %v3849
    %v3858 = vmul.f32 %v3818, %v3850
    %3859 = vmatprep.subr.mxu0 0.0
    %3860 = vmatpush1.msra.mxu0 %v3851
    %3861 = vmatprep.subr.mxu0 0.0
    %3862 = vmatpush1.msra.mxu0 %v3852
    %3863 = vmatprep.subr.mxu0 0.0
    %3864 = vmatpush1.msra.mxu0 %v3853
    %3865 = vmatprep.subr.mxu0 0.0
    %3866 = vmatpush1.msra.mxu0 %v3854
    %3867 = vmatprep.subr.mxu0 0.0
    %3868 = vmatpush1.msra.mxu0 %v3855
    %3869 = vmatprep.subr.mxu0 0.0
    %3870 = vmatpush1.msra.mxu0 %v3856
    %3871 = vmatprep.subr.mxu0 0.0
    %3872 = vmatpush1.msra.mxu0 %v3857
    %3873 = vmatprep.subr.mxu0 0.0
    %3874 = vmatpush1.msra.mxu0 %v3858
    %3875 = vmatprep.subr.mxu0 0.0
    %3876 = vmatpush1.msra.mxu0 0.0
    %3877 = vmatprep.subr.mxu0 0.0
    %3878 = vmatpush1.msra.mxu0 0.0
    %3879 = vmatprep.subr.mxu0 0.0
    %3880 = vmatpush1.msra.mxu0 0.0
    %3881 = vmatprep.subr.mxu0 0.0
    %3882 = vmatpush1.msra.mxu0 0.0
    %3883 = vmatprep.subr.mxu0 0.0
    %3884 = vmatpush1.msra.mxu0 0.0
    %3885 = vmatprep.subr.mxu0 0.0
    %3886 = vmatpush1.msra.mxu0 0.0
    %3887 = vmatprep.subr.mxu0 0.0
    %3888 = vmatpush1.msra.mxu0 0.0
    %3889 = vmatprep.subr.mxu0 0.0
    %3890 = vmatpush1.msra.mxu0 0.0
    %3891 = vmatprep.subr.mxu0 0.0
    %3892 = vmatpush1.msra.mxu0 0.0
    %3893 = vmatprep.subr.mxu0 0.0
    %3894 = vmatpush1.msra.mxu0 0.0
    %3895 = vmatprep.subr.mxu0 0.0
    %3896 = vmatpush1.msra.mxu0 0.0
    %3897 = vmatprep.subr.mxu0 0.0
    %3898 = vmatpush1.msra.mxu0 0.0
    %3899 = vmatprep.subr.mxu0 0.0
    %3900 = vmatpush1.msra.mxu0 0.0
    %3901 = vmatprep.subr.mxu0 0.0
    %3902 = vmatpush1.msra.mxu0 0.0
    %3903 = vmatprep.subr.mxu0 0.0
    %3904 = vmatpush1.msra.mxu0 0.0
    %3905 = vmatprep.subr.mxu0 0.0
    %3906 = vmatpush1.msra.mxu0 0.0
    %3907 = vmatprep.subr.mxu0 0.0
    %3908 = vmatpush1.msra.mxu0 0.0
    %3909 = vmatprep.subr.mxu0 0.0
    %3910 = vmatpush1.msra.mxu0 0.0
    %3911 = vmatprep.subr.mxu0 0.0
    %3912 = vmatpush1.msra.mxu0 0.0
    %3913 = vmatprep.subr.mxu0 0.0
    %3914 = vmatpush1.msra.mxu0 0.0
    %3915 = vmatprep.subr.mxu0 0.0
    %3916 = vmatpush1.msra.mxu0 0.0
    %3917 = vmatprep.subr.mxu0 0.0
    %3918 = vmatpush1.msra.mxu0 0.0
    %3919 = vmatprep.subr.mxu0 0.0
    %3920 = vmatpush1.msra.mxu0 0.0
    %3921 = vmatprep.subr.mxu0 0.0
    %3922 = vmatpush1.msra.mxu0 0.0
    %3923 = vmatprep.mubr.f32.mxu0 0.0
    %3924 = vmatmul.mubr.f32.gmra.mrb[0].mxu0 %v898
    %v3925 = vpop.f32.mrb[0].mxu0
    %v3926 = vadd.f32 0.0, %v3925
    %v3927 = vpop.f32.mrb[0].mxu0
    %3928 = vmatprep.mubr.f32.mxu0 0.0
    %3929 = vmatmul.mubr.f32.gmra.mrb[0].mxu0 %v901
    %v3930 = vpop.f32.mrb[0].mxu0
    %v3931 = vadd.f32 0.0, %v3930
    %v3932 = vpop.f32.mrb[0].mxu0
    %3933 = vdwg.mxu0
    %3934 = vrot.lane.b32.xlu0 %v3610, 96
    %v3935 = vpop.permute.xlu0 %3934
    %3936 = vrot.lane.b32.xlu0 %v3611, 96
    %v3937 = vpop.permute.xlu0 %3936
    %3938 = vrot.lane.b32.xlu0 %v3612, 96
    %v3939 = vpop.permute.xlu0 %3938
    %3940 = vrot.lane.b32.xlu0 %v3613, 96
    %v3941 = vpop.permute.xlu0 %3940
    %3942 = vrot.lane.b32.xlu0 %v3614, 96
    %v3943 = vpop.permute.xlu0 %3942
    %3944 = vrot.lane.b32.xlu0 %v3615, 96
    %v3945 = vpop.permute.xlu0 %3944
    %3946 = vrot.lane.b32.xlu0 %v3616, 96
    %v3947 = vpop.permute.xlu0 %3946
    %3948 = vrot.lane.b32.xlu0 %v3617, 96
    %v3949 = vpop.permute.xlu0 %3948
    %v3959 = vsel %vm808, %v3926, 0
    %v3962 = vsel %vm808, %v3931, 0
    %3964 = vmatprep.subr.mxu0 0.0
    %3965 = vmatpush1.msra.mxu0 %v3935
    %3966 = vmatprep.subr.mxu0 0.0
    %3967 = vmatpush1.msra.mxu0 %v3937
    %3968 = vmatprep.subr.mxu0 0.0
    %3969 = vmatpush1.msra.mxu0 %v3939
    %3970 = vmatprep.subr.mxu0 0.0
    %3971 = vmatpush1.msra.mxu0 %v3941
    %3972 = vmatprep.subr.mxu0 0.0
    %3973 = vmatpush1.msra.mxu0 %v3943
    %3974 = vmatprep.subr.mxu0 0.0
    %3975 = vmatpush1.msra.mxu0 %v3945
    %3976 = vmatprep.subr.mxu0 0.0
    %3977 = vmatpush1.msra.mxu0 %v3947
    %3978 = vmatprep.subr.mxu0 0.0
    %3979 = vmatpush1.msra.mxu0 %v3949
    %3980 = vmatprep.subr.mxu0 0.0
    %3981 = vmatpush1.msra.mxu0 0.0
    %3982 = vmatprep.subr.mxu0 0.0
    %3983 = vmatpush1.msra.mxu0 0.0
    %3984 = vmatprep.subr.mxu0 0.0
    %3985 = vmatpush1.msra.mxu0 0.0
    %3986 = vmatprep.subr.mxu0 0.0
    %3987 = vmatpush1.msra.mxu0 0.0
    %3988 = vmatprep.subr.mxu0 0.0
    %3989 = vmatpush1.msra.mxu0 0.0
    %3990 = vmatprep.subr.mxu0 0.0
    %3991 = vmatpush1.msra.mxu0 0.0
    %3992 = vmatprep.subr.mxu0 0.0
    %3993 = vmatpush1.msra.mxu0 0.0
    %3994 = vmatprep.subr.mxu0 0.0
    %3995 = vmatpush1.msra.mxu0 0.0
    %3996 = vmatprep.subr.mxu0 0.0
    %3997 = vmatpush1.msra.mxu0 0.0
    %3998 = vmatprep.subr.mxu0 0.0
    %3999 = vmatpush1.msra.mxu0 0.0
    %4000 = vmatprep.subr.mxu0 0.0
    %4001 = vmatpush1.msra.mxu0 0.0
    %4002 = vmatprep.subr.mxu0 0.0
    %4003 = vmatpush1.msra.mxu0 0.0
    %4004 = vmatprep.subr.mxu0 0.0
    %4005 = vmatpush1.msra.mxu0 0.0
    %4006 = vmatprep.subr.mxu0 0.0
    %4007 = vmatpush1.msra.mxu0 0.0
    %4008 = vmatprep.subr.mxu0 0.0
    %4009 = vmatpush1.msra.mxu0 0.0
    %4010 = vmatprep.subr.mxu0 0.0
    %4011 = vmatpush1.msra.mxu0 0.0
    %4012 = vmatprep.subr.mxu0 0.0
    %4013 = vmatpush1.msra.mxu0 0.0
    %4014 = vmatprep.subr.mxu0 0.0
    %4015 = vmatpush1.msra.mxu0 0.0
    %4016 = vmatprep.subr.mxu0 0.0
    %4017 = vmatpush1.msra.mxu0 0.0
    %4018 = vmatprep.subr.mxu0 0.0
    %4019 = vmatpush1.msra.mxu0 0.0
    %4020 = vmatprep.subr.mxu0 0.0
    %4021 = vmatpush1.msra.mxu0 0.0
    %4022 = vmatprep.subr.mxu0 0.0
    %4023 = vmatpush1.msra.mxu0 0.0
    %4024 = vmatprep.subr.mxu0 0.0
    %4025 = vmatpush1.msra.mxu0 0.0
    %4026 = vmatprep.subr.mxu0 0.0
    %4027 = vmatpush1.msra.mxu0 0.0
    %4028 = vmatprep.mubr.f32.mxu0 0.0
    %4029 = vmatmul.mubr.f32.gmra.mrb[0].mxu0 %v3959
    %v4030 = vpop.f32.mrb[0].mxu0
    %v4031 = vadd.f32 0.0, %v4030
    %v4032 = vpop.f32.mrb[0].mxu0
    %4033 = vmatprep.mubr.f32.mxu0 0.0
    %4034 = vmatmul.mubr.f32.gmra.mrb[0].mxu0 %v3962
    %v4035 = vpop.f32.mrb[0].mxu0
    %v4036 = vadd.f32 0.0, %v4035
    %v4037 = vpop.f32.mrb[0].mxu0
    %4038 = vdwg.mxu0
    %s4039 = scalar_lea.vmem [#allocation23], 32
    %v4040 = vld [vmem:[%s4039] sm:$0xff]
    %v4041 = vld [vmem:[%s4039 + $0x8] sm:$0xff]
    %v4042 = vld [vmem:[%s4039 + $0x10] sm:$0xff]
    %v4043 = vld [vmem:[%s4039 + $0x18] sm:$0xff]
    %v4045 = vsel %vm333, %v4031, 0
    %v4048 = vsel %vm333, %v4036, 0
    %4050 = vmatprep.subr.mxu0 0.0
    %4051 = vmatpush1.msra.mxu0 %v4040
    %4052 = vmatprep.subr.mxu0 0.0
    %4053 = vmatpush1.msra.mxu0 %v4041
    %4054 = vmatprep.subr.mxu0 0.0
    %4055 = vmatpush1.msra.mxu0 %v4042
    %4056 = vmatprep.subr.mxu0 0.0
    %4057 = vmatpush1.msra.mxu0 %v4043
    %4058 = vmatprep.subr.mxu0 0.0
    %4059 = vmatpush1.msra.mxu0 0.0
    %4060 = vmatprep.subr.mxu0 0.0
    %4061 = vmatpush1.msra.mxu0 0.0
    %4062 = vmatprep.subr.mxu0 0.0
    %4063 = vmatpush1.msra.mxu0 0.0
    %4064 = vmatprep.subr.mxu0 0.0
    %4065 = vmatpush1.msra.mxu0 0.0
    %4066 = vmatprep.subr.mxu0 0.0
    %4067 = vmatpush1.msra.mxu0 0.0
    %4068 = vmatprep.subr.mxu0 0.0
    %4069 = vmatpush1.msra.mxu0 0.0
    %4070 = vmatprep.subr.mxu0 0.0
    %4071 = vmatpush1.msra.mxu0 0.0
    %4072 = vmatprep.subr.mxu0 0.0
    %4073 = vmatpush1.msra.mxu0 0.0
    %4074 = vmatprep.subr.mxu0 0.0
    %4075 = vmatpush1.msra.mxu0 0.0
    %4076 = vmatprep.subr.mxu0 0.0
    %4077 = vmatpush1.msra.mxu0 0.0
    %4078 = vmatprep.subr.mxu0 0.0
    %4079 = vmatpush1.msra.mxu0 0.0
    %4080 = vmatprep.subr.mxu0 0.0
    %4081 = vmatpush1.msra.mxu0 0.0
    %4082 = vmatprep.subr.mxu0 0.0
    %4083 = vmatpush1.msra.mxu0 0.0
    %4084 = vmatprep.subr.mxu0 0.0
    %4085 = vmatpush1.msra.mxu0 0.0
    %4086 = vmatprep.subr.mxu0 0.0
    %4087 = vmatpush1.msra.mxu0 0.0
    %4088 = vmatprep.subr.mxu0 0.0
    %4089 = vmatpush1.msra.mxu0 0.0
    %4090 = vmatprep.subr.mxu0 0.0
    %4091 = vmatpush1.msra.mxu0 0.0
    %4092 = vmatprep.subr.mxu0 0.0
    %4093 = vmatpush1.msra.mxu0 0.0
    %4094 = vmatprep.subr.mxu0 0.0
    %4095 = vmatpush1.msra.mxu0 0.0
    %4096 = vmatprep.subr.mxu0 0.0
    %4097 = vmatpush1.msra.mxu0 0.0
    %4098 = vmatprep.subr.mxu0 0.0
    %4099 = vmatpush1.msra.mxu0 0.0
    %4100 = vmatprep.subr.mxu0 0.0
    %4101 = vmatpush1.msra.mxu0 0.0
    %4102 = vmatprep.subr.mxu0 0.0
    %4103 = vmatpush1.msra.mxu0 0.0
    %4104 = vmatprep.subr.mxu0 0.0
    %4105 = vmatpush1.msra.mxu0 0.0
    %4106 = vmatprep.subr.mxu0 0.0
    %4107 = vmatpush1.msra.mxu0 0.0
    %4108 = vmatprep.subr.mxu0 0.0
    %4109 = vmatpush1.msra.mxu0 0.0
    %4110 = vmatprep.subr.mxu0 0.0
    %4111 = vmatpush1.msra.mxu0 0.0
    %4112 = vmatprep.subr.mxu0 0.0
    %4113 = vmatpush1.msra.mxu0 0.0
    %4114 = vmatprep.mubr.f32.mxu0 0.0
    %4115 = vmatmul.mubr.f32.gmra.mrb[0].mxu0 %v4045
    %v4116 = vpop.f32.mrb[0].mxu0
    %v4117 = vadd.f32 0.0, %v4116
    %v4118 = vpop.f32.mrb[0].mxu0
    %4119 = vmatprep.mubr.f32.mxu0 0.0
    %4120 = vmatmul.mubr.f32.gmra.mrb[0].mxu0 %v4048
    %v4121 = vpop.f32.mrb[0].mxu0
    %v4122 = vadd.f32 0.0, %v4121
    %v4123 = vpop.f32.mrb[0].mxu0
    %4124 = vdwg.mxu0
    %v4125 = vadd.f32 %v3170, %v4117
    %v4126 = vadd.f32 %v3171, %v4122
    %s4127 = scalar_lea.vmem %s17, 1
    %v4128 = vld [vmem:[%s4127] sm:$0x1]
    %v4130 = vlaneseq
    %v4131 = vshrl.u32 %v4130, 7
    %v4132 = vsub.s32 0, %v4131
    %v4133 = vrot.slane %v4128, %v4132
    %v4135 = vadd.f32 %v4125, %v4133
    %v4136 = vadd.f32 %v4126, %v4133
    %s4137 = scalar_lea.vmem %s22, 5
    %v4138 = vld [vmem:[%s4137] sm:$0x1]
    %s4139 = scalar_lea.vmem %s23, 5
    %v4140 = vld [vmem:[%s4139] sm:$0x1]
    %v4141 = vsel %vm333, %v4135, 0.0
    %4142 = vadd.xlane.f32.xlu0 %v4141
    %v4143 = vpop.xlane.xlu0 %4142
    %v4144 = vsel %vm333, %v4136, 0.0
    %4145 = vadd.xlane.f32.xlu0 %v4144
    %v4146 = vpop.xlane.xlu0 %4145
    %v4147 = vmul.f32 %v4143, %v340
    %v4148 = vmul.f32 %v4146, %v340
    %v4149 = vsub.f32 %v4135, %v4147
    %v4150 = vsub.f32 %v4136, %v4148
    %v4151 = vmul.f32 %v4149, %v4149
    %v4152 = vmul.f32 %v4150, %v4150
    %v4153 = vsel %vm333, %v4151, 0.0
    %4154 = vadd.xlane.f32.xlu0 %v4153
    %v4155 = vpop.xlane.xlu0 %4154
    %v4156 = vsel %vm333, %v4152, 0.0
    %4157 = vadd.xlane.f32.xlu0 %v4156
    %v4158 = vpop.xlane.xlu0 %4157
    %v4159 = vmul.f32 %v4155, %v340
    %v4160 = vmul.f32 %v4158, %v340
    %v4161 = vadd.f32 %v4159, 1e-05
    %v4162 = vadd.f32 %v4160, 1e-05
    %v4163 = vrsqrt.pop %v4161
    %v4164 = vrsqrt.pop %v4162
    %v4165 = vmul.f32 %v4149, %v4163
    %v4166 = vmul.f32 %v4150, %v4164
    %v4168 = vlaneseq
    %v4169 = vshrl.u32 %v4168, 7
    %v4170 = vsub.s32 0, %v4169
    %v4171 = vrot.slane %v4138, %v4170
    %v4173 = vmul.f32 %v4165, %v4171
    %v4174 = vmul.f32 %v4166, %v4171
    %v4176 = vlaneseq
    %v4177 = vshrl.u32 %v4176, 7
    %v4178 = vsub.s32 0, %v4177
    %v4179 = vrot.slane %v4140, %v4178
    %v4181 = vadd.f32 %v4173, %v4179
    %v4182 = vadd.f32 %v4174, %v4179
    %s4183 = scalar_lea.vmem %s18, 32
    %v4184 = vld [vmem:[%s4183] sm:$0xff]
    %v4185 = vld [vmem:[%s4183 + $0x8] sm:$0xff]
    %v4186 = vld [vmem:[%s4183 + $0x10] sm:$0xff]
    %v4187 = vld [vmem:[%s4183 + $0x18] sm:$0xff]
    %s4188 = scalar_lea.vmem %s19, 1
    %v4189 = vld [vmem:[%s4188] sm:$0x1]
    %v4191 = vlaneseq
    %v4192 = vshrl.u32 %v4191, 7
    %v4193 = vsub.s32 0, %v4192
    %v4194 = vrot.slane %v4189, %v4193
    %v4197 = vsel %vm333, %v4181, 0
    %v4200 = vsel %vm333, %v4182, 0
    %4202 = vmatprep.subr.mxu0 0.0
    %4203 = vmatpush1.msra.mxu0 %v4184
    %4204 = vmatprep.subr.mxu0 0.0
    %4205 = vmatpush1.msra.mxu0 %v4185
    %4206 = vmatprep.subr.mxu0 0.0
    %4207 = vmatpush1.msra.mxu0 %v4186
    %4208 = vmatprep.subr.mxu0 0.0
    %4209 = vmatpush1.msra.mxu0 %v4187
    %4210 = vmatprep.subr.mxu0 0.0
    %4211 = vmatpush1.msra.mxu0 0.0
    %4212 = vmatprep.subr.mxu0 0.0
    %4213 = vmatpush1.msra.mxu0 0.0
    %4214 = vmatprep.subr.mxu0 0.0
    %4215 = vmatpush1.msra.mxu0 0.0
    %4216 = vmatprep.subr.mxu0 0.0
    %4217 = vmatpush1.msra.mxu0 0.0
    %4218 = vmatprep.subr.mxu0 0.0
    %4219 = vmatpush1.msra.mxu0 0.0
    %4220 = vmatprep.subr.mxu0 0.0
    %4221 = vmatpush1.msra.mxu0 0.0
    %4222 = vmatprep.subr.mxu0 0.0
    %4223 = vmatpush1.msra.mxu0 0.0
    %4224 = vmatprep.subr.mxu0 0.0
    %4225 = vmatpush1.msra.mxu0 0.0
    %4226 = vmatprep.subr.mxu0 0.0
    %4227 = vmatpush1.msra.mxu0 0.0
    %4228 = vmatprep.subr.mxu0 0.0
    %4229 = vmatpush1.msra.mxu0 0.0
    %4230 = vmatprep.subr.mxu0 0.0
    %4231 = vmatpush1.msra.mxu0 0.0
    %4232 = vmatprep.subr.mxu0 0.0
    %4233 = vmatpush1.msra.mxu0 0.0
    %4234 = vmatprep.subr.mxu0 0.0
    %4235 = vmatpush1.msra.mxu0 0.0
    %4236 = vmatprep.subr.mxu0 0.0
    %4237 = vmatpush1.msra.mxu0 0.0
    %4238 = vmatprep.subr.mxu0 0.0
    %4239 = vmatpush1.msra.mxu0 0.0
    %4240 = vmatprep.subr.mxu0 0.0
    %4241 = vmatpush1.msra.mxu0 0.0
    %4242 = vmatprep.subr.mxu0 0.0
    %4243 = vmatpush1.msra.mxu0 0.0
    %4244 = vmatprep.subr.mxu0 0.0
    %4245 = vmatpush1.msra.mxu0 0.0
    %4246 = vmatprep.subr.mxu0 0.0
    %4247 = vmatpush1.msra.mxu0 0.0
    %4248 = vmatprep.subr.mxu0 0.0
    %4249 = vmatpush1.msra.mxu0 0.0
    %4250 = vmatprep.subr.mxu0 0.0
    %4251 = vmatpush1.msra.mxu0 0.0
    %4252 = vmatprep.subr.mxu0 0.0
    %4253 = vmatpush1.msra.mxu0 0.0
    %4254 = vmatprep.subr.mxu0 0.0
    %4255 = vmatpush1.msra.mxu0 0.0
    %4256 = vmatprep.subr.mxu0 0.0
    %4257 = vmatpush1.msra.mxu0 0.0
    %4258 = vmatprep.subr.mxu0 0.0
    %4259 = vmatpush1.msra.mxu0 0.0
    %4260 = vmatprep.subr.mxu0 0.0
    %4261 = vmatpush1.msra.mxu0 0.0
    %4262 = vmatprep.subr.mxu0 0.0
    %4263 = vmatpush1.msra.mxu0 0.0
    %4264 = vmatprep.subr.mxu0 0.0
    %4265 = vmatpush1.msra.mxu0 0.0
    %4266 = vmatprep.mubr.f32.mxu0 0.0
    %4267 = vmatmul.mubr.f32.gmra.mrb[0].mxu0 %v4197
    %v4268 = vpop.f32.mrb[0].mxu0
    %v4269 = vadd.f32 %v4194, %v4268
    %v4270 = vpop.f32.mrb[0].mxu0
    %4271 = vmatprep.mubr.f32.mxu0 0.0
    %4272 = vmatmul.mubr.f32.gmra.mrb[0].mxu0 %v4200
    %v4273 = vpop.f32.mrb[0].mxu0
    %v4274 = vadd.f32 %v4194, %v4273
    %v4275 = vpop.f32.mrb[0].mxu0
    %4276 = vdwg.mxu0
    %v4277 = vmax.f32 %v4269, 0.0
    %v4278 = vmax.f32 %v4274, 0.0
    %s4279 = scalar_lea.vmem [#allocation25], 64
    %v4280 = vld [vmem:[%s4279] sm:$0xff]
    %v4281 = vld [vmem:[%s4279 + $0x8] sm:$0xff]
    %v4282 = vld [vmem:[%s4279 + $0x10] sm:$0xff]
    %v4283 = vld [vmem:[%s4279 + $0x18] sm:$0xff]
    %v4284 = vld [vmem:[%s4279 + $0x20] sm:$0xff]
    %v4285 = vld [vmem:[%s4279 + $0x28] sm:$0xff]
    %v4286 = vld [vmem:[%s4279 + $0x30] sm:$0xff]
    %v4287 = vld [vmem:[%s4279 + $0x38] sm:$0xff]
    %v4289 = vsel %vm808, %v4277, 0
    %v4292 = vsel %vm808, %v4278, 0
    %4294 = vmatprep.subr.mxu0 0.0
    %4295 = vmatpush1.msra.mxu0 %v4280
    %4296 = vmatprep.subr.mxu0 0.0
    %4297 = vmatpush1.msra.mxu0 %v4281
    %4298 = vmatprep.subr.mxu0 0.0
    %4299 = vmatpush1.msra.mxu0 %v4282
    %4300 = vmatprep.subr.mxu0 0.0
    %4301 = vmatpush1.msra.mxu0 %v4283
    %4302 = vmatprep.subr.mxu0 0.0
    %4303 = vmatpush1.msra.mxu0 %v4284
    %4304 = vmatprep.subr.mxu0 0.0
    %4305 = vmatpush1.msra.mxu0 %v4285
    %4306 = vmatprep.subr.mxu0 0.0
    %4307 = vmatpush1.msra.mxu0 %v4286
    %4308 = vmatprep.subr.mxu0 0.0
    %4309 = vmatpush1.msra.mxu0 %v4287
    %4310 = vmatprep.subr.mxu0 0.0
    %4311 = vmatpush1.msra.mxu0 0.0
    %4312 = vmatprep.subr.mxu0 0.0
    %4313 = vmatpush1.msra.mxu0 0.0
    %4314 = vmatprep.subr.mxu0 0.0
    %4315 = vmatpush1.msra.mxu0 0.0
    %4316 = vmatprep.subr.mxu0 0.0
    %4317 = vmatpush1.msra.mxu0 0.0
    %4318 = vmatprep.subr.mxu0 0.0
    %4319 = vmatpush1.msra.mxu0 0.0
    %4320 = vmatprep.subr.mxu0 0.0
    %4321 = vmatpush1.msra.mxu0 0.0
    %4322 = vmatprep.subr.mxu0 0.0
    %4323 = vmatpush1.msra.mxu0 0.0
    %4324 = vmatprep.subr.mxu0 0.0
    %4325 = vmatpush1.msra.mxu0 0.0
    %4326 = vmatprep.subr.mxu0 0.0
    %4327 = vmatpush1.msra.mxu0 0.0
    %4328 = vmatprep.subr.mxu0 0.0
    %4329 = vmatpush1.msra.mxu0 0.0
    %4330 = vmatprep.subr.mxu0 0.0
    %4331 = vmatpush1.msra.mxu0 0.0
    %4332 = vmatprep.subr.mxu0 0.0
    %4333 = vmatpush1.msra.mxu0 0.0
    %4334 = vmatprep.subr.mxu0 0.0
    %4335 = vmatpush1.msra.mxu0 0.0
    %4336 = vmatprep.subr.mxu0 0.0
    %4337 = vmatpush1.msra.mxu0 0.0
    %4338 = vmatprep.subr.mxu0 0.0
    %4339 = vmatpush1.msra.mxu0 0.0
    %4340 = vmatprep.subr.mxu0 0.0
    %4341 = vmatpush1.msra.mxu0 0.0
    %4342 = vmatprep.subr.mxu0 0.0
    %4343 = vmatpush1.msra.mxu0 0.0
    %4344 = vmatprep.subr.mxu0 0.0
    %4345 = vmatpush1.msra.mxu0 0.0
    %4346 = vmatprep.subr.mxu0 0.0
    %4347 = vmatpush1.msra.mxu0 0.0
    %4348 = vmatprep.subr.mxu0 0.0
    %4349 = vmatpush1.msra.mxu0 0.0
    %4350 = vmatprep.subr.mxu0 0.0
    %4351 = vmatpush1.msra.mxu0 0.0
    %4352 = vmatprep.subr.mxu0 0.0
    %4353 = vmatpush1.msra.mxu0 0.0
    %4354 = vmatprep.subr.mxu0 0.0
    %4355 = vmatpush1.msra.mxu0 0.0
    %4356 = vmatprep.subr.mxu0 0.0
    %4357 = vmatpush1.msra.mxu0 0.0
    %4358 = vmatprep.mubr.f32.mxu0 0.0
    %4359 = vmatmul.mubr.f32.gmra.mrb[0].mxu0 %v4289
    %v4360 = vpop.f32.mrb[0].mxu0
    %v4361 = vadd.f32 0.0, %v4360
    %v4362 = vpop.f32.mrb[0].mxu0
    %4363 = vmatprep.mubr.f32.mxu0 0.0
    %4364 = vmatmul.mubr.f32.gmra.mrb[0].mxu0 %v4292
    %v4365 = vpop.f32.mrb[0].mxu0
    %v4366 = vadd.f32 0.0, %v4365
    %v4367 = vpop.f32.mrb[0].mxu0
    %4368 = vdwg.mxu0
    %v4369 = vadd.f32 %v4135, %v4361
    %v4370 = vadd.f32 %v4136, %v4366
    %s4371 = scalar_lea.vmem %s21, 1
    %v4372 = vld [vmem:[%s4371] sm:$0x1]
    %v4374 = vlaneseq
    %v4375 = vshrl.u32 %v4374, 7
    %v4376 = vsub.s32 0, %v4375
    %v4377 = vrot.slane %v4372, %v4376
    %v4379 = vadd.f32 %v4369, %v4377
    %v4380 = vadd.f32 %v4370, %v4377
    %v4381 = vld [vmem:[%s24] sm:$0x1]
    %v4382 = vld [vmem:[%s25] sm:$0x1]
    %v4383 = vsel %vm333, %v4379, 0.0
    %4384 = vadd.xlane.f32.xlu0 %v4383
    %v4385 = vpop.xlane.xlu0 %4384
    %v4386 = vsel %vm333, %v4380, 0.0
    %4387 = vadd.xlane.f32.xlu0 %v4386
    %v4388 = vpop.xlane.xlu0 %4387
    %v4389 = vmul.f32 %v4385, %v340
    %v4390 = vmul.f32 %v4388, %v340
    %v4391 = vsub.f32 %v4379, %v4389
    %v4392 = vsub.f32 %v4380, %v4390
    %v4393 = vmul.f32 %v4391, %v4391
    %v4394 = vmul.f32 %v4392, %v4392
    %v4395 = vsel %vm333, %v4393, 0.0
    %4396 = vadd.xlane.f32.xlu0 %v4395
    %v4397 = vpop.xlane.xlu0 %4396
    %v4398 = vsel %vm333, %v4394, 0.0
    %4399 = vadd.xlane.f32.xlu0 %v4398
    %v4400 = vpop.xlane.xlu0 %4399
    %v4401 = vmul.f32 %v4397, %v340
    %v4402 = vmul.f32 %v4400, %v340
    %v4403 = vadd.f32 %v4401, 1e-05
    %v4404 = vadd.f32 %v4402, 1e-05
    %v4405 = vrsqrt.pop %v4403
    %v4406 = vrsqrt.pop %v4404
    %v4407 = vmul.f32 %v4391, %v4405
    %v4408 = vmul.f32 %v4392, %v4406
    %v4410 = vlaneseq
    %v4411 = vshrl.u32 %v4410, 7
    %v4412 = vsub.s32 0, %v4411
    %v4413 = vrot.slane %v4381, %v4412
    %v4415 = vmul.f32 %v4407, %v4413
    %v4416 = vmul.f32 %v4408, %v4413
    %v4418 = vlaneseq
    %v4419 = vshrl.u32 %v4418, 7
    %v4420 = vsub.s32 0, %v4419
    %v4421 = vrot.slane %v4382, %v4420
    %v4423 = vadd.f32 %v4415, %v4421
    %v4424 = vadd.f32 %v4416, %v4421
    %4425 = vst.msk [vmem:[#allocation26] sm:$0xff] %vm333, %v4423
    %4426 = vst.msk [vmem:[#allocation26 + $0x8] sm:$0xff] %vm333, %v4424
    // Predicated region
    $region166: #{run.1} parent=1 // pred_check
      _
    $region167: #{run.1} parent=1 // pred_check_branch
      %4428 = sbr.rel (0) target = $region169
    $region168: #{run.1} parent=1 // pred_region
      %s4430 = ssub.s32 256, 256
      %4431 = vsyncadd [#allocation4], %s4430
      %s4432 = sshll.u32 [#allocation26], 4
      %s4433 = int_to_ptr.vmem [resolvable:$true] %s4432
      %4438 = dma.vmem_to_hbm [thread:$0]  %s4433, 256, %s26, [#allocation4], 128, 128, 8
    $region169: #{run.1} parent=1 // pred_fallthru
      _
    // Predicated region
    $region170: #{run.1} parent=1 // pred_check
      _
    $region171: #{run.1} parent=1 // pred_check_branch
      %4440 = sbr.rel (0) target = $region173
    $region172: #{run.1} parent=1 // pred_region
      %4441 = dma.done [#allocation4], 256
    $region173: #{run.1} parent=1 // pred_fallthru
      _
    %4442 = vsyncpa [#allocation3], 1
    %4443 = vsyncpa [#allocation6], 1
    %4444 = vsyncpa [#allocation9], 1
    %4445 = vsyncpa [#allocation12], 1
    %4446 = vsyncpa [#allocation15], 1
    %4447 = vsyncpa [#allocation18], 1
    %4448 = vsyncpa [#allocation21], 1
    %4449 = vsyncpa [#allocation24], 1
    %4450 = vsyncpa [#allocation4], 1

</llo_original>
